<compile_context>
chip_gen: v5e
topology: v5e:2x2
jax: 0.10.0
libtpu: 0.0.40
codegen_flags: <defaults>
</compile_context>

<pallas_src>
import functools
import math

import jax
import jax.numpy as jnp
from jax.experimental import pallas as pl
from jax.experimental.pallas import tpu as pltpu

LN_EPS = 1e-12  # hyunwoongko-style LayerNorm eps (PyTorch nn.LayerNorm default is 1e-5)

_VMEM = pl.BlockSpec(memory_space=pltpu.MemorySpace.VMEM)


# ----------------------------------------------------------------------------
# Pallas kernels
# ----------------------------------------------------------------------------

def _attn_block_kernel(xq_ref, xkv_ref, m_ref,
                       wq_ref, bq_ref, wkv_ref, bkv_ref,
                       wo_ref, bo_ref, g_ref, beta_ref,
                       o_ref, *, n_head, scale, eps):
    """Fused multi-head attention block: proj -> attn -> proj -> +res -> LN."""
    B, Sq, D = xq_ref.shape
    Skv = xkv_ref.shape[1]
    dk = D // n_head

    xq = xq_ref[...]                                   # (B, Sq, D)  bf16
    xkv = xkv_ref[...]                                 # (B, Skv, D) bf16
    xq2 = xq.reshape(B * Sq, D)
    xkv2 = xkv.reshape(B * Skv, D)

    # Q projection + fused K|V projection (bf16 inputs, f32 accumulation on MXU).
    q = jnp.dot(xq2, wq_ref[...], preferred_element_type=jnp.float32) + bq_ref[...]
    kv = jnp.dot(xkv2, wkv_ref[...], preferred_element_type=jnp.float32) + bkv_ref[...]
    q3 = q.reshape(B, Sq, D)
    k3 = kv[:, :D].reshape(B, Skv, D)
    v3 = kv[:, D:].reshape(B, Skv, D)

    mask = m_ref[...]                                  # (B, Sq, Skv) f32, {0,1}

    # Per-head scaled-dot-product attention, all heads/batches in one invocation.
    heads = []
    for h in range(n_head):                            # static unroll (n_head small)
        lo, hi = h * dk, (h + 1) * dk
        qh = q3[:, :, lo:hi].astype(jnp.bfloat16)      # (B, Sq, dk)
        kh = k3[:, :, lo:hi].astype(jnp.bfloat16)      # (B, Skv, dk)
        vh = v3[:, :, lo:hi].astype(jnp.bfloat16)      # (B, Skv, dk)
        # contract last dims directly (no k.T materialization)
        s = jnp.einsum("bqd,bkd->bqk", qh, kh,
                       preferred_element_type=jnp.float32) * scale
        s = jnp.where(mask > 0.5, s, jnp.float32(-10000.0))   # masked_fill(mask==0, -1e4)
        s = s - jnp.max(s, axis=-1, keepdims=True)
        p = jnp.exp(s)
        p = p * pl.reciprocal(jnp.sum(p, axis=-1, keepdims=True), approx=True)
        heads.append(jnp.einsum("bqk,bkd->bqd", p.astype(jnp.bfloat16), vh,
                                preferred_element_type=jnp.float32))
    # Head merge done in-kernel -> lane-dense (B, Sq, H*dk = D) tensor.
    attn = jnp.concatenate(heads, axis=-1)

    # Output projection + residual + LayerNorm (f32 statistics).
    proj = jnp.dot(attn.reshape(B * Sq, D).astype(jnp.bfloat16), wo_ref[...],
                   preferred_element_type=jnp.float32) + bo_ref[...]
    y = proj + xq2.astype(jnp.float32)
    mu = jnp.mean(y, axis=-1, keepdims=True)
    var = jnp.mean((y - mu) ** 2, axis=-1, keepdims=True)     # unbiased=False
    y = (y - mu) * jax.lax.rsqrt(var + eps)
    o_ref[...] = (y * g_ref[...] + beta_ref[...]).astype(o_ref.dtype)


def _ffn_block_kernel(x_ref, w1_ref, b1_ref, w2_ref, b2_ref, g_ref, beta_ref,
                      o_ref, *, eps):
    """Fused position-wise FFN block: w1 -> ReLU -> w2 -> +res -> LN."""
    x = x_ref[...]                                     # (M, D) bf16
    h = jnp.dot(x, w1_ref[...], preferred_element_type=jnp.float32) + b1_ref[...]
    h = jnp.maximum(h, 0.0)
    f = jnp.dot(h.astype(jnp.bfloat16), w2_ref[...],
                preferred_element_type=jnp.float32) + b2_ref[...]
    y = f + x.astype(jnp.float32)
    mu = jnp.mean(y, axis=-1, keepdims=True)
    var = jnp.mean((y - mu) ** 2, axis=-1, keepdims=True)
    y = (y - mu) * jax.lax.rsqrt(var + eps)
    o_ref[...] = (y * g_ref[...] + beta_ref[...]).astype(o_ref.dtype)


def _vocab_proj_kernel(x_ref, w_ref, b_ref, o_ref):
    """Final Linear(d_model, vocab_padded) with lane-dense (multiple-of-128) output."""
    y = jnp.dot(x_ref[...], w_ref[...], preferred_element_type=jnp.float32) + b_ref[...]
    o_ref[...] = y.astype(o_ref.dtype)


# ----------------------------------------------------------------------------
# Pallas wrappers (shapes are tiny -> whole arrays live in VMEM, no grid)
# ----------------------------------------------------------------------------

def attn_block(x_q, x_kv, mask3, p, gamma, beta, n_head, eps=LN_EPS):
    B, Sq, D = x_q.shape
    dk = D // n_head
    scale = 1.0 / math.sqrt(dk)
    out = pl.pallas_call(
        functools.partial(_attn_block_kernel, n_head=n_head, scale=scale, eps=eps),
        out_shape=jax.ShapeDtypeStruct((B * Sq, D), jnp.bfloat16),
        in_specs=[_VMEM] * 11,
        out_specs=_VMEM,
    )(x_q, x_kv, mask3,
      p["wq"], p["bq"], p["wkv"], p["bkv"], p["wo"], p["bo"], gamma, beta)
    return out.reshape(B, Sq, D)


def ffn_block(x, p, gamma, beta, eps=LN_EPS):
    B, S, D = x.shape
    out = pl.pallas_call(
        functools.partial(_ffn_block_kernel, eps=eps),
        out_shape=jax.ShapeDtypeStruct((B * S, D), jnp.bfloat16),
        in_specs=[_VMEM] * 7,
        out_specs=_VMEM,
    )(x.reshape(B * S, D),
      p["ffn_w1"], p["ffn_b1"], p["ffn_w2"], p["ffn_b2"], gamma, beta)
    return out.reshape(B, S, D)


def vocab_proj(x2d, w_pad, b_pad):
    M = x2d.shape[0]
    Vp = w_pad.shape[1]
    return pl.pallas_call(
        _vocab_proj_kernel,
        out_shape=jax.ShapeDtypeStruct((M, Vp), jnp.float32),
        in_specs=[_VMEM] * 3,
        out_specs=_VMEM,
    )(x2d, w_pad, b_pad)


# ----------------------------------------------------------------------------
# Model (JAX glue around the fused Pallas kernels)
# ----------------------------------------------------------------------------

def sinusoidal_pe(max_len, d_model):
    pos = jnp.arange(max_len, dtype=jnp.float32)[:, None]
    i = jnp.arange(0, d_model, 2, dtype=jnp.float32)[None, :]
    angle = pos / jnp.power(10000.0, i / d_model)
    pe = jnp.zeros((max_len, d_model), dtype=jnp.float32)
    pe = pe.at[:, 0::2].set(jnp.sin(angle))
    pe = pe.at[:, 1::2].set(jnp.cos(angle))
    return pe


def decoder_forward(trg, enc_src, trg_mask, src_mask, params, n_head):
    B, S = trg.shape
    D = params["tok_emb"].shape[1]
    S_src = enc_src.shape[1]

    # TransformerEmbedding: token-embedding gather + sinusoidal PE (JAX glue).
    # TODO(synk): dropout layers are identity (eval mode); padding_idx of nn.Embedding ignored.
    x = jnp.take(params["tok_emb"], trg, axis=0) + params["pe"][:S][None, :, :]
    x = x.astype(jnp.bfloat16)
    enc = enc_src.astype(jnp.bfloat16)

    # Broadcast masks once to (B, Sq, Sk); the fused kernel reads them a single time.
    tmask = jnp.broadcast_to(trg_mask[:, 0], (B, S, S)).astype(jnp.float32)
    smask = jnp.broadcast_to(src_mask[:, 0], (B, S, S_src)).astype(jnp.float32)

    for lp in params["layers"]:
        x = attn_block(x, x,   tmask, lp["self_attn"],  lp["ln1_g"], lp["ln1_b"], n_head)
        x = attn_block(x, enc, smask, lp["cross_attn"], lp["ln2_g"], lp["ln2_b"], n_head)
        x = ffn_block(x, lp, lp["ln3_g"], lp["ln3_b"])

    # Final vocab projection: pad out dim to a 128-lane multiple for unmasked stores.
    V = params["out_w"].shape[1]
    Vp = ((V + 127) // 128) * 128
    w_pad = jnp.pad(params["out_w"], ((0, 0), (0, Vp - V)))
    b_pad = jnp.pad(params["out_b"], ((0, 0), (0, Vp - V)))
    logits = vocab_proj(x.reshape(B * S, D), w_pad, b_pad)
    return logits[:, :V].reshape(B, S, V)


# ----------------------------------------------------------------------------
# Deterministic parameter initialization (weights bf16, biases / LN params f32)
# ----------------------------------------------------------------------------

def _init(key, shape, scale=0.02):
    return scale * jax.random.normal(key, shape, dtype=jnp.float32)


def make_params(key, vocab, max_len, d_model, ffn_hidden, n_layers):
    keys = iter(jax.random.split(key, 8 + n_layers * 32))

    def attn_params():
        wq = _init(next(keys), (d_model, d_model))
        wk = _init(next(keys), (d_model, d_model))
        wv = _init(next(keys), (d_model, d_model))
        wo = _init(next(keys), (d_model, d_model))
        return {
            "wq": wq.astype(jnp.bfloat16),
            "bq": jnp.zeros((1, d_model), jnp.float32),
            "wkv": jnp.concatenate([wk, wv], axis=1).astype(jnp.bfloat16),  # fused K|V
            "bkv": jnp.zeros((1, 2 * d_model), jnp.float32),
            "wo": wo.astype(jnp.bfloat16),
            "bo": jnp.zeros((1, d_model), jnp.float32),
        }

    layers = []
    for _ in range(n_layers):
        layers.append({
            "self_attn": attn_params(),
            "cross_attn": attn_params(),
            "ln1_g": jnp.ones((1, d_model), jnp.float32), "ln1_b": jnp.zeros((1, d_model), jnp.float32),
            "ln2_g": jnp.ones((1, d_model), jnp.float32), "ln2_b": jnp.zeros((1, d_model), jnp.float32),
            "ln3_g": jnp.ones((1, d_model), jnp.float32), "ln3_b": jnp.zeros((1, d_model), jnp.float32),
            "ffn_w1": _init(next(keys), (d_model, ffn_hidden)).astype(jnp.bfloat16),
            "ffn_b1": jnp.zeros((1, ffn_hidden), jnp.float32),
            "ffn_w2": _init(next(keys), (ffn_hidden, d_model)).astype(jnp.bfloat16),
            "ffn_b2": jnp.zeros((1, d_model), jnp.float32),
        })

    return {
        "tok_emb": _init(next(keys), (vocab, d_model), scale=1.0),
        "pe": sinusoidal_pe(max_len, d_model),
        "layers": layers,
        "out_w": _init(next(keys), (d_model, vocab)).astype(jnp.bfloat16),
        "out_b": jnp.zeros((1, vocab), jnp.float32),
    }


# ----------------------------------------------------------------------------
# Main
# ----------------------------------------------------------------------------

if __name__ == "__main__":
    dec_vocab_size = 50
    max_len = 16
    d_model = 32
    ffn_hidden = 64
    n_head = 4
    n_layers = 2

    B, S_trg, S_src = 2, 8, 12

    key = jax.random.PRNGKey(0)
    k_param, k_trg, k_enc = jax.random.split(key, 3)

    params = make_params(k_param, dec_vocab_size, max_len, d_model, ffn_hidden, n_layers)

    trg = jax.random.randint(k_trg, (B, S_trg), 0, dec_vocab_size, dtype=jnp.int32)
    enc_src = jax.random.normal(k_enc, (B, S_src, d_model), dtype=jnp.float32)

    # trg_mask: causal (no-peek) mask (B, 1, S_trg, S_trg); src_mask: all-ones (B, 1, 1, S_src)
    causal = jnp.tril(jnp.ones((S_trg, S_trg), dtype=jnp.float32))
    trg_mask = jnp.broadcast_to(causal, (B, 1, S_trg, S_trg))
    src_mask = jnp.ones((B, 1, 1, S_src), dtype=jnp.float32)

    fwd = jax.jit(functools.partial(decoder_forward, n_head=n_head))
    out = fwd(trg, enc_src, trg_mask, src_mask, params)
    out = jax.block_until_ready(out)

    assert out.shape == (B, S_trg, dec_vocab_size), out.shape
    assert jnp.all(jnp.isfinite(out))
    print("KERNEL_OK")
</pallas_src>

<mosaic_0001>
module attributes {stable_mosaic.version = 11 : i64} {
  func.func @_attn_block_kernel(%arg0: memref<2x8x32xbf16, #tpu.memory_space<vmem>>, %arg1: memref<2x8x32xbf16, #tpu.memory_space<vmem>>, %arg2: memref<2x8x8xf32, #tpu.memory_space<vmem>>, %arg3: memref<32x32xbf16, #tpu.memory_space<vmem>>, %arg4: memref<1x32xf32, #tpu.memory_space<vmem>>, %arg5: memref<32x64xbf16, #tpu.memory_space<vmem>>, %arg6: memref<1x64xf32, #tpu.memory_space<vmem>>, %arg7: memref<32x32xbf16, #tpu.memory_space<vmem>>, %arg8: memref<1x32xf32, #tpu.memory_space<vmem>>, %arg9: memref<1x32xf32, #tpu.memory_space<vmem>>, %arg10: memref<1x32xf32, #tpu.memory_space<vmem>>, %arg11: memref<16x32xbf16, #tpu.memory_space<vmem>>) attributes {dimension_semantics = [], scalar_prefetch = 0 : i64, scratch_operands = 0 : i64, tpu.core_type = #tpu.core_type<tc>} {
    %c0 = arith.constant 0 : index
    %c0_0 = arith.constant 0 : index
    %c0_1 = arith.constant 0 : index
    %0 = vector.load %arg0[%c0, %c0_0, %c0_1] : memref<2x8x32xbf16, #tpu.memory_space<vmem>>, vector<2x8x32xbf16>
    %c0_2 = arith.constant 0 : index
    %c0_3 = arith.constant 0 : index
    %c0_4 = arith.constant 0 : index
    %1 = vector.load %arg1[%c0_2, %c0_3, %c0_4] : memref<2x8x32xbf16, #tpu.memory_space<vmem>>, vector<2x8x32xbf16>
    %2 = vector.shape_cast %0 : vector<2x8x32xbf16> to vector<16x32xbf16>
    %3 = vector.shape_cast %1 : vector<2x8x32xbf16> to vector<16x32xbf16>
    %c0_5 = arith.constant 0 : index
    %c0_6 = arith.constant 0 : index
    %4 = vector.load %arg3[%c0_5, %c0_6] : memref<32x32xbf16, #tpu.memory_space<vmem>>, vector<32x32xbf16>
    %cst = arith.constant dense<0.000000e+00> : vector<16x32xf32>
    %5 = tpu.matmul %2, %4, %cst {dimension_numbers = #tpu.dot_dimension_numbers<[1], [0], [0], [1], [0, 0, 1, 1], [], []>} : vector<16x32xbf16>, vector<32x32xbf16>, vector<16x32xf32> -> vector<16x32xf32>
    %c0_7 = arith.constant 0 : index
    %c0_8 = arith.constant 0 : index
    %6 = vector.load %arg4[%c0_7, %c0_8] : memref<1x32xf32, #tpu.memory_space<vmem>>, vector<1x32xf32>
    %7 = vector.broadcast %6 : vector<1x32xf32> to vector<16x32xf32>
    %8 = arith.addf %5, %7 : vector<16x32xf32>
    %c0_9 = arith.constant 0 : index
    %c0_10 = arith.constant 0 : index
    %9 = vector.load %arg5[%c0_9, %c0_10] : memref<32x64xbf16, #tpu.memory_space<vmem>>, vector<32x64xbf16>
    %cst_11 = arith.constant dense<0.000000e+00> : vector<16x64xf32>
    %10 = tpu.matmul %3, %9, %cst_11 {dimension_numbers = #tpu.dot_dimension_numbers<[1], [0], [0], [1], [0, 0, 1, 1], [], []>} : vector<16x32xbf16>, vector<32x64xbf16>, vector<16x64xf32> -> vector<16x64xf32>
    %c0_12 = arith.constant 0 : index
    %c0_13 = arith.constant 0 : index
    %11 = vector.load %arg6[%c0_12, %c0_13] : memref<1x64xf32, #tpu.memory_space<vmem>>, vector<1x64xf32>
    %12 = vector.broadcast %11 : vector<1x64xf32> to vector<16x64xf32>
    %13 = arith.addf %10, %12 : vector<16x64xf32>
    %14 = vector.shape_cast %8 : vector<16x32xf32> to vector<2x8x32xf32>
    %15 = vector.extract_strided_slice %13 {offsets = [0, 0], sizes = [16, 32], strides = [1, 1]} : vector<16x64xf32> to vector<16x32xf32>
    %16 = vector.shape_cast %15 : vector<16x32xf32> to vector<2x8x32xf32>
    %17 = vector.extract_strided_slice %13 {offsets = [0, 32], sizes = [16, 32], strides = [1, 1]} : vector<16x64xf32> to vector<16x32xf32>
    %18 = vector.shape_cast %17 : vector<16x32xf32> to vector<2x8x32xf32>
    %c0_14 = arith.constant 0 : index
    %c0_15 = arith.constant 0 : index
    %c0_16 = arith.constant 0 : index
    %19 = vector.load %arg2[%c0_14, %c0_15, %c0_16] : memref<2x8x8xf32, #tpu.memory_space<vmem>>, vector<2x8x8xf32>
    %20 = vector.extract_strided_slice %14 {offsets = [0, 0, 0], sizes = [2, 8, 8], strides = [1, 1, 1]} : vector<2x8x32xf32> to vector<2x8x8xf32>
    %21 = arith.truncf %20 : vector<2x8x8xf32> to vector<2x8x8xbf16>
    %22 = vector.extract_strided_slice %16 {offsets = [0, 0, 0], sizes = [2, 8, 8], strides = [1, 1, 1]} : vector<2x8x32xf32> to vector<2x8x8xf32>
    %23 = arith.truncf %22 : vector<2x8x8xf32> to vector<2x8x8xbf16>
    %24 = vector.extract_strided_slice %18 {offsets = [0, 0, 0], sizes = [2, 8, 8], strides = [1, 1, 1]} : vector<2x8x32xf32> to vector<2x8x8xf32>
    %25 = arith.truncf %24 : vector<2x8x8xf32> to vector<2x8x8xbf16>
    "tpu.trace_start"() <{level = 10 : i32, message = "bqd,bkd->bqk"}> : () -> ()
    %cst_17 = arith.constant dense<0.000000e+00> : vector<2x8x8xf32>
    %26 = tpu.matmul %21, %23, %cst_17 {dimension_numbers = #tpu.dot_dimension_numbers<[2], [2], [1], [1], [0, 0, 0, 1, 1, 1], [0], [0]>} : vector<2x8x8xbf16>, vector<2x8x8xbf16>, vector<2x8x8xf32> -> vector<2x8x8xf32>
    "tpu.trace_stop"() : () -> ()
    %cst_18 = arith.constant 0.353553385 : f32
    %27 = vector.broadcast %cst_18 : f32 to vector<2x8x8xf32>
    %28 = arith.mulf %26, %27 : vector<2x8x8xf32>
    %cst_19 = arith.constant 5.000000e-01 : f32
    %29 = vector.broadcast %cst_19 : f32 to vector<2x8x8xf32>
    %30 = arith.cmpf ogt, %19, %29 : vector<2x8x8xf32>
    %cst_20 = arith.constant -1.000000e+04 : f32
    %31 = vector.broadcast %cst_20 : f32 to vector<2x8x8xf32>
    %32 = arith.select %30, %28, %31 : vector<2x8x8xi1>, vector<2x8x8xf32>
    %cst_21 = arith.constant dense<0xFF800000> : vector<2x8xf32>
    %33 = vector.multi_reduction <maximumf>, %32, %cst_21 [2] : vector<2x8x8xf32> to vector<2x8xf32>
    %34 = vector.shape_cast %33 : vector<2x8xf32> to vector<2x8x1xf32>
    %35 = vector.broadcast %34 : vector<2x8x1xf32> to vector<2x8x8xf32>
    %36 = arith.subf %32, %35 : vector<2x8x8xf32>
    %37 = math.exp %36 : vector<2x8x8xf32>
    %cst_22 = arith.constant dense<0.000000e+00> : vector<2x8xf32>
    %38 = vector.multi_reduction <add>, %37, %cst_22 [2] : vector<2x8x8xf32> to vector<2x8xf32>
    %39 = vector.shape_cast %38 : vector<2x8xf32> to vector<2x8x1xf32>
    %40 = tpu.reciprocal %39 {approx = true} : vector<2x8x1xf32> -> vector<2x8x1xf32>
    %41 = vector.broadcast %40 : vector<2x8x1xf32> to vector<2x8x8xf32>
    %42 = arith.mulf %37, %41 : vector<2x8x8xf32>
    %43 = arith.truncf %42 : vector<2x8x8xf32> to vector<2x8x8xbf16>
    "tpu.trace_start"() <{level = 10 : i32, message = "bqk,bkd->bqd"}> : () -> ()
    %cst_23 = arith.constant dense<0.000000e+00> : vector<2x8x8xf32>
    %44 = tpu.matmul %43, %25, %cst_23 {dimension_numbers = #tpu.dot_dimension_numbers<[2], [1], [1], [2], [0, 0, 0, 1, 1, 2], [0], [0]>} : vector<2x8x8xbf16>, vector<2x8x8xbf16>, vector<2x8x8xf32> -> vector<2x8x8xf32>
    "tpu.trace_stop"() : () -> ()
    %45 = vector.extract_strided_slice %14 {offsets = [0, 0, 8], sizes = [2, 8, 8], strides = [1, 1, 1]} : vector<2x8x32xf32> to vector<2x8x8xf32>
    %46 = arith.truncf %45 : vector<2x8x8xf32> to vector<2x8x8xbf16>
    %47 = vector.extract_strided_slice %16 {offsets = [0, 0, 8], sizes = [2, 8, 8], strides = [1, 1, 1]} : vector<2x8x32xf32> to vector<2x8x8xf32>
    %48 = arith.truncf %47 : vector<2x8x8xf32> to vector<2x8x8xbf16>
    %49 = vector.extract_strided_slice %18 {offsets = [0, 0, 8], sizes = [2, 8, 8], strides = [1, 1, 1]} : vector<2x8x32xf32> to vector<2x8x8xf32>
    %50 = arith.truncf %49 : vector<2x8x8xf32> to vector<2x8x8xbf16>
    "tpu.trace_start"() <{level = 10 : i32, message = "bqd,bkd->bqk"}> : () -> ()
    %cst_24 = arith.constant dense<0.000000e+00> : vector<2x8x8xf32>
    %51 = tpu.matmul %46, %48, %cst_24 {dimension_numbers = #tpu.dot_dimension_numbers<[2], [2], [1], [1], [0, 0, 0, 1, 1, 1], [0], [0]>} : vector<2x8x8xbf16>, vector<2x8x8xbf16>, vector<2x8x8xf32> -> vector<2x8x8xf32>
    "tpu.trace_stop"() : () -> ()
    %cst_25 = arith.constant 0.353553385 : f32
    %52 = vector.broadcast %cst_25 : f32 to vector<2x8x8xf32>
    %53 = arith.mulf %51, %52 : vector<2x8x8xf32>
    %cst_26 = arith.constant 5.000000e-01 : f32
    %54 = vector.broadcast %cst_26 : f32 to vector<2x8x8xf32>
    %55 = arith.cmpf ogt, %19, %54 : vector<2x8x8xf32>
    %cst_27 = arith.constant -1.000000e+04 : f32
    %56 = vector.broadcast %cst_27 : f32 to vector<2x8x8xf32>
    %57 = arith.select %55, %53, %56 : vector<2x8x8xi1>, vector<2x8x8xf32>
    %cst_28 = arith.constant dense<0xFF800000> : vector<2x8xf32>
    %58 = vector.multi_reduction <maximumf>, %57, %cst_28 [2] : vector<2x8x8xf32> to vector<2x8xf32>
    %59 = vector.shape_cast %58 : vector<2x8xf32> to vector<2x8x1xf32>
    %60 = vector.broadcast %59 : vector<2x8x1xf32> to vector<2x8x8xf32>
    %61 = arith.subf %57, %60 : vector<2x8x8xf32>
    %62 = math.exp %61 : vector<2x8x8xf32>
    %cst_29 = arith.constant dense<0.000000e+00> : vector<2x8xf32>
    %63 = vector.multi_reduction <add>, %62, %cst_29 [2] : vector<2x8x8xf32> to vector<2x8xf32>
    %64 = vector.shape_cast %63 : vector<2x8xf32> to vector<2x8x1xf32>
    %65 = tpu.reciprocal %64 {approx = true} : vector<2x8x1xf32> -> vector<2x8x1xf32>
    %66 = vector.broadcast %65 : vector<2x8x1xf32> to vector<2x8x8xf32>
    %67 = arith.mulf %62, %66 : vector<2x8x8xf32>
    %68 = arith.truncf %67 : vector<2x8x8xf32> to vector<2x8x8xbf16>
    "tpu.trace_start"() <{level = 10 : i32, message = "bqk,bkd->bqd"}> : () -> ()
    %cst_30 = arith.constant dense<0.000000e+00> : vector<2x8x8xf32>
    %69 = tpu.matmul %68, %50, %cst_30 {dimension_numbers = #tpu.dot_dimension_numbers<[2], [1], [1], [2], [0, 0, 0, 1, 1, 2], [0], [0]>} : vector<2x8x8xbf16>, vector<2x8x8xbf16>, vector<2x8x8xf32> -> vector<2x8x8xf32>
    "tpu.trace_stop"() : () -> ()
    %70 = vector.extract_strided_slice %14 {offsets = [0, 0, 16], sizes = [2, 8, 8], strides = [1, 1, 1]} : vector<2x8x32xf32> to vector<2x8x8xf32>
    %71 = arith.truncf %70 : vector<2x8x8xf32> to vector<2x8x8xbf16>
    %72 = vector.extract_strided_slice %16 {offsets = [0, 0, 16], sizes = [2, 8, 8], strides = [1, 1, 1]} : vector<2x8x32xf32> to vector<2x8x8xf32>
    %73 = arith.truncf %72 : vector<2x8x8xf32> to vector<2x8x8xbf16>
    %74 = vector.extract_strided_slice %18 {offsets = [0, 0, 16], sizes = [2, 8, 8], strides = [1, 1, 1]} : vector<2x8x32xf32> to vector<2x8x8xf32>
    %75 = arith.truncf %74 : vector<2x8x8xf32> to vector<2x8x8xbf16>
    "tpu.trace_start"() <{level = 10 : i32, message = "bqd,bkd->bqk"}> : () -> ()
    %cst_31 = arith.constant dense<0.000000e+00> : vector<2x8x8xf32>
    %76 = tpu.matmul %71, %73, %cst_31 {dimension_numbers = #tpu.dot_dimension_numbers<[2], [2], [1], [1], [0, 0, 0, 1, 1, 1], [0], [0]>} : vector<2x8x8xbf16>, vector<2x8x8xbf16>, vector<2x8x8xf32> -> vector<2x8x8xf32>
    "tpu.trace_stop"() : () -> ()
    %cst_32 = arith.constant 0.353553385 : f32
    %77 = vector.broadcast %cst_32 : f32 to vector<2x8x8xf32>
    %78 = arith.mulf %76, %77 : vector<2x8x8xf32>
    %cst_33 = arith.constant 5.000000e-01 : f32
    %79 = vector.broadcast %cst_33 : f32 to vector<2x8x8xf32>
    %80 = arith.cmpf ogt, %19, %79 : vector<2x8x8xf32>
    %cst_34 = arith.constant -1.000000e+04 : f32
    %81 = vector.broadcast %cst_34 : f32 to vector<2x8x8xf32>
    %82 = arith.select %80, %78, %81 : vector<2x8x8xi1>, vector<2x8x8xf32>
    %cst_35 = arith.constant dense<0xFF800000> : vector<2x8xf32>
    %83 = vector.multi_reduction <maximumf>, %82, %cst_35 [2] : vector<2x8x8xf32> to vector<2x8xf32>
    %84 = vector.shape_cast %83 : vector<2x8xf32> to vector<2x8x1xf32>
    %85 = vector.broadcast %84 : vector<2x8x1xf32> to vector<2x8x8xf32>
    %86 = arith.subf %82, %85 : vector<2x8x8xf32>
    %87 = math.exp %86 : vector<2x8x8xf32>
    %cst_36 = arith.constant dense<0.000000e+00> : vector<2x8xf32>
    %88 = vector.multi_reduction <add>, %87, %cst_36 [2] : vector<2x8x8xf32> to vector<2x8xf32>
    %89 = vector.shape_cast %88 : vector<2x8xf32> to vector<2x8x1xf32>
    %90 = tpu.reciprocal %89 {approx = true} : vector<2x8x1xf32> -> vector<2x8x1xf32>
    %91 = vector.broadcast %90 : vector<2x8x1xf32> to vector<2x8x8xf32>
    %92 = arith.mulf %87, %91 : vector<2x8x8xf32>
    %93 = arith.truncf %92 : vector<2x8x8xf32> to vector<2x8x8xbf16>
    "tpu.trace_start"() <{level = 10 : i32, message = "bqk,bkd->bqd"}> : () -> ()
    %cst_37 = arith.constant dense<0.000000e+00> : vector<2x8x8xf32>
    %94 = tpu.matmul %93, %75, %cst_37 {dimension_numbers = #tpu.dot_dimension_numbers<[2], [1], [1], [2], [0, 0, 0, 1, 1, 2], [0], [0]>} : vector<2x8x8xbf16>, vector<2x8x8xbf16>, vector<2x8x8xf32> -> vector<2x8x8xf32>
    "tpu.trace_stop"() : () -> ()
    %95 = vector.extract_strided_slice %14 {offsets = [0, 0, 24], sizes = [2, 8, 8], strides = [1, 1, 1]} : vector<2x8x32xf32> to vector<2x8x8xf32>
    %96 = arith.truncf %95 : vector<2x8x8xf32> to vector<2x8x8xbf16>
    %97 = vector.extract_strided_slice %16 {offsets = [0, 0, 24], sizes = [2, 8, 8], strides = [1, 1, 1]} : vector<2x8x32xf32> to vector<2x8x8xf32>
    %98 = arith.truncf %97 : vector<2x8x8xf32> to vector<2x8x8xbf16>
    %99 = vector.extract_strided_slice %18 {offsets = [0, 0, 24], sizes = [2, 8, 8], strides = [1, 1, 1]} : vector<2x8x32xf32> to vector<2x8x8xf32>
    %100 = arith.truncf %99 : vector<2x8x8xf32> to vector<2x8x8xbf16>
    "tpu.trace_start"() <{level = 10 : i32, message = "bqd,bkd->bqk"}> : () -> ()
    %cst_38 = arith.constant dense<0.000000e+00> : vector<2x8x8xf32>
    %101 = tpu.matmul %96, %98, %cst_38 {dimension_numbers = #tpu.dot_dimension_numbers<[2], [2], [1], [1], [0, 0, 0, 1, 1, 1], [0], [0]>} : vector<2x8x8xbf16>, vector<2x8x8xbf16>, vector<2x8x8xf32> -> vector<2x8x8xf32>
    "tpu.trace_stop"() : () -> ()
    %cst_39 = arith.constant 0.353553385 : f32
    %102 = vector.broadcast %cst_39 : f32 to vector<2x8x8xf32>
    %103 = arith.mulf %101, %102 : vector<2x8x8xf32>
    %cst_40 = arith.constant 5.000000e-01 : f32
    %104 = vector.broadcast %cst_40 : f32 to vector<2x8x8xf32>
    %105 = arith.cmpf ogt, %19, %104 : vector<2x8x8xf32>
    %cst_41 = arith.constant -1.000000e+04 : f32
    %106 = vector.broadcast %cst_41 : f32 to vector<2x8x8xf32>
    %107 = arith.select %105, %103, %106 : vector<2x8x8xi1>, vector<2x8x8xf32>
    %cst_42 = arith.constant dense<0xFF800000> : vector<2x8xf32>
    %108 = vector.multi_reduction <maximumf>, %107, %cst_42 [2] : vector<2x8x8xf32> to vector<2x8xf32>
    %109 = vector.shape_cast %108 : vector<2x8xf32> to vector<2x8x1xf32>
    %110 = vector.broadcast %109 : vector<2x8x1xf32> to vector<2x8x8xf32>
    %111 = arith.subf %107, %110 : vector<2x8x8xf32>
    %112 = math.exp %111 : vector<2x8x8xf32>
    %cst_43 = arith.constant dense<0.000000e+00> : vector<2x8xf32>
    %113 = vector.multi_reduction <add>, %112, %cst_43 [2] : vector<2x8x8xf32> to vector<2x8xf32>
    %114 = vector.shape_cast %113 : vector<2x8xf32> to vector<2x8x1xf32>
    %115 = tpu.reciprocal %114 {approx = true} : vector<2x8x1xf32> -> vector<2x8x1xf32>
    %116 = vector.broadcast %115 : vector<2x8x1xf32> to vector<2x8x8xf32>
    %117 = arith.mulf %112, %116 : vector<2x8x8xf32>
    %118 = arith.truncf %117 : vector<2x8x8xf32> to vector<2x8x8xbf16>
    "tpu.trace_start"() <{level = 10 : i32, message = "bqk,bkd->bqd"}> : () -> ()
    %cst_44 = arith.constant dense<0.000000e+00> : vector<2x8x8xf32>
    %119 = tpu.matmul %118, %100, %cst_44 {dimension_numbers = #tpu.dot_dimension_numbers<[2], [1], [1], [2], [0, 0, 0, 1, 1, 2], [0], [0]>} : vector<2x8x8xbf16>, vector<2x8x8xbf16>, vector<2x8x8xf32> -> vector<2x8x8xf32>
    "tpu.trace_stop"() : () -> ()
    %120 = tpu.concatenate %44, %69, %94, %119 in 2 : vector<2x8x8xf32>, vector<2x8x8xf32>, vector<2x8x8xf32>, vector<2x8x8xf32> -> vector<2x8x32xf32>
    %121 = vector.shape_cast %120 : vector<2x8x32xf32> to vector<16x32xf32>
    %122 = arith.truncf %121 : vector<16x32xf32> to vector<16x32xbf16>
    %c0_45 = arith.constant 0 : index
    %c0_46 = arith.constant 0 : index
    %123 = vector.load %arg7[%c0_45, %c0_46] : memref<32x32xbf16, #tpu.memory_space<vmem>>, vector<32x32xbf16>
    %cst_47 = arith.constant dense<0.000000e+00> : vector<16x32xf32>
    %124 = tpu.matmul %122, %123, %cst_47 {dimension_numbers = #tpu.dot_dimension_numbers<[1], [0], [0], [1], [0, 0, 1, 1], [], []>} : vector<16x32xbf16>, vector<32x32xbf16>, vector<16x32xf32> -> vector<16x32xf32>
    %c0_48 = arith.constant 0 : index
    %c0_49 = arith.constant 0 : index
    %125 = vector.load %arg8[%c0_48, %c0_49] : memref<1x32xf32, #tpu.memory_space<vmem>>, vector<1x32xf32>
    %126 = vector.broadcast %125 : vector<1x32xf32> to vector<16x32xf32>
    %127 = arith.addf %124, %126 : vector<16x32xf32>
    %128 = arith.extf %2 : vector<16x32xbf16> to vector<16x32xf32>
    %129 = arith.addf %127, %128 : vector<16x32xf32>
    %cst_50 = arith.constant dense<0.000000e+00> : vector<16xf32>
    %130 = vector.multi_reduction <add>, %129, %cst_50 [1] : vector<16x32xf32> to vector<16xf32>
    %131 = vector.shape_cast %130 : vector<16xf32> to vector<16x1xf32>
    %cst_51 = arith.constant 3.200000e+01 : f32
    %132 = vector.broadcast %cst_51 : f32 to vector<16x1xf32>
    %133 = arith.divf %131, %132 : vector<16x1xf32>
    %134 = vector.broadcast %133 : vector<16x1xf32> to vector<16x32xf32>
    %135 = arith.subf %129, %134 : vector<16x32xf32>
    %136 = arith.mulf %135, %135 : vector<16x32xf32>
    %cst_52 = arith.constant dense<0.000000e+00> : vector<16xf32>
    %137 = vector.multi_reduction <add>, %136, %cst_52 [1] : vector<16x32xf32> to vector<16xf32>
    %138 = vector.shape_cast %137 : vector<16xf32> to vector<16x1xf32>
    %cst_53 = arith.constant 3.200000e+01 : f32
    %139 = vector.broadcast %cst_53 : f32 to vector<16x1xf32>
    %140 = arith.divf %138, %139 : vector<16x1xf32>
    %141 = vector.broadcast %133 : vector<16x1xf32> to vector<16x32xf32>
    %142 = arith.subf %129, %141 : vector<16x32xf32>
    %cst_54 = arith.constant 9.99999996E-13 : f32
    %143 = vector.broadcast %cst_54 : f32 to vector<16x1xf32>
    %144 = arith.addf %140, %143 : vector<16x1xf32>
    %145 = math.rsqrt %144 : vector<16x1xf32>
    %146 = vector.broadcast %145 : vector<16x1xf32> to vector<16x32xf32>
    %147 = arith.mulf %142, %146 : vector<16x32xf32>
    %c0_55 = arith.constant 0 : index
    %c0_56 = arith.constant 0 : index
    %148 = vector.load %arg9[%c0_55, %c0_56] : memref<1x32xf32, #tpu.memory_space<vmem>>, vector<1x32xf32>
    %149 = vector.broadcast %148 : vector<1x32xf32> to vector<16x32xf32>
    %150 = arith.mulf %147, %149 : vector<16x32xf32>
    %c0_57 = arith.constant 0 : index
    %c0_58 = arith.constant 0 : index
    %151 = vector.load %arg10[%c0_57, %c0_58] : memref<1x32xf32, #tpu.memory_space<vmem>>, vector<1x32xf32>
    %152 = vector.broadcast %151 : vector<1x32xf32> to vector<16x32xf32>
    %153 = arith.addf %150, %152 : vector<16x32xf32>
    %154 = arith.truncf %153 : vector<16x32xf32> to vector<16x32xbf16>
    %c0_59 = arith.constant 0 : index
    %c0_60 = arith.constant 0 : index
    %155 = vector.load %arg11[%c0_59, %c0_60] : memref<16x32xbf16, #tpu.memory_space<vmem>>, vector<16x32xbf16>
    tpu.vector_store %arg11[%c0_59, %c0_60], %154 {strides = array<i32>} : memref<16x32xbf16, #tpu.memory_space<vmem>>, vector<16x32xbf16>,
    return
  }
}

module attributes {stable_mosaic.version = 11 : i64} {
  func.func @_ffn_block_kernel(%arg0: memref<16x32xbf16, #tpu.memory_space<vmem>>, %arg1: memref<32x64xbf16, #tpu.memory_space<vmem>>, %arg2: memref<1x64xf32, #tpu.memory_space<vmem>>, %arg3: memref<64x32xbf16, #tpu.memory_space<vmem>>, %arg4: memref<1x32xf32, #tpu.memory_space<vmem>>, %arg5: memref<1x32xf32, #tpu.memory_space<vmem>>, %arg6: memref<1x32xf32, #tpu.memory_space<vmem>>, %arg7: memref<16x32xbf16, #tpu.memory_space<vmem>>) attributes {dimension_semantics = [], scalar_prefetch = 0 : i64, scratch_operands = 0 : i64, tpu.core_type = #tpu.core_type<tc>} {
    %c0 = arith.constant 0 : index
    %c0_0 = arith.constant 0 : index
    %0 = vector.load %arg0[%c0, %c0_0] : memref<16x32xbf16, #tpu.memory_space<vmem>>, vector<16x32xbf16>
    %c0_1 = arith.constant 0 : index
    %c0_2 = arith.constant 0 : index
    %1 = vector.load %arg1[%c0_1, %c0_2] : memref<32x64xbf16, #tpu.memory_space<vmem>>, vector<32x64xbf16>
    %cst = arith.constant dense<0.000000e+00> : vector<16x64xf32>
    %2 = tpu.matmul %0, %1, %cst {dimension_numbers = #tpu.dot_dimension_numbers<[1], [0], [0], [1], [0, 0, 1, 1], [], []>} : vector<16x32xbf16>, vector<32x64xbf16>, vector<16x64xf32> -> vector<16x64xf32>
    %c0_3 = arith.constant 0 : index
    %c0_4 = arith.constant 0 : index
    %3 = vector.load %arg2[%c0_3, %c0_4] : memref<1x64xf32, #tpu.memory_space<vmem>>, vector<1x64xf32>
    %4 = vector.broadcast %3 : vector<1x64xf32> to vector<16x64xf32>
    %5 = arith.addf %2, %4 : vector<16x64xf32>
    %cst_5 = arith.constant 0.000000e+00 : f32
    %6 = vector.broadcast %cst_5 : f32 to vector<16x64xf32>
    %7 = arith.maximumf %5, %6 : vector<16x64xf32>
    %8 = arith.truncf %7 : vector<16x64xf32> to vector<16x64xbf16>
    %c0_6 = arith.constant 0 : index
    %c0_7 = arith.constant 0 : index
    %9 = vector.load %arg3[%c0_6, %c0_7] : memref<64x32xbf16, #tpu.memory_space<vmem>>, vector<64x32xbf16>
    %cst_8 = arith.constant dense<0.000000e+00> : vector<16x32xf32>
    %10 = tpu.matmul %8, %9, %cst_8 {dimension_numbers = #tpu.dot_dimension_numbers<[1], [0], [0], [1], [0, 0, 1, 1], [], []>} : vector<16x64xbf16>, vector<64x32xbf16>, vector<16x32xf32> -> vector<16x32xf32>
    %c0_9 = arith.constant 0 : index
    %c0_10 = arith.constant 0 : index
    %11 = vector.load %arg4[%c0_9, %c0_10] : memref<1x32xf32, #tpu.memory_space<vmem>>, vector<1x32xf32>
    %12 = vector.broadcast %11 : vector<1x32xf32> to vector<16x32xf32>
    %13 = arith.addf %10, %12 : vector<16x32xf32>
    %14 = arith.extf %0 : vector<16x32xbf16> to vector<16x32xf32>
    %15 = arith.addf %13, %14 : vector<16x32xf32>
    %cst_11 = arith.constant dense<0.000000e+00> : vector<16xf32>
    %16 = vector.multi_reduction <add>, %15, %cst_11 [1] : vector<16x32xf32> to vector<16xf32>
    %17 = vector.shape_cast %16 : vector<16xf32> to vector<16x1xf32>
    %cst_12 = arith.constant 3.200000e+01 : f32
    %18 = vector.broadcast %cst_12 : f32 to vector<16x1xf32>
    %19 = arith.divf %17, %18 : vector<16x1xf32>
    %20 = vector.broadcast %19 : vector<16x1xf32> to vector<16x32xf32>
    %21 = arith.subf %15, %20 : vector<16x32xf32>
    %22 = arith.mulf %21, %21 : vector<16x32xf32>
    %cst_13 = arith.constant dense<0.000000e+00> : vector<16xf32>
    %23 = vector.multi_reduction <add>, %22, %cst_13 [1] : vector<16x32xf32> to vector<16xf32>
    %24 = vector.shape_cast %23 : vector<16xf32> to vector<16x1xf32>
    %cst_14 = arith.constant 3.200000e+01 : f32
    %25 = vector.broadcast %cst_14 : f32 to vector<16x1xf32>
    %26 = arith.divf %24, %25 : vector<16x1xf32>
    %27 = vector.broadcast %19 : vector<16x1xf32> to vector<16x32xf32>
    %28 = arith.subf %15, %27 : vector<16x32xf32>
    %cst_15 = arith.constant 9.99999996E-13 : f32
    %29 = vector.broadcast %cst_15 : f32 to vector<16x1xf32>
    %30 = arith.addf %26, %29 : vector<16x1xf32>
    %31 = math.rsqrt %30 : vector<16x1xf32>
    %32 = vector.broadcast %31 : vector<16x1xf32> to vector<16x32xf32>
    %33 = arith.mulf %28, %32 : vector<16x32xf32>
    %c0_16 = arith.constant 0 : index
    %c0_17 = arith.constant 0 : index
    %34 = vector.load %arg5[%c0_16, %c0_17] : memref<1x32xf32, #tpu.memory_space<vmem>>, vector<1x32xf32>
    %35 = vector.broadcast %34 : vector<1x32xf32> to vector<16x32xf32>
    %36 = arith.mulf %33, %35 : vector<16x32xf32>
    %c0_18 = arith.constant 0 : index
    %c0_19 = arith.constant 0 : index
    %37 = vector.load %arg6[%c0_18, %c0_19] : memref<1x32xf32, #tpu.memory_space<vmem>>, vector<1x32xf32>
    %38 = vector.broadcast %37 : vector<1x32xf32> to vector<16x32xf32>
    %39 = arith.addf %36, %38 : vector<16x32xf32>
    %40 = arith.truncf %39 : vector<16x32xf32> to vector<16x32xbf16>
    %c0_20 = arith.constant 0 : index
    %c0_21 = arith.constant 0 : index
    %41 = vector.load %arg7[%c0_20, %c0_21] : memref<16x32xbf16, #tpu.memory_space<vmem>>, vector<16x32xbf16>
    tpu.vector_store %arg7[%c0_20, %c0_21], %40 {strides = array<i32>} : memref<16x32xbf16, #tpu.memory_space<vmem>>, vector<16x32xbf16>,
    return
  }
}

module attributes {stable_mosaic.version = 11 : i64} {
  func.func @_attn_block_kernel(%arg0: memref<2x8x32xbf16, #tpu.memory_space<vmem>>, %arg1: memref<2x12x32xbf16, #tpu.memory_space<vmem>>, %arg2: memref<2x8x12xf32, #tpu.memory_space<vmem>>, %arg3: memref<32x32xbf16, #tpu.memory_space<vmem>>, %arg4: memref<1x32xf32, #tpu.memory_space<vmem>>, %arg5: memref<32x64xbf16, #tpu.memory_space<vmem>>, %arg6: memref<1x64xf32, #tpu.memory_space<vmem>>, %arg7: memref<32x32xbf16, #tpu.memory_space<vmem>>, %arg8: memref<1x32xf32, #tpu.memory_space<vmem>>, %arg9: memref<1x32xf32, #tpu.memory_space<vmem>>, %arg10: memref<1x32xf32, #tpu.memory_space<vmem>>, %arg11: memref<16x32xbf16, #tpu.memory_space<vmem>>) attributes {dimension_semantics = [], scalar_prefetch = 0 : i64, scratch_operands = 0 : i64, tpu.core_type = #tpu.core_type<tc>} {
    %c0 = arith.constant 0 : index
    %c0_0 = arith.constant 0 : index
    %c0_1 = arith.constant 0 : index
    %0 = vector.load %arg0[%c0, %c0_0, %c0_1] : memref<2x8x32xbf16, #tpu.memory_space<vmem>>, vector<2x8x32xbf16>
    %c0_2 = arith.constant 0 : index
    %c0_3 = arith.constant 0 : index
    %c0_4 = arith.constant 0 : index
    %1 = vector.load %arg1[%c0_2, %c0_3, %c0_4] : memref<2x12x32xbf16, #tpu.memory_space<vmem>>, vector<2x12x32xbf16>
    %2 = vector.shape_cast %0 : vector<2x8x32xbf16> to vector<16x32xbf16>
    %3 = vector.shape_cast %1 : vector<2x12x32xbf16> to vector<24x32xbf16>
    %c0_5 = arith.constant 0 : index
    %c0_6 = arith.constant 0 : index
    %4 = vector.load %arg3[%c0_5, %c0_6] : memref<32x32xbf16, #tpu.memory_space<vmem>>, vector<32x32xbf16>
    %cst = arith.constant dense<0.000000e+00> : vector<16x32xf32>
    %5 = tpu.matmul %2, %4, %cst {dimension_numbers = #tpu.dot_dimension_numbers<[1], [0], [0], [1], [0, 0, 1, 1], [], []>} : vector<16x32xbf16>, vector<32x32xbf16>, vector<16x32xf32> -> vector<16x32xf32>
    %c0_7 = arith.constant 0 : index
    %c0_8 = arith.constant 0 : index
    %6 = vector.load %arg4[%c0_7, %c0_8] : memref<1x32xf32, #tpu.memory_space<vmem>>, vector<1x32xf32>
    %7 = vector.broadcast %6 : vector<1x32xf32> to vector<16x32xf32>
    %8 = arith.addf %5, %7 : vector<16x32xf32>
    %c0_9 = arith.constant 0 : index
    %c0_10 = arith.constant 0 : index
    %9 = vector.load %arg5[%c0_9, %c0_10] : memref<32x64xbf16, #tpu.memory_space<vmem>>, vector<32x64xbf16>
    %cst_11 = arith.constant dense<0.000000e+00> : vector<24x64xf32>
    %10 = tpu.matmul %3, %9, %cst_11 {dimension_numbers = #tpu.dot_dimension_numbers<[1], [0], [0], [1], [0, 0, 1, 1], [], []>} : vector<24x32xbf16>, vector<32x64xbf16>, vector<24x64xf32> -> vector<24x64xf32>
    %c0_12 = arith.constant 0 : index
    %c0_13 = arith.constant 0 : index
    %11 = vector.load %arg6[%c0_12, %c0_13] : memref<1x64xf32, #tpu.memory_space<vmem>>, vector<1x64xf32>
    %12 = vector.broadcast %11 : vector<1x64xf32> to vector<24x64xf32>
    %13 = arith.addf %10, %12 : vector<24x64xf32>
    %14 = vector.shape_cast %8 : vector<16x32xf32> to vector<2x8x32xf32>
    %15 = vector.extract_strided_slice %13 {offsets = [0, 0], sizes = [24, 32], strides = [1, 1]} : vector<24x64xf32> to vector<24x32xf32>
    %16 = vector.shape_cast %15 : vector<24x32xf32> to vector<2x12x32xf32>
    %17 = vector.extract_strided_slice %13 {offsets = [0, 32], sizes = [24, 32], strides = [1, 1]} : vector<24x64xf32> to vector<24x32xf32>
    %18 = vector.shape_cast %17 : vector<24x32xf32> to vector<2x12x32xf32>
    %c0_14 = arith.constant 0 : index
    %c0_15 = arith.constant 0 : index
    %c0_16 = arith.constant 0 : index
    %19 = vector.load %arg2[%c0_14, %c0_15, %c0_16] : memref<2x8x12xf32, #tpu.memory_space<vmem>>, vector<2x8x12xf32>
    %20 = vector.extract_strided_slice %14 {offsets = [0, 0, 0], sizes = [2, 8, 8], strides = [1, 1, 1]} : vector<2x8x32xf32> to vector<2x8x8xf32>
    %21 = arith.truncf %20 : vector<2x8x8xf32> to vector<2x8x8xbf16>
    %22 = vector.extract_strided_slice %16 {offsets = [0, 0, 0], sizes = [2, 12, 8], strides = [1, 1, 1]} : vector<2x12x32xf32> to vector<2x12x8xf32>
    %23 = arith.truncf %22 : vector<2x12x8xf32> to vector<2x12x8xbf16>
    %24 = vector.extract_strided_slice %18 {offsets = [0, 0, 0], sizes = [2, 12, 8], strides = [1, 1, 1]} : vector<2x12x32xf32> to vector<2x12x8xf32>
    %25 = arith.truncf %24 : vector<2x12x8xf32> to vector<2x12x8xbf16>
    "tpu.trace_start"() <{level = 10 : i32, message = "bqd,bkd->bqk"}> : () -> ()
    %cst_17 = arith.constant dense<0.000000e+00> : vector<2x8x12xf32>
    %26 = tpu.matmul %21, %23, %cst_17 {dimension_numbers = #tpu.dot_dimension_numbers<[2], [2], [1], [1], [0, 0, 0, 1, 1, 1], [0], [0]>} : vector<2x8x8xbf16>, vector<2x12x8xbf16>, vector<2x8x12xf32> -> vector<2x8x12xf32>
    "tpu.trace_stop"() : () -> ()
    %cst_18 = arith.constant 0.353553385 : f32
    %27 = vector.broadcast %cst_18 : f32 to vector<2x8x12xf32>
    %28 = arith.mulf %26, %27 : vector<2x8x12xf32>
    %cst_19 = arith.constant 5.000000e-01 : f32
    %29 = vector.broadcast %cst_19 : f32 to vector<2x8x12xf32>
    %30 = arith.cmpf ogt, %19, %29 : vector<2x8x12xf32>
    %cst_20 = arith.constant -1.000000e+04 : f32
    %31 = vector.broadcast %cst_20 : f32 to vector<2x8x12xf32>
    %32 = arith.select %30, %28, %31 : vector<2x8x12xi1>, vector<2x8x12xf32>
    %cst_21 = arith.constant dense<0xFF800000> : vector<2x8xf32>
    %33 = vector.multi_reduction <maximumf>, %32, %cst_21 [2] : vector<2x8x12xf32> to vector<2x8xf32>
    %34 = vector.shape_cast %33 : vector<2x8xf32> to vector<2x8x1xf32>
    %35 = vector.broadcast %34 : vector<2x8x1xf32> to vector<2x8x12xf32>
    %36 = arith.subf %32, %35 : vector<2x8x12xf32>
    %37 = math.exp %36 : vector<2x8x12xf32>
    %cst_22 = arith.constant dense<0.000000e+00> : vector<2x8xf32>
    %38 = vector.multi_reduction <add>, %37, %cst_22 [2] : vector<2x8x12xf32> to vector<2x8xf32>
    %39 = vector.shape_cast %38 : vector<2x8xf32> to vector<2x8x1xf32>
    %40 = tpu.reciprocal %39 {approx = true} : vector<2x8x1xf32> -> vector<2x8x1xf32>
    %41 = vector.broadcast %40 : vector<2x8x1xf32> to vector<2x8x12xf32>
    %42 = arith.mulf %37, %41 : vector<2x8x12xf32>
    %43 = arith.truncf %42 : vector<2x8x12xf32> to vector<2x8x12xbf16>
    "tpu.trace_start"() <{level = 10 : i32, message = "bqk,bkd->bqd"}> : () -> ()
    %cst_23 = arith.constant dense<0.000000e+00> : vector<2x8x8xf32>
    %44 = tpu.matmul %43, %25, %cst_23 {dimension_numbers = #tpu.dot_dimension_numbers<[2], [1], [1], [2], [0, 0, 0, 1, 1, 2], [0], [0]>} : vector<2x8x12xbf16>, vector<2x12x8xbf16>, vector<2x8x8xf32> -> vector<2x8x8xf32>
    "tpu.trace_stop"() : () -> ()
    %45 = vector.extract_strided_slice %14 {offsets = [0, 0, 8], sizes = [2, 8, 8], strides = [1, 1, 1]} : vector<2x8x32xf32> to vector<2x8x8xf32>
    %46 = arith.truncf %45 : vector<2x8x8xf32> to vector<2x8x8xbf16>
    %47 = vector.extract_strided_slice %16 {offsets = [0, 0, 8], sizes = [2, 12, 8], strides = [1, 1, 1]} : vector<2x12x32xf32> to vector<2x12x8xf32>
    %48 = arith.truncf %47 : vector<2x12x8xf32> to vector<2x12x8xbf16>
    %49 = vector.extract_strided_slice %18 {offsets = [0, 0, 8], sizes = [2, 12, 8], strides = [1, 1, 1]} : vector<2x12x32xf32> to vector<2x12x8xf32>
    %50 = arith.truncf %49 : vector<2x12x8xf32> to vector<2x12x8xbf16>
    "tpu.trace_start"() <{level = 10 : i32, message = "bqd,bkd->bqk"}> : () -> ()
    %cst_24 = arith.constant dense<0.000000e+00> : vector<2x8x12xf32>
    %51 = tpu.matmul %46, %48, %cst_24 {dimension_numbers = #tpu.dot_dimension_numbers<[2], [2], [1], [1], [0, 0, 0, 1, 1, 1], [0], [0]>} : vector<2x8x8xbf16>, vector<2x12x8xbf16>, vector<2x8x12xf32> -> vector<2x8x12xf32>
    "tpu.trace_stop"() : () -> ()
    %cst_25 = arith.constant 0.353553385 : f32
    %52 = vector.broadcast %cst_25 : f32 to vector<2x8x12xf32>
    %53 = arith.mulf %51, %52 : vector<2x8x12xf32>
    %cst_26 = arith.constant 5.000000e-01 : f32
    %54 = vector.broadcast %cst_26 : f32 to vector<2x8x12xf32>
    %55 = arith.cmpf ogt, %19, %54 : vector<2x8x12xf32>
    %cst_27 = arith.constant -1.000000e+04 : f32
    %56 = vector.broadcast %cst_27 : f32 to vector<2x8x12xf32>
    %57 = arith.select %55, %53, %56 : vector<2x8x12xi1>, vector<2x8x12xf32>
    %cst_28 = arith.constant dense<0xFF800000> : vector<2x8xf32>
    %58 = vector.multi_reduction <maximumf>, %57, %cst_28 [2] : vector<2x8x12xf32> to vector<2x8xf32>
    %59 = vector.shape_cast %58 : vector<2x8xf32> to vector<2x8x1xf32>
    %60 = vector.broadcast %59 : vector<2x8x1xf32> to vector<2x8x12xf32>
    %61 = arith.subf %57, %60 : vector<2x8x12xf32>
    %62 = math.exp %61 : vector<2x8x12xf32>
    %cst_29 = arith.constant dense<0.000000e+00> : vector<2x8xf32>
    %63 = vector.multi_reduction <add>, %62, %cst_29 [2] : vector<2x8x12xf32> to vector<2x8xf32>
    %64 = vector.shape_cast %63 : vector<2x8xf32> to vector<2x8x1xf32>
    %65 = tpu.reciprocal %64 {approx = true} : vector<2x8x1xf32> -> vector<2x8x1xf32>
    %66 = vector.broadcast %65 : vector<2x8x1xf32> to vector<2x8x12xf32>
    %67 = arith.mulf %62, %66 : vector<2x8x12xf32>
    %68 = arith.truncf %67 : vector<2x8x12xf32> to vector<2x8x12xbf16>
    "tpu.trace_start"() <{level = 10 : i32, message = "bqk,bkd->bqd"}> : () -> ()
    %cst_30 = arith.constant dense<0.000000e+00> : vector<2x8x8xf32>
    %69 = tpu.matmul %68, %50, %cst_30 {dimension_numbers = #tpu.dot_dimension_numbers<[2], [1], [1], [2], [0, 0, 0, 1, 1, 2], [0], [0]>} : vector<2x8x12xbf16>, vector<2x12x8xbf16>, vector<2x8x8xf32> -> vector<2x8x8xf32>
    "tpu.trace_stop"() : () -> ()
    %70 = vector.extract_strided_slice %14 {offsets = [0, 0, 16], sizes = [2, 8, 8], strides = [1, 1, 1]} : vector<2x8x32xf32> to vector<2x8x8xf32>
    %71 = arith.truncf %70 : vector<2x8x8xf32> to vector<2x8x8xbf16>
    %72 = vector.extract_strided_slice %16 {offsets = [0, 0, 16], sizes = [2, 12, 8], strides = [1, 1, 1]} : vector<2x12x32xf32> to vector<2x12x8xf32>
    %73 = arith.truncf %72 : vector<2x12x8xf32> to vector<2x12x8xbf16>
    %74 = vector.extract_strided_slice %18 {offsets = [0, 0, 16], sizes = [2, 12, 8], strides = [1, 1, 1]} : vector<2x12x32xf32> to vector<2x12x8xf32>
    %75 = arith.truncf %74 : vector<2x12x8xf32> to vector<2x12x8xbf16>
    "tpu.trace_start"() <{level = 10 : i32, message = "bqd,bkd->bqk"}> : () -> ()
    %cst_31 = arith.constant dense<0.000000e+00> : vector<2x8x12xf32>
    %76 = tpu.matmul %71, %73, %cst_31 {dimension_numbers = #tpu.dot_dimension_numbers<[2], [2], [1], [1], [0, 0, 0, 1, 1, 1], [0], [0]>} : vector<2x8x8xbf16>, vector<2x12x8xbf16>, vector<2x8x12xf32> -> vector<2x8x12xf32>
    "tpu.trace_stop"() : () -> ()
    %cst_32 = arith.constant 0.353553385 : f32
    %77 = vector.broadcast %cst_32 : f32 to vector<2x8x12xf32>
    %78 = arith.mulf %76, %77 : vector<2x8x12xf32>
    %cst_33 = arith.constant 5.000000e-01 : f32
    %79 = vector.broadcast %cst_33 : f32 to vector<2x8x12xf32>
    %80 = arith.cmpf ogt, %19, %79 : vector<2x8x12xf32>
    %cst_34 = arith.constant -1.000000e+04 : f32
    %81 = vector.broadcast %cst_34 : f32 to vector<2x8x12xf32>
    %82 = arith.select %80, %78, %81 : vector<2x8x12xi1>, vector<2x8x12xf32>
    %cst_35 = arith.constant dense<0xFF800000> : vector<2x8xf32>
    %83 = vector.multi_reduction <maximumf>, %82, %cst_35 [2] : vector<2x8x12xf32> to vector<2x8xf32>
    %84 = vector.shape_cast %83 : vector<2x8xf32> to vector<2x8x1xf32>
    %85 = vector.broadcast %84 : vector<2x8x1xf32> to vector<2x8x12xf32>
    %86 = arith.subf %82, %85 : vector<2x8x12xf32>
    %87 = math.exp %86 : vector<2x8x12xf32>
    %cst_36 = arith.constant dense<0.000000e+00> : vector<2x8xf32>
    %88 = vector.multi_reduction <add>, %87, %cst_36 [2] : vector<2x8x12xf32> to vector<2x8xf32>
    %89 = vector.shape_cast %88 : vector<2x8xf32> to vector<2x8x1xf32>
    %90 = tpu.reciprocal %89 {approx = true} : vector<2x8x1xf32> -> vector<2x8x1xf32>
    %91 = vector.broadcast %90 : vector<2x8x1xf32> to vector<2x8x12xf32>
    %92 = arith.mulf %87, %91 : vector<2x8x12xf32>
    %93 = arith.truncf %92 : vector<2x8x12xf32> to vector<2x8x12xbf16>
    "tpu.trace_start"() <{level = 10 : i32, message = "bqk,bkd->bqd"}> : () -> ()
    %cst_37 = arith.constant dense<0.000000e+00> : vector<2x8x8xf32>
    %94 = tpu.matmul %93, %75, %cst_37 {dimension_numbers = #tpu.dot_dimension_numbers<[2], [1], [1], [2], [0, 0, 0, 1, 1, 2], [0], [0]>} : vector<2x8x12xbf16>, vector<2x12x8xbf16>, vector<2x8x8xf32> -> vector<2x8x8xf32>
    "tpu.trace_stop"() : () -> ()
    %95 = vector.extract_strided_slice %14 {offsets = [0, 0, 24], sizes = [2, 8, 8], strides = [1, 1, 1]} : vector<2x8x32xf32> to vector<2x8x8xf32>
    %96 = arith.truncf %95 : vector<2x8x8xf32> to vector<2x8x8xbf16>
    %97 = vector.extract_strided_slice %16 {offsets = [0, 0, 24], sizes = [2, 12, 8], strides = [1, 1, 1]} : vector<2x12x32xf32> to vector<2x12x8xf32>
    %98 = arith.truncf %97 : vector<2x12x8xf32> to vector<2x12x8xbf16>
    %99 = vector.extract_strided_slice %18 {offsets = [0, 0, 24], sizes = [2, 12, 8], strides = [1, 1, 1]} : vector<2x12x32xf32> to vector<2x12x8xf32>
    %100 = arith.truncf %99 : vector<2x12x8xf32> to vector<2x12x8xbf16>
    "tpu.trace_start"() <{level = 10 : i32, message = "bqd,bkd->bqk"}> : () -> ()
    %cst_38 = arith.constant dense<0.000000e+00> : vector<2x8x12xf32>
    %101 = tpu.matmul %96, %98, %cst_38 {dimension_numbers = #tpu.dot_dimension_numbers<[2], [2], [1], [1], [0, 0, 0, 1, 1, 1], [0], [0]>} : vector<2x8x8xbf16>, vector<2x12x8xbf16>, vector<2x8x12xf32> -> vector<2x8x12xf32>
    "tpu.trace_stop"() : () -> ()
    %cst_39 = arith.constant 0.353553385 : f32
    %102 = vector.broadcast %cst_39 : f32 to vector<2x8x12xf32>
    %103 = arith.mulf %101, %102 : vector<2x8x12xf32>
    %cst_40 = arith.constant 5.000000e-01 : f32
    %104 = vector.broadcast %cst_40 : f32 to vector<2x8x12xf32>
    %105 = arith.cmpf ogt, %19, %104 : vector<2x8x12xf32>
    %cst_41 = arith.constant -1.000000e+04 : f32
    %106 = vector.broadcast %cst_41 : f32 to vector<2x8x12xf32>
    %107 = arith.select %105, %103, %106 : vector<2x8x12xi1>, vector<2x8x12xf32>
    %cst_42 = arith.constant dense<0xFF800000> : vector<2x8xf32>
    %108 = vector.multi_reduction <maximumf>, %107, %cst_42 [2] : vector<2x8x12xf32> to vector<2x8xf32>
    %109 = vector.shape_cast %108 : vector<2x8xf32> to vector<2x8x1xf32>
    %110 = vector.broadcast %109 : vector<2x8x1xf32> to vector<2x8x12xf32>
    %111 = arith.subf %107, %110 : vector<2x8x12xf32>
    %112 = math.exp %111 : vector<2x8x12xf32>
    %cst_43 = arith.constant dense<0.000000e+00> : vector<2x8xf32>
    %113 = vector.multi_reduction <add>, %112, %cst_43 [2] : vector<2x8x12xf32> to vector<2x8xf32>
    %114 = vector.shape_cast %113 : vector<2x8xf32> to vector<2x8x1xf32>
    %115 = tpu.reciprocal %114 {approx = true} : vector<2x8x1xf32> -> vector<2x8x1xf32>
    %116 = vector.broadcast %115 : vector<2x8x1xf32> to vector<2x8x12xf32>
    %117 = arith.mulf %112, %116 : vector<2x8x12xf32>
    %118 = arith.truncf %117 : vector<2x8x12xf32> to vector<2x8x12xbf16>
    "tpu.trace_start"() <{level = 10 : i32, message = "bqk,bkd->bqd"}> : () -> ()
    %cst_44 = arith.constant dense<0.000000e+00> : vector<2x8x8xf32>
    %119 = tpu.matmul %118, %100, %cst_44 {dimension_numbers = #tpu.dot_dimension_numbers<[2], [1], [1], [2], [0, 0, 0, 1, 1, 2], [0], [0]>} : vector<2x8x12xbf16>, vector<2x12x8xbf16>, vector<2x8x8xf32> -> vector<2x8x8xf32>
    "tpu.trace_stop"() : () -> ()
    %120 = tpu.concatenate %44, %69, %94, %119 in 2 : vector<2x8x8xf32>, vector<2x8x8xf32>, vector<2x8x8xf32>, vector<2x8x8xf32> -> vector<2x8x32xf32>
    %121 = vector.shape_cast %120 : vector<2x8x32xf32> to vector<16x32xf32>
    %122 = arith.truncf %121 : vector<16x32xf32> to vector<16x32xbf16>
    %c0_45 = arith.constant 0 : index
    %c0_46 = arith.constant 0 : index
    %123 = vector.load %arg7[%c0_45, %c0_46] : memref<32x32xbf16, #tpu.memory_space<vmem>>, vector<32x32xbf16>
    %cst_47 = arith.constant dense<0.000000e+00> : vector<16x32xf32>
    %124 = tpu.matmul %122, %123, %cst_47 {dimension_numbers = #tpu.dot_dimension_numbers<[1], [0], [0], [1], [0, 0, 1, 1], [], []>} : vector<16x32xbf16>, vector<32x32xbf16>, vector<16x32xf32> -> vector<16x32xf32>
    %c0_48 = arith.constant 0 : index
    %c0_49 = arith.constant 0 : index
    %125 = vector.load %arg8[%c0_48, %c0_49] : memref<1x32xf32, #tpu.memory_space<vmem>>, vector<1x32xf32>
    %126 = vector.broadcast %125 : vector<1x32xf32> to vector<16x32xf32>
    %127 = arith.addf %124, %126 : vector<16x32xf32>
    %128 = arith.extf %2 : vector<16x32xbf16> to vector<16x32xf32>
    %129 = arith.addf %127, %128 : vector<16x32xf32>
    %cst_50 = arith.constant dense<0.000000e+00> : vector<16xf32>
    %130 = vector.multi_reduction <add>, %129, %cst_50 [1] : vector<16x32xf32> to vector<16xf32>
    %131 = vector.shape_cast %130 : vector<16xf32> to vector<16x1xf32>
    %cst_51 = arith.constant 3.200000e+01 : f32
    %132 = vector.broadcast %cst_51 : f32 to vector<16x1xf32>
    %133 = arith.divf %131, %132 : vector<16x1xf32>
    %134 = vector.broadcast %133 : vector<16x1xf32> to vector<16x32xf32>
    %135 = arith.subf %129, %134 : vector<16x32xf32>
    %136 = arith.mulf %135, %135 : vector<16x32xf32>
    %cst_52 = arith.constant dense<0.000000e+00> : vector<16xf32>
    %137 = vector.multi_reduction <add>, %136, %cst_52 [1] : vector<16x32xf32> to vector<16xf32>
    %138 = vector.shape_cast %137 : vector<16xf32> to vector<16x1xf32>
    %cst_53 = arith.constant 3.200000e+01 : f32
    %139 = vector.broadcast %cst_53 : f32 to vector<16x1xf32>
    %140 = arith.divf %138, %139 : vector<16x1xf32>
    %141 = vector.broadcast %133 : vector<16x1xf32> to vector<16x32xf32>
    %142 = arith.subf %129, %141 : vector<16x32xf32>
    %cst_54 = arith.constant 9.99999996E-13 : f32
    %143 = vector.broadcast %cst_54 : f32 to vector<16x1xf32>
    %144 = arith.addf %140, %143 : vector<16x1xf32>
    %145 = math.rsqrt %144 : vector<16x1xf32>
    %146 = vector.broadcast %145 : vector<16x1xf32> to vector<16x32xf32>
    %147 = arith.mulf %142, %146 : vector<16x32xf32>
    %c0_55 = arith.constant 0 : index
    %c0_56 = arith.constant 0 : index
    %148 = vector.load %arg9[%c0_55, %c0_56] : memref<1x32xf32, #tpu.memory_space<vmem>>, vector<1x32xf32>
    %149 = vector.broadcast %148 : vector<1x32xf32> to vector<16x32xf32>
    %150 = arith.mulf %147, %149 : vector<16x32xf32>
    %c0_57 = arith.constant 0 : index
    %c0_58 = arith.constant 0 : index
    %151 = vector.load %arg10[%c0_57, %c0_58] : memref<1x32xf32, #tpu.memory_space<vmem>>, vector<1x32xf32>
    %152 = vector.broadcast %151 : vector<1x32xf32> to vector<16x32xf32>
    %153 = arith.addf %150, %152 : vector<16x32xf32>
    %154 = arith.truncf %153 : vector<16x32xf32> to vector<16x32xbf16>
    %c0_59 = arith.constant 0 : index
    %c0_60 = arith.constant 0 : index
    %155 = vector.load %arg11[%c0_59, %c0_60] : memref<16x32xbf16, #tpu.memory_space<vmem>>, vector<16x32xbf16>
    tpu.vector_store %arg11[%c0_59, %c0_60], %154 {strides = array<i32>} : memref<16x32xbf16, #tpu.memory_space<vmem>>, vector<16x32xbf16>,
    return
  }
}

module attributes {stable_mosaic.version = 11 : i64} {
  func.func @_attn_block_kernel(%arg0: memref<2x8x32xbf16, #tpu.memory_space<vmem>>, %arg1: memref<2x12x32xbf16, #tpu.memory_space<vmem>>, %arg2: memref<2x8x12xf32, #tpu.memory_space<vmem>>, %arg3: memref<32x32xbf16, #tpu.memory_space<vmem>>, %arg4: memref<1x32xf32, #tpu.memory_space<vmem>>, %arg5: memref<32x64xbf16, #tpu.memory_space<vmem>>, %arg6: memref<1x64xf32, #tpu.memory_space<vmem>>, %arg7: memref<32x32xbf16, #tpu.memory_space<vmem>>, %arg8: memref<1x32xf32, #tpu.memory_space<vmem>>, %arg9: memref<1x32xf32, #tpu.memory_space<vmem>>, %arg10: memref<1x32xf32, #tpu.memory_space<vmem>>, %arg11: memref<16x32xbf16, #tpu.memory_space<vmem>>) attributes {dimension_semantics = [], scalar_prefetch = 0 : i64, scratch_operands = 0 : i64, tpu.core_type = #tpu.core_type<tc>} {
    %c0 = arith.constant 0 : index
    %c0_0 = arith.constant 0 : index
    %c0_1 = arith.constant 0 : index
    %0 = vector.load %arg0[%c0, %c0_0, %c0_1] : memref<2x8x32xbf16, #tpu.memory_space<vmem>>, vector<2x8x32xbf16>
    %c0_2 = arith.constant 0 : index
    %c0_3 = arith.constant 0 : index
    %c0_4 = arith.constant 0 : index
    %1 = vector.load %arg1[%c0_2, %c0_3, %c0_4] : memref<2x12x32xbf16, #tpu.memory_space<vmem>>, vector<2x12x32xbf16>
    %2 = vector.shape_cast %0 : vector<2x8x32xbf16> to vector<16x32xbf16>
    %3 = vector.shape_cast %1 : vector<2x12x32xbf16> to vector<24x32xbf16>
    %c0_5 = arith.constant 0 : index
    %c0_6 = arith.constant 0 : index
    %4 = vector.load %arg3[%c0_5, %c0_6] : memref<32x32xbf16, #tpu.memory_space<vmem>>, vector<32x32xbf16>
    %cst = arith.constant dense<0.000000e+00> : vector<16x32xf32>
    %5 = tpu.matmul %2, %4, %cst {dimension_numbers = #tpu.dot_dimension_numbers<[1], [0], [0], [1], [0, 0, 1, 1], [], []>} : vector<16x32xbf16>, vector<32x32xbf16>, vector<16x32xf32> -> vector<16x32xf32>
    %c0_7 = arith.constant 0 : index
    %c0_8 = arith.constant 0 : index
    %6 = vector.load %arg4[%c0_7, %c0_8] : memref<1x32xf32, #tpu.memory_space<vmem>>, vector<1x32xf32>
    %7 = vector.broadcast %6 : vector<1x32xf32> to vector<16x32xf32>
    %8 = arith.addf %5, %7 : vector<16x32xf32>
    %c0_9 = arith.constant 0 : index
    %c0_10 = arith.constant 0 : index
    %9 = vector.load %arg5[%c0_9, %c0_10] : memref<32x64xbf16, #tpu.memory_space<vmem>>, vector<32x64xbf16>
    %cst_11 = arith.constant dense<0.000000e+00> : vector<24x64xf32>
    %10 = tpu.matmul %3, %9, %cst_11 {dimension_numbers = #tpu.dot_dimension_numbers<[1], [0], [0], [1], [0, 0, 1, 1], [], []>} : vector<24x32xbf16>, vector<32x64xbf16>, vector<24x64xf32> -> vector<24x64xf32>
    %c0_12 = arith.constant 0 : index
    %c0_13 = arith.constant 0 : index
    %11 = vector.load %arg6[%c0_12, %c0_13] : memref<1x64xf32, #tpu.memory_space<vmem>>, vector<1x64xf32>
    %12 = vector.broadcast %11 : vector<1x64xf32> to vector<24x64xf32>
    %13 = arith.addf %10, %12 : vector<24x64xf32>
    %14 = vector.shape_cast %8 : vector<16x32xf32> to vector<2x8x32xf32>
    %15 = vector.extract_strided_slice %13 {offsets = [0, 0], sizes = [24, 32], strides = [1, 1]} : vector<24x64xf32> to vector<24x32xf32>
    %16 = vector.shape_cast %15 : vector<24x32xf32> to vector<2x12x32xf32>
    %17 = vector.extract_strided_slice %13 {offsets = [0, 32], sizes = [24, 32], strides = [1, 1]} : vector<24x64xf32> to vector<24x32xf32>
    %18 = vector.shape_cast %17 : vector<24x32xf32> to vector<2x12x32xf32>
    %c0_14 = arith.constant 0 : index
    %c0_15 = arith.constant 0 : index
    %c0_16 = arith.constant 0 : index
    %19 = vector.load %arg2[%c0_14, %c0_15, %c0_16] : memref<2x8x12xf32, #tpu.memory_space<vmem>>, vector<2x8x12xf32>
    %20 = vector.extract_strided_slice %14 {offsets = [0, 0, 0], sizes = [2, 8, 8], strides = [1, 1, 1]} : vector<2x8x32xf32> to vector<2x8x8xf32>
    %21 = arith.truncf %20 : vector<2x8x8xf32> to vector<2x8x8xbf16>
    %22 = vector.extract_strided_slice %16 {offsets = [0, 0, 0], sizes = [2, 12, 8], strides = [1, 1, 1]} : vector<2x12x32xf32> to vector<2x12x8xf32>
    %23 = arith.truncf %22 : vector<2x12x8xf32> to vector<2x12x8xbf16>
    %24 = vector.extract_strided_slice %18 {offsets = [0, 0, 0], sizes = [2, 12, 8], strides = [1, 1, 1]} : vector<2x12x32xf32> to vector<2x12x8xf32>
    %25 = arith.truncf %24 : vector<2x12x8xf32> to vector<2x12x8xbf16>
    "tpu.trace_start"() <{level = 10 : i32, message = "bqd,bkd->bqk"}> : () -> ()
    %cst_17 = arith.constant dense<0.000000e+00> : vector<2x8x12xf32>
    %26 = tpu.matmul %21, %23, %cst_17 {dimension_numbers = #tpu.dot_dimension_numbers<[2], [2], [1], [1], [0, 0, 0, 1, 1, 1], [0], [0]>} : vector<2x8x8xbf16>, vector<2x12x8xbf16>, vector<2x8x12xf32> -> vector<2x8x12xf32>
    "tpu.trace_stop"() : () -> ()
    %cst_18 = arith.constant 0.353553385 : f32
    %27 = vector.broadcast %cst_18 : f32 to vector<2x8x12xf32>
    %28 = arith.mulf %26, %27 : vector<2x8x12xf32>
    %cst_19 = arith.constant 5.000000e-01 : f32
    %29 = vector.broadcast %cst_19 : f32 to vector<2x8x12xf32>
    %30 = arith.cmpf ogt, %19, %29 : vector<2x8x12xf32>
    %cst_20 = arith.constant -1.000000e+04 : f32
    %31 = vector.broadcast %cst_20 : f32 to vector<2x8x12xf32>
    %32 = arith.select %30, %28, %31 : vector<2x8x12xi1>, vector<2x8x12xf32>
    %cst_21 = arith.constant dense<0xFF800000> : vector<2x8xf32>
    %33 = vector.multi_reduction <maximumf>, %32, %cst_21 [2] : vector<2x8x12xf32> to vector<2x8xf32>
    %34 = vector.shape_cast %33 : vector<2x8xf32> to vector<2x8x1xf32>
    %35 = vector.broadcast %34 : vector<2x8x1xf32> to vector<2x8x12xf32>
    %36 = arith.subf %32, %35 : vector<2x8x12xf32>
    %37 = math.exp %36 : vector<2x8x12xf32>
    %cst_22 = arith.constant dense<0.000000e+00> : vector<2x8xf32>
    %38 = vector.multi_reduction <add>, %37, %cst_22 [2] : vector<2x8x12xf32> to vector<2x8xf32>
    %39 = vector.shape_cast %38 : vector<2x8xf32> to vector<2x8x1xf32>
    %40 = tpu.reciprocal %39 {approx = true} : vector<2x8x1xf32> -> vector<2x8x1xf32>
    %41 = vector.broadcast %40 : vector<2x8x1xf32> to vector<2x8x12xf32>
    %42 = arith.mulf %37, %41 : vector<2x8x12xf32>
    %43 = arith.truncf %42 : vector<2x8x12xf32> to vector<2x8x12xbf16>
    "tpu.trace_start"() <{level = 10 : i32, message = "bqk,bkd->bqd"}> : () -> ()
    %cst_23 = arith.constant dense<0.000000e+00> : vector<2x8x8xf32>
    %44 = tpu.matmul %43, %25, %cst_23 {dimension_numbers = #tpu.dot_dimension_numbers<[2], [1], [1], [2], [0, 0, 0, 1, 1, 2], [0], [0]>} : vector<2x8x12xbf16>, vector<2x12x8xbf16>, vector<2x8x8xf32> -> vector<2x8x8xf32>
    "tpu.trace_stop"() : () -> ()
    %45 = vector.extract_strided_slice %14 {offsets = [0, 0, 8], sizes = [2, 8, 8], strides = [1, 1, 1]} : vector<2x8x32xf32> to vector<2x8x8xf32>
    %46 = arith.truncf %45 : vector<2x8x8xf32> to vector<2x8x8xbf16>
    %47 = vector.extract_strided_slice %16 {offsets = [0, 0, 8], sizes = [2, 12, 8], strides = [1, 1, 1]} : vector<2x12x32xf32> to vector<2x12x8xf32>
    %48 = arith.truncf %47 : vector<2x12x8xf32> to vector<2x12x8xbf16>
    %49 = vector.extract_strided_slice %18 {offsets = [0, 0, 8], sizes = [2, 12, 8], strides = [1, 1, 1]} : vector<2x12x32xf32> to vector<2x12x8xf32>
    %50 = arith.truncf %49 : vector<2x12x8xf32> to vector<2x12x8xbf16>
    "tpu.trace_start"() <{level = 10 : i32, message = "bqd,bkd->bqk"}> : () -> ()
    %cst_24 = arith.constant dense<0.000000e+00> : vector<2x8x12xf32>
    %51 = tpu.matmul %46, %48, %cst_24 {dimension_numbers = #tpu.dot_dimension_numbers<[2], [2], [1], [1], [0, 0, 0, 1, 1, 1], [0], [0]>} : vector<2x8x8xbf16>, vector<2x12x8xbf16>, vector<2x8x12xf32> -> vector<2x8x12xf32>
    "tpu.trace_stop"() : () -> ()
    %cst_25 = arith.constant 0.353553385 : f32
    %52 = vector.broadcast %cst_25 : f32 to vector<2x8x12xf32>
    %53 = arith.mulf %51, %52 : vector<2x8x12xf32>
    %cst_26 = arith.constant 5.000000e-01 : f32
    %54 = vector.broadcast %cst_26 : f32 to vector<2x8x12xf32>
    %55 = arith.cmpf ogt, %19, %54 : vector<2x8x12xf32>
    %cst_27 = arith.constant -1.000000e+04 : f32
    %56 = vector.broadcast %cst_27 : f32 to vector<2x8x12xf32>
    %57 = arith.select %55, %53, %56 : vector<2x8x12xi1>, vector<2x8x12xf32>
    %cst_28 = arith.constant dense<0xFF800000> : vector<2x8xf32>
    %58 = vector.multi_reduction <maximumf>, %57, %cst_28 [2] : vector<2x8x12xf32> to vector<2x8xf32>
    %59 = vector.shape_cast %58 : vector<2x8xf32> to vector<2x8x1xf32>
    %60 = vector.broadcast %59 : vector<2x8x1xf32> to vector<2x8x12xf32>
    %61 = arith.subf %57, %60 : vector<2x8x12xf32>
    %62 = math.exp %61 : vector<2x8x12xf32>
    %cst_29 = arith.constant dense<0.000000e+00> : vector<2x8xf32>
    %63 = vector.multi_reduction <add>, %62, %cst_29 [2] : vector<2x8x12xf32> to vector<2x8xf32>
    %64 = vector.shape_cast %63 : vector<2x8xf32> to vector<2x8x1xf32>
    %65 = tpu.reciprocal %64 {approx = true} : vector<2x8x1xf32> -> vector<2x8x1xf32>
    %66 = vector.broadcast %65 : vector<2x8x1xf32> to vector<2x8x12xf32>
    %67 = arith.mulf %62, %66 : vector<2x8x12xf32>
    %68 = arith.truncf %67 : vector<2x8x12xf32> to vector<2x8x12xbf16>
    "tpu.trace_start"() <{level = 10 : i32, message = "bqk,bkd->bqd"}> : () -> ()
    %cst_30 = arith.constant dense<0.000000e+00> : vector<2x8x8xf32>
    %69 = tpu.matmul %68, %50, %cst_30 {dimension_numbers = #tpu.dot_dimension_numbers<[2], [1], [1], [2], [0, 0, 0, 1, 1, 2], [0], [0]>} : vector<2x8x12xbf16>, vector<2x12x8xbf16>, vector<2x8x8xf32> -> vector<2x8x8xf32>
    "tpu.trace_stop"() : () -> ()
    %70 = vector.extract_strided_slice %14 {offsets = [0, 0, 16], sizes = [2, 8, 8], strides = [1, 1, 1]} : vector<2x8x32xf32> to vector<2x8x8xf32>
    %71 = arith.truncf %70 : vector<2x8x8xf32> to vector<2x8x8xbf16>
    %72 = vector.extract_strided_slice %16 {offsets = [0, 0, 16], sizes = [2, 12, 8], strides = [1, 1, 1]} : vector<2x12x32xf32> to vector<2x12x8xf32>
    %73 = arith.truncf %72 : vector<2x12x8xf32> to vector<2x12x8xbf16>
    %74 = vector.extract_strided_slice %18 {offsets = [0, 0, 16], sizes = [2, 12, 8], strides = [1, 1, 1]} : vector<2x12x32xf32> to vector<2x12x8xf32>
    %75 = arith.truncf %74 : vector<2x12x8xf32> to vector<2x12x8xbf16>
    "tpu.trace_start"() <{level = 10 : i32, message = "bqd,bkd->bqk"}> : () -> ()
    %cst_31 = arith.constant dense<0.000000e+00> : vector<2x8x12xf32>
    %76 = tpu.matmul %71, %73, %cst_31 {dimension_numbers = #tpu.dot_dimension_numbers<[2], [2], [1], [1], [0, 0, 0, 1, 1, 1], [0], [0]>} : vector<2x8x8xbf16>, vector<2x12x8xbf16>, vector<2x8x12xf32> -> vector<2x8x12xf32>
    "tpu.trace_stop"() : () -> ()
    %cst_32 = arith.constant 0.353553385 : f32
    %77 = vector.broadcast %cst_32 : f32 to vector<2x8x12xf32>
    %78 = arith.mulf %76, %77 : vector<2x8x12xf32>
    %cst_33 = arith.constant 5.000000e-01 : f32
    %79 = vector.broadcast %cst_33 : f32 to vector<2x8x12xf32>
    %80 = arith.cmpf ogt, %19, %79 : vector<2x8x12xf32>
    %cst_34 = arith.constant -1.000000e+04 : f32
    %81 = vector.broadcast %cst_34 : f32 to vector<2x8x12xf32>
    %82 = arith.select %80, %78, %81 : vector<2x8x12xi1>, vector<2x8x12xf32>
    %cst_35 = arith.constant dense<0xFF800000> : vector<2x8xf32>
    %83 = vector.multi_reduction <maximumf>, %82, %cst_35 [2] : vector<2x8x12xf32> to vector<2x8xf32>
    %84 = vector.shape_cast %83 : vector<2x8xf32> to vector<2x8x1xf32>
    %85 = vector.broadcast %84 : vector<2x8x1xf32> to vector<2x8x12xf32>
    %86 = arith.subf %82, %85 : vector<2x8x12xf32>
    %87 = math.exp %86 : vector<2x8x12xf32>
    %cst_36 = arith.constant dense<0.000000e+00> : vector<2x8xf32>
    %88 = vector.multi_reduction <add>, %87, %cst_36 [2] : vector<2x8x12xf32> to vector<2x8xf32>
    %89 = vector.shape_cast %88 : vector<2x8xf32> to vector<2x8x1xf32>
    %90 = tpu.reciprocal %89 {approx = true} : vector<2x8x1xf32> -> vector<2x8x1xf32>
    %91 = vector.broadcast %90 : vector<2x8x1xf32> to vector<2x8x12xf32>
    %92 = arith.mulf %87, %91 : vector<2x8x12xf32>
    %93 = arith.truncf %92 : vector<2x8x12xf32> to vector<2x8x12xbf16>
    "tpu.trace_start"() <{level = 10 : i32, message = "bqk,bkd->bqd"}> : () -> ()
    %cst_37 = arith.constant dense<0.000000e+00> : vector<2x8x8xf32>
    %94 = tpu.matmul %93, %75, %cst_37 {dimension_numbers = #tpu.dot_dimension_numbers<[2], [1], [1], [2], [0, 0, 0, 1, 1, 2], [0], [0]>} : vector<2x8x12xbf16>, vector<2x12x8xbf16>, vector<2x8x8xf32> -> vector<2x8x8xf32>
    "tpu.trace_stop"() : () -> ()
    %95 = vector.extract_strided_slice %14 {offsets = [0, 0, 24], sizes = [2, 8, 8], strides = [1, 1, 1]} : vector<2x8x32xf32> to vector<2x8x8xf32>
    %96 = arith.truncf %95 : vector<2x8x8xf32> to vector<2x8x8xbf16>
    %97 = vector.extract_strided_slice %16 {offsets = [0, 0, 24], sizes = [2, 12, 8], strides = [1, 1, 1]} : vector<2x12x32xf32> to vector<2x12x8xf32>
    %98 = arith.truncf %97 : vector<2x12x8xf32> to vector<2x12x8xbf16>
    %99 = vector.extract_strided_slice %18 {offsets = [0, 0, 24], sizes = [2, 12, 8], strides = [1, 1, 1]} : vector<2x12x32xf32> to vector<2x12x8xf32>
    %100 = arith.truncf %99 : vector<2x12x8xf32> to vector<2x12x8xbf16>
    "tpu.trace_start"() <{level = 10 : i32, message = "bqd,bkd->bqk"}> : () -> ()
    %cst_38 = arith.constant dense<0.000000e+00> : vector<2x8x12xf32>
    %101 = tpu.matmul %96, %98, %cst_38 {dimension_numbers = #tpu.dot_dimension_numbers<[2], [2], [1], [1], [0, 0, 0, 1, 1, 1], [0], [0]>} : vector<2x8x8xbf16>, vector<2x12x8xbf16>, vector<2x8x12xf32> -> vector<2x8x12xf32>
    "tpu.trace_stop"() : () -> ()
    %cst_39 = arith.constant 0.353553385 : f32
    %102 = vector.broadcast %cst_39 : f32 to vector<2x8x12xf32>
    %103 = arith.mulf %101, %102 : vector<2x8x12xf32>
    %cst_40 = arith.constant 5.000000e-01 : f32
    %104 = vector.broadcast %cst_40 : f32 to vector<2x8x12xf32>
    %105 = arith.cmpf ogt, %19, %104 : vector<2x8x12xf32>
    %cst_41 = arith.constant -1.000000e+04 : f32
    %106 = vector.broadcast %cst_41 : f32 to vector<2x8x12xf32>
    %107 = arith.select %105, %103, %106 : vector<2x8x12xi1>, vector<2x8x12xf32>
    %cst_42 = arith.constant dense<0xFF800000> : vector<2x8xf32>
    %108 = vector.multi_reduction <maximumf>, %107, %cst_42 [2] : vector<2x8x12xf32> to vector<2x8xf32>
    %109 = vector.shape_cast %108 : vector<2x8xf32> to vector<2x8x1xf32>
    %110 = vector.broadcast %109 : vector<2x8x1xf32> to vector<2x8x12xf32>
    %111 = arith.subf %107, %110 : vector<2x8x12xf32>
    %112 = math.exp %111 : vector<2x8x12xf32>
    %cst_43 = arith.constant dense<0.000000e+00> : vector<2x8xf32>
    %113 = vector.multi_reduction <add>, %112, %cst_43 [2] : vector<2x8x12xf32> to vector<2x8xf32>
    %114 = vector.shape_cast %113 : vector<2x8xf32> to vector<2x8x1xf32>
    %115 = tpu.reciprocal %114 {approx = true} : vector<2x8x1xf32> -> vector<2x8x1xf32>
    %116 = vector.broadcast %115 : vector<2x8x1xf32> to vector<2x8x12xf32>
    %117 = arith.mulf %112, %116 : vector<2x8x12xf32>
    %118 = arith.truncf %117 : vector<2x8x12xf32> to vector<2x8x12xbf16>
    "tpu.trace_start"() <{level = 10 : i32, message = "bqk,bkd->bqd"}> : () -> ()
    %cst_44 = arith.constant dense<0.000000e+00> : vector<2x8x8xf32>
    %119 = tpu.matmul %118, %100, %cst_44 {dimension_numbers = #tpu.dot_dimension_numbers<[2], [1], [1], [2], [0, 0, 0, 1, 1, 2], [0], [0]>} : vector<2x8x12xbf16>, vector<2x12x8xbf16>, vector<2x8x8xf32> -> vector<2x8x8xf32>
    "tpu.trace_stop"() : () -> ()
    %120 = tpu.concatenate %44, %69, %94, %119 in 2 : vector<2x8x8xf32>, vector<2x8x8xf32>, vector<2x8x8xf32>, vector<2x8x8xf32> -> vector<2x8x32xf32>
    %121 = vector.shape_cast %120 : vector<2x8x32xf32> to vector<16x32xf32>
    %122 = arith.truncf %121 : vector<16x32xf32> to vector<16x32xbf16>
    %c0_45 = arith.constant 0 : index
    %c0_46 = arith.constant 0 : index
    %123 = vector.load %arg7[%c0_45, %c0_46] : memref<32x32xbf16, #tpu.memory_space<vmem>>, vector<32x32xbf16>
    %cst_47 = arith.constant dense<0.000000e+00> : vector<16x32xf32>
    %124 = tpu.matmul %122, %123, %cst_47 {dimension_numbers = #tpu.dot_dimension_numbers<[1], [0], [0], [1], [0, 0, 1, 1], [], []>} : vector<16x32xbf16>, vector<32x32xbf16>, vector<16x32xf32> -> vector<16x32xf32>
    %c0_48 = arith.constant 0 : index
    %c0_49 = arith.constant 0 : index
    %125 = vector.load %arg8[%c0_48, %c0_49] : memref<1x32xf32, #tpu.memory_space<vmem>>, vector<1x32xf32>
    %126 = vector.broadcast %125 : vector<1x32xf32> to vector<16x32xf32>
    %127 = arith.addf %124, %126 : vector<16x32xf32>
    %128 = arith.extf %2 : vector<16x32xbf16> to vector<16x32xf32>
    %129 = arith.addf %127, %128 : vector<16x32xf32>
    %cst_50 = arith.constant dense<0.000000e+00> : vector<16xf32>
    %130 = vector.multi_reduction <add>, %129, %cst_50 [1] : vector<16x32xf32> to vector<16xf32>
    %131 = vector.shape_cast %130 : vector<16xf32> to vector<16x1xf32>
    %cst_51 = arith.constant 3.200000e+01 : f32
    %132 = vector.broadcast %cst_51 : f32 to vector<16x1xf32>
    %133 = arith.divf %131, %132 : vector<16x1xf32>
    %134 = vector.broadcast %133 : vector<16x1xf32> to vector<16x32xf32>
    %135 = arith.subf %129, %134 : vector<16x32xf32>
    %136 = arith.mulf %135, %135 : vector<16x32xf32>
    %cst_52 = arith.constant dense<0.000000e+00> : vector<16xf32>
    %137 = vector.multi_reduction <add>, %136, %cst_52 [1] : vector<16x32xf32> to vector<16xf32>
    %138 = vector.shape_cast %137 : vector<16xf32> to vector<16x1xf32>
    %cst_53 = arith.constant 3.200000e+01 : f32
    %139 = vector.broadcast %cst_53 : f32 to vector<16x1xf32>
    %140 = arith.divf %138, %139 : vector<16x1xf32>
    %141 = vector.broadcast %133 : vector<16x1xf32> to vector<16x32xf32>
    %142 = arith.subf %129, %141 : vector<16x32xf32>
    %cst_54 = arith.constant 9.99999996E-13 : f32
    %143 = vector.broadcast %cst_54 : f32 to vector<16x1xf32>
    %144 = arith.addf %140, %143 : vector<16x1xf32>
    %145 = math.rsqrt %144 : vector<16x1xf32>
    %146 = vector.broadcast %145 : vector<16x1xf32> to vector<16x32xf32>
    %147 = arith.mulf %142, %146 : vector<16x32xf32>
    %c0_55 = arith.constant 0 : index
    %c0_56 = arith.constant 0 : index
    %148 = vector.load %arg9[%c0_55, %c0_56] : memref<1x32xf32, #tpu.memory_space<vmem>>, vector<1x32xf32>
    %149 = vector.broadcast %148 : vector<1x32xf32> to vector<16x32xf32>
    %150 = arith.mulf %147, %149 : vector<16x32xf32>
    %c0_57 = arith.constant 0 : index
    %c0_58 = arith.constant 0 : index
    %151 = vector.load %arg10[%c0_57, %c0_58] : memref<1x32xf32, #tpu.memory_space<vmem>>, vector<1x32xf32>
    %152 = vector.broadcast %151 : vector<1x32xf32> to vector<16x32xf32>
    %153 = arith.addf %150, %152 : vector<16x32xf32>
    %154 = arith.truncf %153 : vector<16x32xf32> to vector<16x32xbf16>
    %c0_59 = arith.constant 0 : index
    %c0_60 = arith.constant 0 : index
    %155 = vector.load %arg11[%c0_59, %c0_60] : memref<16x32xbf16, #tpu.memory_space<vmem>>, vector<16x32xbf16>
    tpu.vector_store %arg11[%c0_59, %c0_60], %154 {strides = array<i32>} : memref<16x32xbf16, #tpu.memory_space<vmem>>, vector<16x32xbf16>,
    return
  }
}

module attributes {stable_mosaic.version = 11 : i64} {
  func.func @_vocab_proj_kernel(%arg0: memref<16x32xbf16, #tpu.memory_space<vmem>>, %arg1: memref<32x128xbf16, #tpu.memory_space<vmem>>, %arg2: memref<1x128xf32, #tpu.memory_space<vmem>>, %arg3: memref<16x128xf32, #tpu.memory_space<vmem>>) attributes {dimension_semantics = [], scalar_prefetch = 0 : i64, scratch_operands = 0 : i64, tpu.core_type = #tpu.core_type<tc>} {
    %c0 = arith.constant 0 : index
    %c0_0 = arith.constant 0 : index
    %0 = vector.load %arg0[%c0, %c0_0] : memref<16x32xbf16, #tpu.memory_space<vmem>>, vector<16x32xbf16>
    %c0_1 = arith.constant 0 : index
    %c0_2 = arith.constant 0 : index
    %1 = vector.load %arg1[%c0_1, %c0_2] : memref<32x128xbf16, #tpu.memory_space<vmem>>, vector<32x128xbf16>
    %cst = arith.constant dense<0.000000e+00> : vector<16x128xf32>
    %2 = tpu.matmul %0, %1, %cst {dimension_numbers = #tpu.dot_dimension_numbers<[1], [0], [0], [1], [0, 0, 1, 1], [], []>} : vector<16x32xbf16>, vector<32x128xbf16>, vector<16x128xf32> -> vector<16x128xf32>
    %c0_3 = arith.constant 0 : index
    %c0_4 = arith.constant 0 : index
    %3 = vector.load %arg2[%c0_3, %c0_4] : memref<1x128xf32, #tpu.memory_space<vmem>>, vector<1x128xf32>
    %4 = vector.broadcast %3 : vector<1x128xf32> to vector<16x128xf32>
    %5 = arith.addf %2, %4 : vector<16x128xf32>
    %c0_5 = arith.constant 0 : index
    %c0_6 = arith.constant 0 : index
    %6 = vector.load %arg3[%c0_5, %c0_6] : memref<16x128xf32, #tpu.memory_space<vmem>>, vector<16x128xf32>
    tpu.vector_store %arg3[%c0_5, %c0_6], %5 {strides = array<i32>} : memref<16x128xf32, #tpu.memory_space<vmem>>, vector<16x128xf32>,
    return
  }
}

</mosaic_0001>

<llo_original>
// kernel: decoder_forward.9
$region0: #{decoder_forward.9}
  #allocation0 [shape = 'u32[]', space=smem, size = 0x4, offset = 0x4, fixed_abs, tag = 'smem constant byte address 0x4 - core index']
  #allocation1 [shape = 'u32[72,128]{1,0:T(1,128)}', space=vmem, size = 0x9000, scoped, tag = 'internal scratch']
  %s0 = inlined_call_operand.vmem [shape: bf16[16,32], index: 0, kind: input, shape index: {}]
  %s1 = inlined_call_operand.vmem [shape: bf16[32,64], index: 1, kind: input, shape index: {}]
  %s2 = inlined_call_operand.vmem [shape: f32[1,64], index: 2, kind: input, shape index: {}]
  %s3 = inlined_call_operand.vmem [shape: bf16[64,32], index: 3, kind: input, shape index: {}]
  %s4 = inlined_call_operand.vmem [shape: f32[1,32], index: 4, kind: input, shape index: {}]
  %s5 = inlined_call_operand.vmem [shape: f32[1,32], index: 5, kind: input, shape index: {}]
  %s6 = inlined_call_operand.vmem [shape: f32[1,32], index: 6, kind: input, shape index: {}]
  %s7 = inlined_call_operand.vmem [shape: bf16[16,32], index: 7, kind: output, shape index: {}]
  %s8 = sld [smem:[#allocation0]]
  $region38: #{decoder_forward.9} parent=0
    _
  %s10 = ssub.s32 1, %s8
  %s11 = scalar_select 0, %s10, %s8
  // Predicated region
  $region2: #{decoder_forward.9} parent=0 // pred_check
    _
  $region3: #{decoder_forward.9} parent=0 // pred_check_branch
    %13 = sbr.rel (0) target = $region5
  $region4: #{decoder_forward.9} parent=0 // pred_region
    _
  $region5: #{decoder_forward.9} parent=0 // pred_fallthru
    _
  // Predicated region
  $region6: #{decoder_forward.9} parent=0 // pred_check
    _
  $region7: #{decoder_forward.9} parent=0 // pred_check_branch
    %15 = sbr.rel (0) target = $region9
  $region8: #{decoder_forward.9} parent=0 // pred_region
    _
  $region9: #{decoder_forward.9} parent=0 // pred_fallthru
    _
  // Predicated region
  $region10: #{decoder_forward.9} parent=0 // pred_check
    _
  $region11: #{decoder_forward.9} parent=0 // pred_check_branch
    %17 = sbr.rel (0) target = $region13
  $region12: #{decoder_forward.9} parent=0 // pred_region
    _
  $region13: #{decoder_forward.9} parent=0 // pred_fallthru
    _
  // Predicated region
  $region14: #{decoder_forward.9} parent=0 // pred_check
    _
  $region15: #{decoder_forward.9} parent=0 // pred_check_branch
    %19 = sbr.rel (0) target = $region17
  $region16: #{decoder_forward.9} parent=0 // pred_region
    _
  $region17: #{decoder_forward.9} parent=0 // pred_fallthru
    _
  // Predicated region
  $region18: #{decoder_forward.9} parent=0 // pred_check
    _
  $region19: #{decoder_forward.9} parent=0 // pred_check_branch
    %21 = sbr.rel (0) target = $region21
  $region20: #{decoder_forward.9} parent=0 // pred_region
    _
  $region21: #{decoder_forward.9} parent=0 // pred_fallthru
    _
  // Predicated region
  $region22: #{decoder_forward.9} parent=0 // pred_check
    _
  $region23: #{decoder_forward.9} parent=0 // pred_check_branch
    %23 = sbr.rel (0) target = $region25
  $region24: #{decoder_forward.9} parent=0 // pred_region
    _
  $region25: #{decoder_forward.9} parent=0 // pred_fallthru
    _
  // Predicated region
  $region26: #{decoder_forward.9} parent=0 // pred_check
    _
  $region27: #{decoder_forward.9} parent=0 // pred_check_branch
    %25 = sbr.rel (0) target = $region29
  $region28: #{decoder_forward.9} parent=0 // pred_region
    _
  $region29: #{decoder_forward.9} parent=0 // pred_fallthru
    _
  %v27 = vld [vmem:[%s0] sm:$0xf]
  %v28 = vld [vmem:[%s0 + $0x4] sm:$0xf]
  %v29 = vld [vmem:[%s1] sm:$0xf]
  %v30 = vld [vmem:[%s1 + $0x4] sm:$0xf]
  %v31 = vld [vmem:[%s1 + $0x8] sm:$0xf]
  %v32 = vld [vmem:[%s1 + $0xc] sm:$0xf]
  %v33 = vld [vmem:[%s2] sm:$0x1]
  %v35 = vperm.slane %v33, 0
  %v39 = vunpack.c.l.b16 %v27
  %v40 = vunpack.c.l.b16 %v28
  %v41 = vpack.c.b16 %v40, %v39
  %v46 = vunpack.c.l.b16 %v29
  %v47 = vunpack.c.l.b16 %v30
  %v48 = vunpack.c.l.b16 %v31
  %v49 = vunpack.c.l.b16 %v32
  %v50 = vpack.c.b16 %v47, %v46
  %v51 = vpack.c.b16 %v49, %v48
  %vm54 = vcmask 261120
  %v56 = vsel %vm54, %v41, 0
  %58 = vmatpush.bf16.msra.mxu0 0
  %59 = vmatpush.bf16.msra.mxu0 0
  %60 = vmatpush.bf16.msra.mxu0 0
  %61 = vmatpush.bf16.msra.mxu0 0
  %62 = vmatpush.bf16.msra.mxu0 0
  %63 = vmatpush.bf16.msra.mxu0 0
  %64 = vmatpush.bf16.msra.mxu0 %v51
  %65 = vmatpush.bf16.msra.mxu0 %v50
  %66 = vmatmul.bf16.gmra.mxu0 %v56
  %v67 = vpop.f32.mrf.mxu0
  %v68 = vadd.f32 %v35, %v67
  %v69 = vpop.f32.mrf.mxu0
  %v70 = vadd.f32 %v35, %v69
  %71 = vdwg.mxu0
  %v72 = vmax.f32 %v68, 0.0
  %v73 = vmax.f32 %v70, 0.0
  %v74 = vpack.c.bf16 %v73, %v72
  %v75 = vld [vmem:[%s3] sm:$0xf]
  %v76 = vld [vmem:[%s3 + $0x4] sm:$0xf]
  %v77 = vld [vmem:[%s3 + $0x8] sm:$0xf]
  %v78 = vld [vmem:[%s3 + $0xc] sm:$0xf]
  %v79 = vld [vmem:[%s3 + $0x10] sm:$0xf]
  %v80 = vld [vmem:[%s3 + $0x14] sm:$0xf]
  %v81 = vld [vmem:[%s3 + $0x18] sm:$0xf]
  %v82 = vld [vmem:[%s3 + $0x1c] sm:$0xf]
  %v83 = vld [vmem:[%s4] sm:$0x1]
  %v85 = vperm.slane %v83, 0
  %v95 = vunpack.c.l.b16 %v75
  %v96 = vunpack.c.l.b16 %v76
  %v97 = vunpack.c.l.b16 %v77
  %v98 = vunpack.c.l.b16 %v78
  %v99 = vunpack.c.l.b16 %v79
  %v100 = vunpack.c.l.b16 %v80
  %v101 = vunpack.c.l.b16 %v81
  %v102 = vunpack.c.l.b16 %v82
  %v103 = vpack.c.b16 %v96, %v95
  %v104 = vpack.c.b16 %v98, %v97
  %v105 = vpack.c.b16 %v100, %v99
  %v106 = vpack.c.b16 %v102, %v101
  %vm111 = vcmask 523264
  %v113 = vsel %vm111, %v74, 0
  %115 = vmatpush.bf16.msra.mxu0 0
  %116 = vmatpush.bf16.msra.mxu0 0
  %117 = vmatpush.bf16.msra.mxu0 0
  %118 = vmatpush.bf16.msra.mxu0 0
  %119 = vmatpush.bf16.msra.mxu0 %v106
  %120 = vmatpush.bf16.msra.mxu0 %v105
  %121 = vmatpush.bf16.msra.mxu0 %v104
  %122 = vmatpush.bf16.msra.mxu0 %v103
  %123 = vmatmul.bf16.gmra.mxu0 %v113
  %v124 = vpop.f32.mrf.mxu0
  %v125 = vadd.f32 %v85, %v124
  %v126 = vpop.f32.mrf.mxu0
  %v127 = vadd.f32 %v85, %v126
  %128 = vdwg.mxu0
  %v129 = vunpack.c.l.bf16 %v27
  %v130 = vunpack.c.l.bf16 %v28
  %v131 = vadd.f32 %v125, %v129
  %v132 = vadd.f32 %v127, %v130
  %v133 = vsel %vm54, %v131, 0.0
  %134 = vadd.xlane.f32.xlu0 %v133
  %v135 = vpop.xlane.xlu0 %134
  %v136 = vsel %vm54, %v132, 0.0
  %137 = vadd.xlane.f32.xlu0 %v136
  %v138 = vpop.xlane.xlu0 %137
  %v139 = vrcp.pop 32.0
  %v140 = vmul.f32 32.0, %v139
  %v141 = vsub.f32 1.0, %v140
  %v142 = vmul.f32 %v139, %v141
  %v143 = vadd.f32 %v139, %v142
  %vm144 = vweird.f32 %v139
  %v145 = vsel %vm144, %v139, %v143
  %v146 = vmul.f32 %v135, %v145
  %v147 = vmul.f32 %v138, %v145
  %v148 = vsub.f32 %v131, %v146
  %v149 = vsub.f32 %v132, %v147
  %v150 = vmul.f32 %v148, %v148
  %v151 = vmul.f32 %v149, %v149
  %v152 = vsel %vm54, %v150, 0.0
  %153 = vadd.xlane.f32.xlu0 %v152
  %v154 = vpop.xlane.xlu0 %153
  %v155 = vsel %vm54, %v151, 0.0
  %156 = vadd.xlane.f32.xlu0 %v155
  %v157 = vpop.xlane.xlu0 %156
  %v158 = vmul.f32 %v154, %v145
  %v159 = vmul.f32 %v157, %v145
  %v160 = vadd.f32 %v158, 1e-12
  %v161 = vadd.f32 %v159, 1e-12
  %v162 = vrsqrt.pop %v160
  %v163 = vmul.f32 %v162, %v160
  %v164 = vmul.f32 %v163, %v162
  %v165 = vmul.f32 0.5, %v164
  %v166 = vsub.f32 1.5, %v165
  %v167 = vmul.f32 %v162, %v166
  %vm168 = vweird.f32 %v160
  %vm169 = vweird.f32 %v162
  %vm170 = vmor %vm168, %vm169
  %v171 = vsel %vm170, %v162, %v167
  %v172 = vrsqrt.pop %v161
  %v173 = vmul.f32 %v172, %v161
  %v174 = vmul.f32 %v173, %v172
  %v175 = vmul.f32 0.5, %v174
  %v176 = vsub.f32 1.5, %v175
  %v177 = vmul.f32 %v172, %v176
  %vm178 = vweird.f32 %v161
  %vm179 = vweird.f32 %v172
  %vm180 = vmor %vm178, %vm179
  %v181 = vsel %vm180, %v172, %v177
  %v182 = vmul.f32 %v148, %v171
  %v183 = vmul.f32 %v149, %v181
  %v184 = vld [vmem:[%s5] sm:$0x1]
  %v186 = vperm.slane %v184, 0
  %v188 = vmul.f32 %v182, %v186
  %v189 = vmul.f32 %v183, %v186
  %v190 = vld [vmem:[%s6] sm:$0x1]
  %v192 = vperm.slane %v190, 0
  %v194 = vadd.f32 %v188, %v192
  %v195 = vadd.f32 %v189, %v192
  %v196 = vpack.c.bf16 %v194, %v194
  %v197 = vpack.c.bf16 %v195, %v195
  %vm198 = vcmask 257024
  %199 = vst.msk [vmem:[%s7] sm:$0xf] %vm198, %v196
  %200 = vst.msk [vmem:[%s7 + $0x4] sm:$0xf] %vm198, %v197
  // Predicated region
  $region30: #{decoder_forward.9} parent=0 // pred_check
    _
  $region31: #{decoder_forward.9} parent=0 // pred_check_branch
    %202 = sbr.rel (0) target = $region33
  $region32: #{decoder_forward.9} parent=0 // pred_region
    _
  $region33: #{decoder_forward.9} parent=0 // pred_fallthru
    _
  // Predicated region
  $region34: #{decoder_forward.9} parent=0 // pred_check
    _
  $region35: #{decoder_forward.9} parent=0 // pred_check_branch
    %204 = sbr.rel (0) target = $region37
  $region36: #{decoder_forward.9} parent=0 // pred_region
    _
  $region37: #{decoder_forward.9} parent=0 // pred_fallthru
    _

// kernel: decoder_forward.7
$region0: #{decoder_forward.7}
  #allocation0 [shape = 'u32[]', space=smem, size = 0x4, offset = 0x4, fixed_abs, tag = 'smem constant byte address 0x4 - core index']
  #allocation1 [shape = 'u32[72,128]{1,0:T(1,128)}', space=vmem, size = 0x9000, scoped, tag = 'internal scratch']
  %s0 = inlined_call_operand.vmem [shape: bf16[2,8,32], index: 0, kind: input, shape index: {}, may-alias: {0,1}]
  %s1 = inlined_call_operand.vmem [shape: bf16[2,8,32], index: 1, kind: input, shape index: {}, may-alias: {0,1}]
  %s2 = inlined_call_operand.vmem [shape: f32[2,8,8], index: 2, kind: input, shape index: {}]
  %s3 = inlined_call_operand.vmem [shape: bf16[32,32], index: 3, kind: input, shape index: {}]
  %s4 = inlined_call_operand.vmem [shape: f32[1,32], index: 4, kind: input, shape index: {}]
  %s5 = inlined_call_operand.vmem [shape: bf16[32,64], index: 5, kind: input, shape index: {}]
  %s6 = inlined_call_operand.vmem [shape: f32[1,64], index: 6, kind: input, shape index: {}]
  %s7 = inlined_call_operand.vmem [shape: bf16[32,32], index: 7, kind: input, shape index: {}]
  %s8 = inlined_call_operand.vmem [shape: f32[1,32], index: 8, kind: input, shape index: {}]
  %s9 = inlined_call_operand.vmem [shape: f32[1,32], index: 9, kind: input, shape index: {}]
  %s10 = inlined_call_operand.vmem [shape: f32[1,32], index: 10, kind: input, shape index: {}]
  %s11 = inlined_call_operand.vmem [shape: bf16[16,32], index: 11, kind: output, shape index: {}]
  %s12 = sld [smem:[#allocation0]]
  $region54: #{decoder_forward.7} parent=0
    _
  %s14 = ssub.s32 1, %s12
  %s15 = scalar_select 0, %s14, %s12
  // Predicated region
  $region2: #{decoder_forward.7} parent=0 // pred_check
    _
  $region3: #{decoder_forward.7} parent=0 // pred_check_branch
    %17 = sbr.rel (0) target = $region5
  $region4: #{decoder_forward.7} parent=0 // pred_region
    _
  $region5: #{decoder_forward.7} parent=0 // pred_fallthru
    _
  // Predicated region
  $region6: #{decoder_forward.7} parent=0 // pred_check
    _
  $region7: #{decoder_forward.7} parent=0 // pred_check_branch
    %19 = sbr.rel (0) target = $region9
  $region8: #{decoder_forward.7} parent=0 // pred_region
    _
  $region9: #{decoder_forward.7} parent=0 // pred_fallthru
    _
  // Predicated region
  $region10: #{decoder_forward.7} parent=0 // pred_check
    _
  $region11: #{decoder_forward.7} parent=0 // pred_check_branch
    %21 = sbr.rel (0) target = $region13
  $region12: #{decoder_forward.7} parent=0 // pred_region
    _
  $region13: #{decoder_forward.7} parent=0 // pred_fallthru
    _
  // Predicated region
  $region14: #{decoder_forward.7} parent=0 // pred_check
    _
  $region15: #{decoder_forward.7} parent=0 // pred_check_branch
    %23 = sbr.rel (0) target = $region17
  $region16: #{decoder_forward.7} parent=0 // pred_region
    _
  $region17: #{decoder_forward.7} parent=0 // pred_fallthru
    _
  // Predicated region
  $region18: #{decoder_forward.7} parent=0 // pred_check
    _
  $region19: #{decoder_forward.7} parent=0 // pred_check_branch
    %25 = sbr.rel (0) target = $region21
  $region20: #{decoder_forward.7} parent=0 // pred_region
    _
  $region21: #{decoder_forward.7} parent=0 // pred_fallthru
    _
  // Predicated region
  $region22: #{decoder_forward.7} parent=0 // pred_check
    _
  $region23: #{decoder_forward.7} parent=0 // pred_check_branch
    %27 = sbr.rel (0) target = $region25
  $region24: #{decoder_forward.7} parent=0 // pred_region
    _
  $region25: #{decoder_forward.7} parent=0 // pred_fallthru
    _
  // Predicated region
  $region26: #{decoder_forward.7} parent=0 // pred_check
    _
  $region27: #{decoder_forward.7} parent=0 // pred_check_branch
    %29 = sbr.rel (0) target = $region29
  $region28: #{decoder_forward.7} parent=0 // pred_region
    _
  $region29: #{decoder_forward.7} parent=0 // pred_fallthru
    _
  // Predicated region
  $region30: #{decoder_forward.7} parent=0 // pred_check
    _
  $region31: #{decoder_forward.7} parent=0 // pred_check_branch
    %31 = sbr.rel (0) target = $region33
  $region32: #{decoder_forward.7} parent=0 // pred_region
    _
  $region33: #{decoder_forward.7} parent=0 // pred_fallthru
    _
  // Predicated region
  $region34: #{decoder_forward.7} parent=0 // pred_check
    _
  $region35: #{decoder_forward.7} parent=0 // pred_check_branch
    %33 = sbr.rel (0) target = $region37
  $region36: #{decoder_forward.7} parent=0 // pred_region
    _
  $region37: #{decoder_forward.7} parent=0 // pred_fallthru
    _
  // Predicated region
  $region38: #{decoder_forward.7} parent=0 // pred_check
    _
  $region39: #{decoder_forward.7} parent=0 // pred_check_branch
    %35 = sbr.rel (0) target = $region41
  $region40: #{decoder_forward.7} parent=0 // pred_region
    _
  $region41: #{decoder_forward.7} parent=0 // pred_fallthru
    _
  // Predicated region
  $region42: #{decoder_forward.7} parent=0 // pred_check
    _
  $region43: #{decoder_forward.7} parent=0 // pred_check_branch
    %37 = sbr.rel (0) target = $region45
  $region44: #{decoder_forward.7} parent=0 // pred_region
    _
  $region45: #{decoder_forward.7} parent=0 // pred_fallthru
    _
  %v39 = vld [vmem:[%s0] sm:$0xf]
  %v40 = vld [vmem:[%s0 + $0x4] sm:$0xf]
  %v41 = vld [vmem:[%s1] sm:$0xf]
  %v42 = vld [vmem:[%s1 + $0x4] sm:$0xf]
  %v43 = vld [vmem:[%s3] sm:$0xf]
  %v44 = vld [vmem:[%s3 + $0x4] sm:$0xf]
  %v45 = vld [vmem:[%s3 + $0x8] sm:$0xf]
  %v46 = vld [vmem:[%s3 + $0xc] sm:$0xf]
  %v47 = vld [vmem:[%s4] sm:$0x1]
  %v49 = vperm.slane %v47, 0
  %v53 = vunpack.c.l.b16 %v39
  %v54 = vunpack.c.l.b16 %v40
  %v55 = vpack.c.b16 %v54, %v53
  %v60 = vunpack.c.l.b16 %v43
  %v61 = vunpack.c.l.b16 %v44
  %v62 = vunpack.c.l.b16 %v45
  %v63 = vunpack.c.l.b16 %v46
  %v64 = vpack.c.b16 %v61, %v60
  %v65 = vpack.c.b16 %v63, %v62
  %vm68 = vcmask 261120
  %v70 = vsel %vm68, %v55, 0
  %72 = vmatpush.bf16.msra.mxu0 0
  %73 = vmatpush.bf16.msra.mxu0 0
  %74 = vmatpush.bf16.msra.mxu0 0
  %75 = vmatpush.bf16.msra.mxu0 0
  %76 = vmatpush.bf16.msra.mxu0 0
  %77 = vmatpush.bf16.msra.mxu0 0
  %78 = vmatpush.bf16.msra.mxu0 %v65
  %79 = vmatpush.bf16.msra.mxu0 %v64
  %80 = vmatmul.bf16.gmra.mxu0 %v70
  %v81 = vpop.f32.mrf.mxu0
  %v82 = vadd.f32 %v49, %v81
  %v83 = vpop.f32.mrf.mxu0
  %v84 = vadd.f32 %v49, %v83
  %85 = vdwg.mxu0
  %v86 = vld [vmem:[%s5] sm:$0xf]
  %v87 = vld [vmem:[%s5 + $0x4] sm:$0xf]
  %v88 = vld [vmem:[%s5 + $0x8] sm:$0xf]
  %v89 = vld [vmem:[%s5 + $0xc] sm:$0xf]
  %v90 = vld [vmem:[%s6] sm:$0x1]
  %v92 = vperm.slane %v90, 0
  %v96 = vunpack.c.l.b16 %v41
  %v97 = vunpack.c.l.b16 %v42
  %v98 = vpack.c.b16 %v97, %v96
  %v103 = vunpack.c.l.b16 %v86
  %v104 = vunpack.c.l.b16 %v87
  %v105 = vunpack.c.l.b16 %v88
  %v106 = vunpack.c.l.b16 %v89
  %v107 = vpack.c.b16 %v104, %v103
  %v108 = vpack.c.b16 %v106, %v105
  %v112 = vsel %vm68, %v98, 0
  %114 = vmatpush.bf16.msra.mxu0 0
  %115 = vmatpush.bf16.msra.mxu0 0
  %116 = vmatpush.bf16.msra.mxu0 0
  %117 = vmatpush.bf16.msra.mxu0 0
  %118 = vmatpush.bf16.msra.mxu0 0
  %119 = vmatpush.bf16.msra.mxu0 0
  %120 = vmatpush.bf16.msra.mxu0 %v108
  %121 = vmatpush.bf16.msra.mxu0 %v107
  %122 = vmatmul.bf16.gmra.mxu0 %v112
  %v123 = vpop.f32.mrf.mxu0
  %v124 = vadd.f32 %v92, %v123
  %v125 = vpop.f32.mrf.mxu0
  %v126 = vadd.f32 %v92, %v125
  %127 = vdwg.mxu0
  %v128 = vld [vmem:[%s2] sm:$0xff]
  %v129 = vld [vmem:[%s2 + $0x8] sm:$0xff]
  %v130 = vpack.c.bf16 %v82, %v82
  %v131 = vpack.c.bf16 %v84, %v84
  %v132 = vpack.c.bf16 %v124, %v124
  %v133 = vpack.c.bf16 %v126, %v126
  %vm134 = vcmask 64512
  %v136 = vsel %vm134, %v130, 0
  %v139 = vsel %vm134, %v132, 0
  %141 = vmatpush.bf16.xpose.msra.mxu0 0
  %142 = vmatpush.bf16.xpose.msra.mxu0 0
  %143 = vmatpush.bf16.xpose.msra.mxu0 0
  %144 = vmatpush.bf16.xpose.msra.mxu0 0
  %145 = vmatpush.bf16.xpose.msra.mxu0 0
  %146 = vmatpush.bf16.xpose.msra.mxu0 0
  %147 = vmatpush.bf16.xpose.msra.mxu0 0
  %148 = vmatpush.bf16.xpose.msra.mxu0 %v139
  %149 = vmatmul.bf16.gmra.mxu0 %v136
  %v150 = vpop.f32.mrf.mxu0
  %v151 = vadd.f32 0.0, %v150
  %v152 = vpop.f32.mrf.mxu0
  %153 = vdwg.mxu0
  %v155 = vsel %vm134, %v131, 0
  %v158 = vsel %vm134, %v133, 0
  %160 = vmatpush.bf16.xpose.msra.mxu0 0
  %161 = vmatpush.bf16.xpose.msra.mxu0 0
  %162 = vmatpush.bf16.xpose.msra.mxu0 0
  %163 = vmatpush.bf16.xpose.msra.mxu0 0
  %164 = vmatpush.bf16.xpose.msra.mxu0 0
  %165 = vmatpush.bf16.xpose.msra.mxu0 0
  %166 = vmatpush.bf16.xpose.msra.mxu0 0
  %167 = vmatpush.bf16.xpose.msra.mxu0 %v158
  %168 = vmatmul.bf16.gmra.mxu0 %v155
  %v169 = vpop.f32.mrf.mxu0
  %v170 = vadd.f32 0.0, %v169
  %v171 = vpop.f32.mrf.mxu0
  %172 = vdwg.mxu0
  %v173 = vmul.f32 %v151, 0.35355338
  %v174 = vmul.f32 %v170, 0.35355338
  %vm175 = vcmp.gt.f32.partialorder %v128, 0.5
  %vm176 = vcmp.gt.f32.partialorder %v129, 0.5
  %v177 = vsel %vm175, %v173, -10000.0
  %v178 = vsel %vm176, %v174, -10000.0
  %v179 = vsel %vm134, %v177, -inf
  %180 = vmax.xlane.f32.xlu0 %v179
  %v181 = vpop.xlane.xlu0 %180
  %v182 = vsel %vm134, %v178, -inf
  %183 = vmax.xlane.f32.xlu0 %v182
  %v184 = vpop.xlane.xlu0 %183
  %v185 = vsub.f32 %v177, %v181
  %v186 = vsub.f32 %v178, %v184
  %v187 = vmul.f32 %v185, 1.442695
  %v188 = vpow.pop %v187
  %v189 = vmul.f32 %v186, 1.442695
  %v190 = vpow.pop %v189
  %v191 = vsel %vm134, %v188, 0.0
  %192 = vadd.xlane.f32.xlu0 %v191
  %v193 = vpop.xlane.xlu0 %192
  %v194 = vsel %vm134, %v190, 0.0
  %195 = vadd.xlane.f32.xlu0 %v194
  %v196 = vpop.xlane.xlu0 %195
  %v197 = vrcp.pop %v193
  %v198 = vrcp.pop %v196
  %v199 = vmul.f32 %v188, %v197
  %v200 = vmul.f32 %v190, %v198
  %v201 = vpack.c.bf16 %v199, %v199
  %v202 = vpack.c.bf16 %v200, %v200
  %v204 = vunpack.c.l.b16 %v132
  %v205 = vpack.c.b16 %v204, %v204
  %206 = vrot.lane.b32.xlu0 %v205, 96
  %v207 = vpop.permute.xlu0 %206
  %v209 = vsel %vm134, %v201, 0
  %vm211 = vcmask 1043456
  %v213 = vsel %vm211, %v207, 0
  %215 = vmatpush.bf16.msra.mxu0 0
  %216 = vmatpush.bf16.msra.mxu0 0
  %217 = vmatpush.bf16.msra.mxu0 0
  %218 = vmatpush.bf16.msra.mxu0 0
  %219 = vmatpush.bf16.msra.mxu0 0
  %220 = vmatpush.bf16.msra.mxu0 0
  %221 = vmatpush.bf16.msra.mxu0 0
  %222 = vmatpush.bf16.msra.mxu0 %v213
  %223 = vmatmul.bf16.gmra.mxu0 %v209
  %v224 = vpop.f32.mrf.mxu0
  %v225 = vadd.f32 0.0, %v224
  %v226 = vpop.f32.mrf.mxu0
  %227 = vdwg.mxu0
  %v229 = vunpack.c.l.b16 %v133
  %v230 = vpack.c.b16 %v229, %v229
  %231 = vrot.lane.b32.xlu0 %v230, 96
  %v232 = vpop.permute.xlu0 %231
  %v234 = vsel %vm134, %v202, 0
  %v237 = vsel %vm211, %v232, 0
  %239 = vmatpush.bf16.msra.mxu0 0
  %240 = vmatpush.bf16.msra.mxu0 0
  %241 = vmatpush.bf16.msra.mxu0 0
  %242 = vmatpush.bf16.msra.mxu0 0
  %243 = vmatpush.bf16.msra.mxu0 0
  %244 = vmatpush.bf16.msra.mxu0 0
  %245 = vmatpush.bf16.msra.mxu0 0
  %246 = vmatpush.bf16.msra.mxu0 %v237
  %247 = vmatmul.bf16.gmra.mxu0 %v234
  %v248 = vpop.f32.mrf.mxu0
  %v249 = vadd.f32 0.0, %v248
  %v250 = vpop.f32.mrf.mxu0
  %251 = vdwg.mxu0
  %v253 = vunpack.c.l.b16 %v130
  %v254 = vpack.c.b16 %v253, %v253
  %255 = vrot.lane.b32.xlu0 %v254, 120
  %v256 = vpop.permute.xlu0 %255
  %257 = vrot.lane.b32.xlu0 %v205, 120
  %v258 = vpop.permute.xlu0 %257
  %v260 = vsel %vm134, %v256, 0
  %v263 = vsel %vm134, %v258, 0
  %265 = vmatpush.bf16.xpose.msra.mxu0 0
  %266 = vmatpush.bf16.xpose.msra.mxu0 0
  %267 = vmatpush.bf16.xpose.msra.mxu0 0
  %268 = vmatpush.bf16.xpose.msra.mxu0 0
  %269 = vmatpush.bf16.xpose.msra.mxu0 0
  %270 = vmatpush.bf16.xpose.msra.mxu0 0
  %271 = vmatpush.bf16.xpose.msra.mxu0 0
  %272 = vmatpush.bf16.xpose.msra.mxu0 %v263
  %273 = vmatmul.bf16.gmra.mxu0 %v260
  %v274 = vpop.f32.mrf.mxu0
  %v275 = vadd.f32 0.0, %v274
  %v276 = vpop.f32.mrf.mxu0
  %277 = vdwg.mxu0
  %v279 = vunpack.c.l.b16 %v131
  %v280 = vpack.c.b16 %v279, %v279
  %281 = vrot.lane.b32.xlu0 %v280, 120
  %v282 = vpop.permute.xlu0 %281
  %283 = vrot.lane.b32.xlu0 %v230, 120
  %v284 = vpop.permute.xlu0 %283
  %v286 = vsel %vm134, %v282, 0
  %v289 = vsel %vm134, %v284, 0
  %291 = vmatpush.bf16.xpose.msra.mxu0 0
  %292 = vmatpush.bf16.xpose.msra.mxu0 0
  %293 = vmatpush.bf16.xpose.msra.mxu0 0
  %294 = vmatpush.bf16.xpose.msra.mxu0 0
  %295 = vmatpush.bf16.xpose.msra.mxu0 0
  %296 = vmatpush.bf16.xpose.msra.mxu0 0
  %297 = vmatpush.bf16.xpose.msra.mxu0 0
  %298 = vmatpush.bf16.xpose.msra.mxu0 %v289
  %299 = vmatmul.bf16.gmra.mxu0 %v286
  %v300 = vpop.f32.mrf.mxu0
  %v301 = vadd.f32 0.0, %v300
  %v302 = vpop.f32.mrf.mxu0
  %303 = vdwg.mxu0
  %v304 = vmul.f32 %v275, 0.35355338
  %v305 = vmul.f32 %v301, 0.35355338
  %v306 = vsel %vm175, %v304, -10000.0
  %v307 = vsel %vm176, %v305, -10000.0
  %v308 = vsel %vm134, %v306, -inf
  %309 = vmax.xlane.f32.xlu0 %v308
  %v310 = vpop.xlane.xlu0 %309
  %v311 = vsel %vm134, %v307, -inf
  %312 = vmax.xlane.f32.xlu0 %v311
  %v313 = vpop.xlane.xlu0 %312
  %v314 = vsub.f32 %v306, %v310
  %v315 = vsub.f32 %v307, %v313
  %v316 = vmul.f32 %v314, 1.442695
  %v317 = vpow.pop %v316
  %v318 = vmul.f32 %v315, 1.442695
  %v319 = vpow.pop %v318
  %v320 = vsel %vm134, %v317, 0.0
  %321 = vadd.xlane.f32.xlu0 %v320
  %v322 = vpop.xlane.xlu0 %321
  %v323 = vsel %vm134, %v319, 0.0
  %324 = vadd.xlane.f32.xlu0 %v323
  %v325 = vpop.xlane.xlu0 %324
  %v326 = vrcp.pop %v322
  %v327 = vrcp.pop %v325
  %v328 = vmul.f32 %v317, %v326
  %v329 = vmul.f32 %v319, %v327
  %v330 = vpack.c.bf16 %v328, %v328
  %v331 = vpack.c.bf16 %v329, %v329
  %332 = vrot.lane.b32.xlu0 %v205, 88
  %v333 = vpop.permute.xlu0 %332
  %v335 = vsel %vm134, %v330, 0
  %v338 = vsel %vm211, %v333, 0
  %340 = vmatpush.bf16.msra.mxu0 0
  %341 = vmatpush.bf16.msra.mxu0 0
  %342 = vmatpush.bf16.msra.mxu0 0
  %343 = vmatpush.bf16.msra.mxu0 0
  %344 = vmatpush.bf16.msra.mxu0 0
  %345 = vmatpush.bf16.msra.mxu0 0
  %346 = vmatpush.bf16.msra.mxu0 0
  %347 = vmatpush.bf16.msra.mxu0 %v338
  %348 = vmatmul.bf16.gmra.mxu0 %v335
  %v349 = vpop.f32.mrf.mxu0
  %v350 = vadd.f32 0.0, %v349
  %v351 = vpop.f32.mrf.mxu0
  %352 = vdwg.mxu0
  %353 = vrot.lane.b32.xlu0 %v230, 88
  %v354 = vpop.permute.xlu0 %353
  %v356 = vsel %vm134, %v331, 0
  %v359 = vsel %vm211, %v354, 0
  %361 = vmatpush.bf16.msra.mxu0 0
  %362 = vmatpush.bf16.msra.mxu0 0
  %363 = vmatpush.bf16.msra.mxu0 0
  %364 = vmatpush.bf16.msra.mxu0 0
  %365 = vmatpush.bf16.msra.mxu0 0
  %366 = vmatpush.bf16.msra.mxu0 0
  %367 = vmatpush.bf16.msra.mxu0 0
  %368 = vmatpush.bf16.msra.mxu0 %v359
  %369 = vmatmul.bf16.gmra.mxu0 %v356
  %v370 = vpop.f32.mrf.mxu0
  %v371 = vadd.f32 0.0, %v370
  %v372 = vpop.f32.mrf.mxu0
  %373 = vdwg.mxu0
  %374 = vrot.lane.b32.xlu0 %v254, 112
  %v375 = vpop.permute.xlu0 %374
  %376 = vrot.lane.b32.xlu0 %v205, 112
  %v377 = vpop.permute.xlu0 %376
  %v379 = vsel %vm134, %v375, 0
  %v382 = vsel %vm134, %v377, 0
  %384 = vmatpush.bf16.xpose.msra.mxu0 0
  %385 = vmatpush.bf16.xpose.msra.mxu0 0
  %386 = vmatpush.bf16.xpose.msra.mxu0 0
  %387 = vmatpush.bf16.xpose.msra.mxu0 0
  %388 = vmatpush.bf16.xpose.msra.mxu0 0
  %389 = vmatpush.bf16.xpose.msra.mxu0 0
  %390 = vmatpush.bf16.xpose.msra.mxu0 0
  %391 = vmatpush.bf16.xpose.msra.mxu0 %v382
  %392 = vmatmul.bf16.gmra.mxu0 %v379
  %v393 = vpop.f32.mrf.mxu0
  %v394 = vadd.f32 0.0, %v393
  %v395 = vpop.f32.mrf.mxu0
  %396 = vdwg.mxu0
  %397 = vrot.lane.b32.xlu0 %v280, 112
  %v398 = vpop.permute.xlu0 %397
  %399 = vrot.lane.b32.xlu0 %v230, 112
  %v400 = vpop.permute.xlu0 %399
  %v402 = vsel %vm134, %v398, 0
  %v405 = vsel %vm134, %v400, 0
  %407 = vmatpush.bf16.xpose.msra.mxu0 0
  %408 = vmatpush.bf16.xpose.msra.mxu0 0
  %409 = vmatpush.bf16.xpose.msra.mxu0 0
  %410 = vmatpush.bf16.xpose.msra.mxu0 0
  %411 = vmatpush.bf16.xpose.msra.mxu0 0
  %412 = vmatpush.bf16.xpose.msra.mxu0 0
  %413 = vmatpush.bf16.xpose.msra.mxu0 0
  %414 = vmatpush.bf16.xpose.msra.mxu0 %v405
  %415 = vmatmul.bf16.gmra.mxu0 %v402
  %v416 = vpop.f32.mrf.mxu0
  %v417 = vadd.f32 0.0, %v416
  %v418 = vpop.f32.mrf.mxu0
  %419 = vdwg.mxu0
  %v420 = vmul.f32 %v394, 0.35355338
  %v421 = vmul.f32 %v417, 0.35355338
  %v422 = vsel %vm175, %v420, -10000.0
  %v423 = vsel %vm176, %v421, -10000.0
  %v424 = vsel %vm134, %v422, -inf
  %425 = vmax.xlane.f32.xlu0 %v424
  %v426 = vpop.xlane.xlu0 %425
  %v427 = vsel %vm134, %v423, -inf
  %428 = vmax.xlane.f32.xlu0 %v427
  %v429 = vpop.xlane.xlu0 %428
  %v430 = vsub.f32 %v422, %v426
  %v431 = vsub.f32 %v423, %v429
  %v432 = vmul.f32 %v430, 1.442695
  %v433 = vpow.pop %v432
  %v434 = vmul.f32 %v431, 1.442695
  %v435 = vpow.pop %v434
  %v436 = vsel %vm134, %v433, 0.0
  %437 = vadd.xlane.f32.xlu0 %v436
  %v438 = vpop.xlane.xlu0 %437
  %v439 = vsel %vm134, %v435, 0.0
  %440 = vadd.xlane.f32.xlu0 %v439
  %v441 = vpop.xlane.xlu0 %440
  %v442 = vrcp.pop %v438
  %v443 = vrcp.pop %v441
  %v444 = vmul.f32 %v433, %v442
  %v445 = vmul.f32 %v435, %v443
  %v446 = vpack.c.bf16 %v444, %v444
  %v447 = vpack.c.bf16 %v445, %v445
  %448 = vrot.lane.b32.xlu0 %v205, 80
  %v449 = vpop.permute.xlu0 %448
  %v451 = vsel %vm134, %v446, 0
  %v454 = vsel %vm211, %v449, 0
  %456 = vmatpush.bf16.msra.mxu0 0
  %457 = vmatpush.bf16.msra.mxu0 0
  %458 = vmatpush.bf16.msra.mxu0 0
  %459 = vmatpush.bf16.msra.mxu0 0
  %460 = vmatpush.bf16.msra.mxu0 0
  %461 = vmatpush.bf16.msra.mxu0 0
  %462 = vmatpush.bf16.msra.mxu0 0
  %463 = vmatpush.bf16.msra.mxu0 %v454
  %464 = vmatmul.bf16.gmra.mxu0 %v451
  %v465 = vpop.f32.mrf.mxu0
  %v466 = vadd.f32 0.0, %v465
  %v467 = vpop.f32.mrf.mxu0
  %468 = vdwg.mxu0
  %469 = vrot.lane.b32.xlu0 %v230, 80
  %v470 = vpop.permute.xlu0 %469
  %v472 = vsel %vm134, %v447, 0
  %v475 = vsel %vm211, %v470, 0
  %477 = vmatpush.bf16.msra.mxu0 0
  %478 = vmatpush.bf16.msra.mxu0 0
  %479 = vmatpush.bf16.msra.mxu0 0
  %480 = vmatpush.bf16.msra.mxu0 0
  %481 = vmatpush.bf16.msra.mxu0 0
  %482 = vmatpush.bf16.msra.mxu0 0
  %483 = vmatpush.bf16.msra.mxu0 0
  %484 = vmatpush.bf16.msra.mxu0 %v475
  %485 = vmatmul.bf16.gmra.mxu0 %v472
  %v486 = vpop.f32.mrf.mxu0
  %v487 = vadd.f32 0.0, %v486
  %v488 = vpop.f32.mrf.mxu0
  %489 = vdwg.mxu0
  %490 = vrot.lane.b32.xlu0 %v254, 104
  %v491 = vpop.permute.xlu0 %490
  %492 = vrot.lane.b32.xlu0 %v205, 104
  %v493 = vpop.permute.xlu0 %492
  %v495 = vsel %vm134, %v491, 0
  %v498 = vsel %vm134, %v493, 0
  %500 = vmatpush.bf16.xpose.msra.mxu0 0
  %501 = vmatpush.bf16.xpose.msra.mxu0 0
  %502 = vmatpush.bf16.xpose.msra.mxu0 0
  %503 = vmatpush.bf16.xpose.msra.mxu0 0
  %504 = vmatpush.bf16.xpose.msra.mxu0 0
  %505 = vmatpush.bf16.xpose.msra.mxu0 0
  %506 = vmatpush.bf16.xpose.msra.mxu0 0
  %507 = vmatpush.bf16.xpose.msra.mxu0 %v498
  %508 = vmatmul.bf16.gmra.mxu0 %v495
  %v509 = vpop.f32.mrf.mxu0
  %v510 = vadd.f32 0.0, %v509
  %v511 = vpop.f32.mrf.mxu0
  %512 = vdwg.mxu0
  %513 = vrot.lane.b32.xlu0 %v280, 104
  %v514 = vpop.permute.xlu0 %513
  %515 = vrot.lane.b32.xlu0 %v230, 104
  %v516 = vpop.permute.xlu0 %515
  %v518 = vsel %vm134, %v514, 0
  %v521 = vsel %vm134, %v516, 0
  %523 = vmatpush.bf16.xpose.msra.mxu0 0
  %524 = vmatpush.bf16.xpose.msra.mxu0 0
  %525 = vmatpush.bf16.xpose.msra.mxu0 0
  %526 = vmatpush.bf16.xpose.msra.mxu0 0
  %527 = vmatpush.bf16.xpose.msra.mxu0 0
  %528 = vmatpush.bf16.xpose.msra.mxu0 0
  %529 = vmatpush.bf16.xpose.msra.mxu0 0
  %530 = vmatpush.bf16.xpose.msra.mxu0 %v521
  %531 = vmatmul.bf16.gmra.mxu0 %v518
  %v532 = vpop.f32.mrf.mxu0
  %v533 = vadd.f32 0.0, %v532
  %v534 = vpop.f32.mrf.mxu0
  %535 = vdwg.mxu0
  %v536 = vmul.f32 %v510, 0.35355338
  %v537 = vmul.f32 %v533, 0.35355338
  %v538 = vsel %vm175, %v536, -10000.0
  %v539 = vsel %vm176, %v537, -10000.0
  %v540 = vsel %vm134, %v538, -inf
  %541 = vmax.xlane.f32.xlu0 %v540
  %v542 = vpop.xlane.xlu0 %541
  %v543 = vsel %vm134, %v539, -inf
  %544 = vmax.xlane.f32.xlu0 %v543
  %v545 = vpop.xlane.xlu0 %544
  %v546 = vsub.f32 %v538, %v542
  %v547 = vsub.f32 %v539, %v545
  %v548 = vmul.f32 %v546, 1.442695
  %v549 = vpow.pop %v548
  %v550 = vmul.f32 %v547, 1.442695
  %v551 = vpow.pop %v550
  %v552 = vsel %vm134, %v549, 0.0
  %553 = vadd.xlane.f32.xlu0 %v552
  %v554 = vpop.xlane.xlu0 %553
  %v555 = vsel %vm134, %v551, 0.0
  %556 = vadd.xlane.f32.xlu0 %v555
  %v557 = vpop.xlane.xlu0 %556
  %v558 = vrcp.pop %v554
  %v559 = vrcp.pop %v557
  %v560 = vmul.f32 %v549, %v558
  %v561 = vmul.f32 %v551, %v559
  %v562 = vpack.c.bf16 %v560, %v560
  %v563 = vpack.c.bf16 %v561, %v561
  %564 = vrot.lane.b32.xlu0 %v205, 72
  %v565 = vpop.permute.xlu0 %564
  %v567 = vsel %vm134, %v562, 0
  %v570 = vsel %vm211, %v565, 0
  %572 = vmatpush.bf16.msra.mxu0 0
  %573 = vmatpush.bf16.msra.mxu0 0
  %574 = vmatpush.bf16.msra.mxu0 0
  %575 = vmatpush.bf16.msra.mxu0 0
  %576 = vmatpush.bf16.msra.mxu0 0
  %577 = vmatpush.bf16.msra.mxu0 0
  %578 = vmatpush.bf16.msra.mxu0 0
  %579 = vmatpush.bf16.msra.mxu0 %v570
  %580 = vmatmul.bf16.gmra.mxu0 %v567
  %v581 = vpop.f32.mrf.mxu0
  %v582 = vadd.f32 0.0, %v581
  %v583 = vpop.f32.mrf.mxu0
  %584 = vdwg.mxu0
  %585 = vrot.lane.b32.xlu0 %v230, 72
  %v586 = vpop.permute.xlu0 %585
  %v588 = vsel %vm134, %v563, 0
  %v591 = vsel %vm211, %v586, 0
  %593 = vmatpush.bf16.msra.mxu0 0
  %594 = vmatpush.bf16.msra.mxu0 0
  %595 = vmatpush.bf16.msra.mxu0 0
  %596 = vmatpush.bf16.msra.mxu0 0
  %597 = vmatpush.bf16.msra.mxu0 0
  %598 = vmatpush.bf16.msra.mxu0 0
  %599 = vmatpush.bf16.msra.mxu0 0
  %600 = vmatpush.bf16.msra.mxu0 %v591
  %601 = vmatmul.bf16.gmra.mxu0 %v588
  %v602 = vpop.f32.mrf.mxu0
  %v603 = vadd.f32 0.0, %v602
  %v604 = vpop.f32.mrf.mxu0
  %605 = vdwg.mxu0
  %608 = vrot.lane.b32.xlu0 %v350, 8
  %v609 = vpop.permute.xlu0 %608
  %610 = vrot.lane.b32.xlu0 %v371, 8
  %v611 = vpop.permute.xlu0 %610
  %616 = vrot.lane.b32.xlu0 %v466, 16
  %v617 = vpop.permute.xlu0 %616
  %618 = vrot.lane.b32.xlu0 %v487, 16
  %v619 = vpop.permute.xlu0 %618
  %624 = vrot.lane.b32.xlu0 %v582, 24
  %v625 = vpop.permute.xlu0 %624
  %626 = vrot.lane.b32.xlu0 %v603, 24
  %v627 = vpop.permute.xlu0 %626
  %v630 = vsel %vm134, %v225, %v609
  %v631 = vsel %vm134, %v249, %v611
  %vm632 = vcmask 130048
  %v633 = vsel %vm632, %v630, %v617
  %v634 = vsel %vm632, %v631, %v619
  %vm635 = vcmask 195584
  %v636 = vsel %vm635, %v633, %v625
  %v637 = vsel %vm635, %v634, %v627
  %v638 = vpack.c.bf16 %v637, %v636
  %v639 = vld [vmem:[%s7] sm:$0xf]
  %v640 = vld [vmem:[%s7 + $0x4] sm:$0xf]
  %v641 = vld [vmem:[%s7 + $0x8] sm:$0xf]
  %v642 = vld [vmem:[%s7 + $0xc] sm:$0xf]
  %v643 = vld [vmem:[%s8] sm:$0x1]
  %v645 = vperm.slane %v643, 0
  %v651 = vunpack.c.l.b16 %v639
  %v652 = vunpack.c.l.b16 %v640
  %v653 = vunpack.c.l.b16 %v641
  %v654 = vunpack.c.l.b16 %v642
  %v655 = vpack.c.b16 %v652, %v651
  %v656 = vpack.c.b16 %v654, %v653
  %v660 = vsel %vm68, %v638, 0
  %662 = vmatpush.bf16.msra.mxu0 0
  %663 = vmatpush.bf16.msra.mxu0 0
  %664 = vmatpush.bf16.msra.mxu0 0
  %665 = vmatpush.bf16.msra.mxu0 0
  %666 = vmatpush.bf16.msra.mxu0 0
  %667 = vmatpush.bf16.msra.mxu0 0
  %668 = vmatpush.bf16.msra.mxu0 %v656
  %669 = vmatpush.bf16.msra.mxu0 %v655
  %670 = vmatmul.bf16.gmra.mxu0 %v660
  %v671 = vpop.f32.mrf.mxu0
  %v672 = vadd.f32 %v645, %v671
  %v673 = vpop.f32.mrf.mxu0
  %v674 = vadd.f32 %v645, %v673
  %675 = vdwg.mxu0
  %v676 = vunpack.c.l.bf16 %v39
  %v677 = vunpack.c.l.bf16 %v40
  %v678 = vadd.f32 %v672, %v676
  %v679 = vadd.f32 %v674, %v677
  %v680 = vsel %vm68, %v678, 0.0
  %681 = vadd.xlane.f32.xlu0 %v680
  %v682 = vpop.xlane.xlu0 %681
  %v683 = vsel %vm68, %v679, 0.0
  %684 = vadd.xlane.f32.xlu0 %v683
  %v685 = vpop.xlane.xlu0 %684
  %v686 = vrcp.pop 32.0
  %v687 = vmul.f32 32.0, %v686
  %v688 = vsub.f32 1.0, %v687
  %v689 = vmul.f32 %v686, %v688
  %v690 = vadd.f32 %v686, %v689
  %vm691 = vweird.f32 %v686
  %v692 = vsel %vm691, %v686, %v690
  %v693 = vmul.f32 %v682, %v692
  %v694 = vmul.f32 %v685, %v692
  %v695 = vsub.f32 %v678, %v693
  %v696 = vsub.f32 %v679, %v694
  %v697 = vmul.f32 %v695, %v695
  %v698 = vmul.f32 %v696, %v696
  %v699 = vsel %vm68, %v697, 0.0
  %700 = vadd.xlane.f32.xlu0 %v699
  %v701 = vpop.xlane.xlu0 %700
  %v702 = vsel %vm68, %v698, 0.0
  %703 = vadd.xlane.f32.xlu0 %v702
  %v704 = vpop.xlane.xlu0 %703
  %v705 = vmul.f32 %v701, %v692
  %v706 = vmul.f32 %v704, %v692
  %v707 = vadd.f32 %v705, 1e-12
  %v708 = vadd.f32 %v706, 1e-12
  %v709 = vrsqrt.pop %v707
  %v710 = vmul.f32 %v709, %v707
  %v711 = vmul.f32 %v710, %v709
  %v712 = vmul.f32 0.5, %v711
  %v713 = vsub.f32 1.5, %v712
  %v714 = vmul.f32 %v709, %v713
  %vm715 = vweird.f32 %v707
  %vm716 = vweird.f32 %v709
  %vm717 = vmor %vm715, %vm716
  %v718 = vsel %vm717, %v709, %v714
  %v719 = vrsqrt.pop %v708
  %v720 = vmul.f32 %v719, %v708
  %v721 = vmul.f32 %v720, %v719
  %v722 = vmul.f32 0.5, %v721
  %v723 = vsub.f32 1.5, %v722
  %v724 = vmul.f32 %v719, %v723
  %vm725 = vweird.f32 %v708
  %vm726 = vweird.f32 %v719
  %vm727 = vmor %vm725, %vm726
  %v728 = vsel %vm727, %v719, %v724
  %v729 = vmul.f32 %v695, %v718
  %v730 = vmul.f32 %v696, %v728
  %v731 = vld [vmem:[%s9] sm:$0x1]
  %v733 = vperm.slane %v731, 0
  %v735 = vmul.f32 %v729, %v733
  %v736 = vmul.f32 %v730, %v733
  %v737 = vld [vmem:[%s10] sm:$0x1]
  %v739 = vperm.slane %v737, 0
  %v741 = vadd.f32 %v735, %v739
  %v742 = vadd.f32 %v736, %v739
  %v743 = vpack.c.bf16 %v741, %v741
  %v744 = vpack.c.bf16 %v742, %v742
  %vm745 = vcmask 257024
  %746 = vst.msk [vmem:[%s11] sm:$0xf] %vm745, %v743
  %747 = vst.msk [vmem:[%s11 + $0x4] sm:$0xf] %vm745, %v744
  // Predicated region
  $region46: #{decoder_forward.7} parent=0 // pred_check
    _
  $region47: #{decoder_forward.7} parent=0 // pred_check_branch
    %749 = sbr.rel (0) target = $region49
  $region48: #{decoder_forward.7} parent=0 // pred_region
    _
  $region49: #{decoder_forward.7} parent=0 // pred_fallthru
    _
  // Predicated region
  $region50: #{decoder_forward.7} parent=0 // pred_check
    _
  $region51: #{decoder_forward.7} parent=0 // pred_check_branch
    %751 = sbr.rel (0) target = $region53
  $region52: #{decoder_forward.7} parent=0 // pred_region
    _
  $region53: #{decoder_forward.7} parent=0 // pred_fallthru
    _

// kernel: decoder_forward.8
$region0: #{decoder_forward.8}
  #allocation0 [shape = 'u32[]', space=smem, size = 0x4, offset = 0x4, fixed_abs, tag = 'smem constant byte address 0x4 - core index']
  #allocation1 [shape = 'u32[72,128]{1,0:T(1,128)}', space=vmem, size = 0x9000, scoped, tag = 'internal scratch']
  %s0 = inlined_call_operand.vmem [shape: bf16[2,8,32], index: 0, kind: input, shape index: {}]
  %s1 = inlined_call_operand.vmem [shape: bf16[2,12,32], index: 1, kind: input, shape index: {}]
  %s2 = inlined_call_operand.vmem [shape: f32[2,8,12], index: 2, kind: input, shape index: {}]
  %s3 = inlined_call_operand.vmem [shape: bf16[32,32], index: 3, kind: input, shape index: {}]
  %s4 = inlined_call_operand.vmem [shape: f32[1,32], index: 4, kind: input, shape index: {}]
  %s5 = inlined_call_operand.vmem [shape: bf16[32,64], index: 5, kind: input, shape index: {}]
  %s6 = inlined_call_operand.vmem [shape: f32[1,64], index: 6, kind: input, shape index: {}]
  %s7 = inlined_call_operand.vmem [shape: bf16[32,32], index: 7, kind: input, shape index: {}]
  %s8 = inlined_call_operand.vmem [shape: f32[1,32], index: 8, kind: input, shape index: {}]
  %s9 = inlined_call_operand.vmem [shape: f32[1,32], index: 9, kind: input, shape index: {}]
  %s10 = inlined_call_operand.vmem [shape: f32[1,32], index: 10, kind: input, shape index: {}]
  %s11 = inlined_call_operand.vmem [shape: bf16[16,32], index: 11, kind: output, shape index: {}]
  %s12 = sld [smem:[#allocation0]]
  $region54: #{decoder_forward.8} parent=0
    _
  %s14 = ssub.s32 1, %s12
  %s15 = scalar_select 0, %s14, %s12
  // Predicated region
  $region2: #{decoder_forward.8} parent=0 // pred_check
    _
  $region3: #{decoder_forward.8} parent=0 // pred_check_branch
    %17 = sbr.rel (0) target = $region5
  $region4: #{decoder_forward.8} parent=0 // pred_region
    _
  $region5: #{decoder_forward.8} parent=0 // pred_fallthru
    _
  // Predicated region
  $region6: #{decoder_forward.8} parent=0 // pred_check
    _
  $region7: #{decoder_forward.8} parent=0 // pred_check_branch
    %19 = sbr.rel (0) target = $region9
  $region8: #{decoder_forward.8} parent=0 // pred_region
    _
  $region9: #{decoder_forward.8} parent=0 // pred_fallthru
    _
  // Predicated region
  $region10: #{decoder_forward.8} parent=0 // pred_check
    _
  $region11: #{decoder_forward.8} parent=0 // pred_check_branch
    %21 = sbr.rel (0) target = $region13
  $region12: #{decoder_forward.8} parent=0 // pred_region
    _
  $region13: #{decoder_forward.8} parent=0 // pred_fallthru
    _
  // Predicated region
  $region14: #{decoder_forward.8} parent=0 // pred_check
    _
  $region15: #{decoder_forward.8} parent=0 // pred_check_branch
    %23 = sbr.rel (0) target = $region17
  $region16: #{decoder_forward.8} parent=0 // pred_region
    _
  $region17: #{decoder_forward.8} parent=0 // pred_fallthru
    _
  // Predicated region
  $region18: #{decoder_forward.8} parent=0 // pred_check
    _
  $region19: #{decoder_forward.8} parent=0 // pred_check_branch
    %25 = sbr.rel (0) target = $region21
  $region20: #{decoder_forward.8} parent=0 // pred_region
    _
  $region21: #{decoder_forward.8} parent=0 // pred_fallthru
    _
  // Predicated region
  $region22: #{decoder_forward.8} parent=0 // pred_check
    _
  $region23: #{decoder_forward.8} parent=0 // pred_check_branch
    %27 = sbr.rel (0) target = $region25
  $region24: #{decoder_forward.8} parent=0 // pred_region
    _
  $region25: #{decoder_forward.8} parent=0 // pred_fallthru
    _
  // Predicated region
  $region26: #{decoder_forward.8} parent=0 // pred_check
    _
  $region27: #{decoder_forward.8} parent=0 // pred_check_branch
    %29 = sbr.rel (0) target = $region29
  $region28: #{decoder_forward.8} parent=0 // pred_region
    _
  $region29: #{decoder_forward.8} parent=0 // pred_fallthru
    _
  // Predicated region
  $region30: #{decoder_forward.8} parent=0 // pred_check
    _
  $region31: #{decoder_forward.8} parent=0 // pred_check_branch
    %31 = sbr.rel (0) target = $region33
  $region32: #{decoder_forward.8} parent=0 // pred_region
    _
  $region33: #{decoder_forward.8} parent=0 // pred_fallthru
    _
  // Predicated region
  $region34: #{decoder_forward.8} parent=0 // pred_check
    _
  $region35: #{decoder_forward.8} parent=0 // pred_check_branch
    %33 = sbr.rel (0) target = $region37
  $region36: #{decoder_forward.8} parent=0 // pred_region
    _
  $region37: #{decoder_forward.8} parent=0 // pred_fallthru
    _
  // Predicated region
  $region38: #{decoder_forward.8} parent=0 // pred_check
    _
  $region39: #{decoder_forward.8} parent=0 // pred_check_branch
    %35 = sbr.rel (0) target = $region41
  $region40: #{decoder_forward.8} parent=0 // pred_region
    _
  $region41: #{decoder_forward.8} parent=0 // pred_fallthru
    _
  // Predicated region
  $region42: #{decoder_forward.8} parent=0 // pred_check
    _
  $region43: #{decoder_forward.8} parent=0 // pred_check_branch
    %37 = sbr.rel (0) target = $region45
  $region44: #{decoder_forward.8} parent=0 // pred_region
    _
  $region45: #{decoder_forward.8} parent=0 // pred_fallthru
    _
  %v39 = vld [vmem:[%s0] sm:$0xf]
  %v40 = vld [vmem:[%s0 + $0x4] sm:$0xf]
  %v41 = vld [vmem:[%s1] sm:$0xf]
  %v42 = vld [vmem:[%s1 + $0x4] sm:$0x3]
  %v43 = vld [vmem:[%s1 + $0x8] sm:$0xf]
  %v44 = vld [vmem:[%s1 + $0xc] sm:$0x3]
  %v49 = vrot.slane %v41, 2
  %v50 = vrot.slane %v42, 2
  %v51 = vrot.slane %v43, 2
  %v52 = vrot.slane %v44, 2
  %vm53 = vcmask 1041408
  %v56 = vsel %vm53, %v41, %v49
  %vm57 = vcmask 1043458
  %v58 = vsel %vm57, %v41, %v49
  %v60 = vrot.slane %v58, 2
  %v63 = vsel %vm53, %v42, %v50
  %v66 = vsel %vm53, %v43, %v51
  %v67 = vsel %vm57, %v43, %v51
  %v69 = vrot.slane %v67, 2
  %v72 = vsel %vm53, %v44, %v52
  %v73 = vld [vmem:[%s3] sm:$0xf]
  %v74 = vld [vmem:[%s3 + $0x4] sm:$0xf]
  %v75 = vld [vmem:[%s3 + $0x8] sm:$0xf]
  %v76 = vld [vmem:[%s3 + $0xc] sm:$0xf]
  %v77 = vld [vmem:[%s4] sm:$0x1]
  %v79 = vperm.slane %v77, 0
  %v83 = vunpack.c.l.b16 %v39
  %v84 = vunpack.c.l.b16 %v40
  %v85 = vpack.c.b16 %v84, %v83
  %v90 = vunpack.c.l.b16 %v73
  %v91 = vunpack.c.l.b16 %v74
  %v92 = vunpack.c.l.b16 %v75
  %v93 = vunpack.c.l.b16 %v76
  %v94 = vpack.c.b16 %v91, %v90
  %v95 = vpack.c.b16 %v93, %v92
  %vm98 = vcmask 261120
  %v100 = vsel %vm98, %v85, 0
  %102 = vmatpush.bf16.msra.mxu0 0
  %103 = vmatpush.bf16.msra.mxu0 0
  %104 = vmatpush.bf16.msra.mxu0 0
  %105 = vmatpush.bf16.msra.mxu0 0
  %106 = vmatpush.bf16.msra.mxu0 0
  %107 = vmatpush.bf16.msra.mxu0 0
  %108 = vmatpush.bf16.msra.mxu0 %v95
  %109 = vmatpush.bf16.msra.mxu0 %v94
  %110 = vmatmul.bf16.gmra.mxu0 %v100
  %v111 = vpop.f32.mrf.mxu0
  %v112 = vadd.f32 %v79, %v111
  %v113 = vpop.f32.mrf.mxu0
  %v114 = vadd.f32 %v79, %v113
  %115 = vdwg.mxu0
  %v116 = vld [vmem:[%s5] sm:$0xf]
  %v117 = vld [vmem:[%s5 + $0x4] sm:$0xf]
  %v118 = vld [vmem:[%s5 + $0x8] sm:$0xf]
  %v119 = vld [vmem:[%s5 + $0xc] sm:$0xf]
  %v120 = vld [vmem:[%s6] sm:$0x1]
  %v122 = vperm.slane %v120, 0
  %124 = vst [vmem:[#allocation1] ss:$4 sm:$0xff] %v56
  %s126 = scalar_lea.vmem [#allocation1], 1
  %127 = vst [vmem:[%s126] ss:$4 sm:$0xff] %v60
  %s128 = scalar_lea.vmem [#allocation1], 2
  %129 = vst [vmem:[%s128] ss:$4 sm:$0xff] %v63
  %s130 = scalar_lea.vmem [#allocation1], 3
  %131 = vst [vmem:[%s130] ss:$4 sm:$0xff] %v66
  %s133 = scalar_lea.vmem [#allocation1], 32
  %134 = vst [vmem:[%s133] ss:$4 sm:$0xff] %v69
  %s135 = scalar_lea.vmem [#allocation1], 33
  %136 = vst [vmem:[%s135] ss:$4 sm:$0xff] %v72
  %v137 = vld.sshfl [vmem:[#allocation1] sm:$0xff pattern:$0x73625140]
  %v138 = vld.sshfl [vmem:[#allocation1 + $0x20] sm:$0xff pattern:$0x73625140]
  %v143 = vunpack.c.l.b16 %v116
  %v144 = vunpack.c.l.b16 %v117
  %v145 = vunpack.c.l.b16 %v118
  %v146 = vunpack.c.l.b16 %v119
  %v147 = vpack.c.b16 %v144, %v143
  %v148 = vpack.c.b16 %v146, %v145
  %v151 = vsel %vm98, %v137, 0
  %v153 = vsel %vm98, %v138, 0
  %155 = vmatpush.bf16.msra.mxu0 0
  %156 = vmatpush.bf16.msra.mxu0 0
  %157 = vmatpush.bf16.msra.mxu0 0
  %158 = vmatpush.bf16.msra.mxu0 0
  %159 = vmatpush.bf16.msra.mxu0 0
  %160 = vmatpush.bf16.msra.mxu0 0
  %161 = vmatpush.bf16.msra.mxu0 %v148
  %162 = vmatpush.bf16.msra.mxu0 %v147
  %163 = vmatmul.bf16.gmra.mxu0 %v151
  %v164 = vpop.f32.mrf.mxu0
  %v165 = vadd.f32 %v122, %v164
  %v166 = vpop.f32.mrf.mxu0
  %v167 = vadd.f32 %v122, %v166
  %168 = vmatmul.bf16.gmra.mxu0 %v153
  %v169 = vpop.f32.mrf.mxu0
  %v170 = vadd.f32 %v122, %v169
  %v171 = vpop.f32.mrf.mxu0
  %172 = vdwg.mxu0
  %v176 = vrot.slane %v165, 4
  %v177 = vrot.slane %v167, 4
  %v178 = vrot.slane %v170, 4
  %v179 = vld [vmem:[%s2] sm:$0xff]
  %v180 = vld [vmem:[%s2 + $0x8] sm:$0xff]
  %v181 = vpack.c.bf16 %v112, %v112
  %v182 = vpack.c.bf16 %v114, %v114
  %183 = vst [vmem:[#allocation1] ss:$2 sm:$0xff] %v165
  %s184 = scalar_lea.vmem [#allocation1], 1
  %185 = vst [vmem:[%s184] ss:$2 sm:$0xff] %v176
  %s186 = scalar_lea.vmem [#allocation1], 16
  %187 = vst [vmem:[%s186] ss:$2 sm:$0xff] %v167
  %v188 = vld.sshfl [vmem:[#allocation1] sm:$0xff pattern:$0x75316420]
  %v189 = vld.sshfl [vmem:[#allocation1 + $0x10] sm:$0xff pattern:$0x75316420]
  %s190 = scalar_lea.vmem [#allocation1], 32
  %191 = vst [vmem:[%s190] ss:$2 sm:$0xff] %v177
  %s192 = scalar_lea.vmem [#allocation1], 33
  %193 = vst [vmem:[%s192] ss:$2 sm:$0xff] %v170
  %s194 = scalar_lea.vmem [#allocation1], 48
  %195 = vst [vmem:[%s194] ss:$2 sm:$0xff] %v178
  %v196 = vld.sshfl [vmem:[#allocation1 + $0x20] sm:$0xff pattern:$0x75316420]
  %v197 = vld.sshfl [vmem:[#allocation1 + $0x30] sm:$0xff pattern:$0x75316420]
  %v202 = vpack.c.bf16 %v188, %v188
  %v203 = vpack.c.bf16 %v189, %v189
  %v204 = vpack.c.bf16 %v196, %v196
  %v205 = vpack.c.bf16 %v197, %v197
  %206 = vst [vmem:[#allocation1] ss:$2 sm:$0xff] %v165
  %s207 = scalar_lea.vmem [#allocation1], 1
  %208 = vst [vmem:[%s207] ss:$2 sm:$0xff] %v176
  %s209 = scalar_lea.vmem [#allocation1], 16
  %210 = vst [vmem:[%s209] ss:$2 sm:$0xff] %v167
  %v211 = vld.sshfl [vmem:[#allocation1] sm:$0xff pattern:$0x75316420]
  %v212 = vld.sshfl [vmem:[#allocation1 + $0x10] sm:$0xff pattern:$0x75316420]
  %s213 = scalar_lea.vmem [#allocation1], 32
  %214 = vst [vmem:[%s213] ss:$2 sm:$0xff] %v177
  %s215 = scalar_lea.vmem [#allocation1], 33
  %216 = vst [vmem:[%s215] ss:$2 sm:$0xff] %v170
  %s217 = scalar_lea.vmem [#allocation1], 48
  %218 = vst [vmem:[%s217] ss:$2 sm:$0xff] %v178
  %v219 = vld.sshfl [vmem:[#allocation1 + $0x20] sm:$0xff pattern:$0x75316420]
  %v220 = vld.sshfl [vmem:[#allocation1 + $0x30] sm:$0xff pattern:$0x75316420]
  %v225 = vpack.c.bf16 %v211, %v211
  %v226 = vpack.c.bf16 %v212, %v212
  %v227 = vpack.c.bf16 %v219, %v219
  %v228 = vpack.c.bf16 %v220, %v220
  %v231 = vunpack.c.l.b16 %v202
  %v232 = vunpack.c.l.b16 %v203
  %v233 = vpack.c.b16 %v232, %v231
  %vm234 = vcmask 64512
  %v236 = vsel %vm234, %v181, 0
  %v239 = vsel %vm234, %v233, 0
  %241 = vmatpush.bf16.xpose.msra.mxu0 0
  %242 = vmatpush.bf16.xpose.msra.mxu0 0
  %243 = vmatpush.bf16.xpose.msra.mxu0 0
  %244 = vmatpush.bf16.xpose.msra.mxu0 0
  %245 = vmatpush.bf16.xpose.msra.mxu0 0
  %246 = vmatpush.bf16.xpose.msra.mxu0 0
  %247 = vmatpush.bf16.xpose.msra.mxu0 0
  %248 = vmatpush.bf16.xpose.msra.mxu0 %v239
  %249 = vmatmul.bf16.gmra.mxu0 %v236
  %v250 = vpop.f32.mrf.mxu0
  %v251 = vadd.f32 0.0, %v250
  %v252 = vpop.f32.mrf.mxu0
  %253 = vdwg.mxu0
  %v256 = vunpack.c.l.b16 %v204
  %v257 = vunpack.c.l.b16 %v205
  %v258 = vpack.c.b16 %v257, %v256
  %v260 = vsel %vm234, %v182, 0
  %v263 = vsel %vm234, %v258, 0
  %265 = vmatpush.bf16.xpose.msra.mxu0 0
  %266 = vmatpush.bf16.xpose.msra.mxu0 0
  %267 = vmatpush.bf16.xpose.msra.mxu0 0
  %268 = vmatpush.bf16.xpose.msra.mxu0 0
  %269 = vmatpush.bf16.xpose.msra.mxu0 0
  %270 = vmatpush.bf16.xpose.msra.mxu0 0
  %271 = vmatpush.bf16.xpose.msra.mxu0 0
  %272 = vmatpush.bf16.xpose.msra.mxu0 %v263
  %273 = vmatmul.bf16.gmra.mxu0 %v260
  %v274 = vpop.f32.mrf.mxu0
  %v275 = vadd.f32 0.0, %v274
  %v276 = vpop.f32.mrf.mxu0
  %277 = vdwg.mxu0
  %v278 = vmul.f32 %v251, 0.35355338
  %v279 = vmul.f32 %v275, 0.35355338
  %vm280 = vcmp.gt.f32.partialorder %v179, 0.5
  %vm281 = vcmp.gt.f32.partialorder %v180, 0.5
  %v282 = vsel %vm280, %v278, -10000.0
  %v283 = vsel %vm281, %v279, -10000.0
  %vm284 = vcmask 97280
  %v285 = vsel %vm284, %v282, -inf
  %286 = vmax.xlane.f32.xlu0 %v285
  %v287 = vpop.xlane.xlu0 %286
  %v288 = vsel %vm284, %v283, -inf
  %289 = vmax.xlane.f32.xlu0 %v288
  %v290 = vpop.xlane.xlu0 %289
  %v291 = vsub.f32 %v282, %v287
  %v292 = vsub.f32 %v283, %v290
  %v293 = vmul.f32 %v291, 1.442695
  %v294 = vpow.pop %v293
  %v295 = vmul.f32 %v292, 1.442695
  %v296 = vpow.pop %v295
  %v297 = vsel %vm284, %v294, 0.0
  %298 = vadd.xlane.f32.xlu0 %v297
  %v299 = vpop.xlane.xlu0 %298
  %v300 = vsel %vm284, %v296, 0.0
  %301 = vadd.xlane.f32.xlu0 %v300
  %v302 = vpop.xlane.xlu0 %301
  %v303 = vrcp.pop %v299
  %v304 = vrcp.pop %v302
  %v305 = vmul.f32 %v294, %v303
  %v306 = vmul.f32 %v296, %v304
  %v307 = vpack.c.bf16 %v305, %v305
  %v308 = vpack.c.bf16 %v306, %v306
  %v311 = vunpack.c.l.b16 %v225
  %v312 = vunpack.c.l.b16 %v226
  %v313 = vpack.c.b16 %v312, %v311
  %314 = vrot.lane.b32.xlu0 %v313, 96
  %v315 = vpop.permute.xlu0 %314
  %v317 = vsel %vm284, %v307, 0
  %vm319 = vcmask 1045504
  %v321 = vsel %vm319, %v315, 0
  %323 = vmatpush.bf16.msra.mxu0 0
  %324 = vmatpush.bf16.msra.mxu0 0
  %325 = vmatpush.bf16.msra.mxu0 0
  %326 = vmatpush.bf16.msra.mxu0 0
  %327 = vmatpush.bf16.msra.mxu0 0
  %328 = vmatpush.bf16.msra.mxu0 0
  %329 = vmatpush.bf16.msra.mxu0 0
  %330 = vmatpush.bf16.msra.mxu0 %v321
  %331 = vmatmul.bf16.gmra.mxu0 %v317
  %v332 = vpop.f32.mrf.mxu0
  %v333 = vadd.f32 0.0, %v332
  %v334 = vpop.f32.mrf.mxu0
  %335 = vdwg.mxu0
  %v338 = vunpack.c.l.b16 %v227
  %v339 = vunpack.c.l.b16 %v228
  %v340 = vpack.c.b16 %v339, %v338
  %341 = vrot.lane.b32.xlu0 %v340, 96
  %v342 = vpop.permute.xlu0 %341
  %v344 = vsel %vm284, %v308, 0
  %v347 = vsel %vm319, %v342, 0
  %349 = vmatpush.bf16.msra.mxu0 0
  %350 = vmatpush.bf16.msra.mxu0 0
  %351 = vmatpush.bf16.msra.mxu0 0
  %352 = vmatpush.bf16.msra.mxu0 0
  %353 = vmatpush.bf16.msra.mxu0 0
  %354 = vmatpush.bf16.msra.mxu0 0
  %355 = vmatpush.bf16.msra.mxu0 0
  %356 = vmatpush.bf16.msra.mxu0 %v347
  %357 = vmatmul.bf16.gmra.mxu0 %v344
  %v358 = vpop.f32.mrf.mxu0
  %v359 = vadd.f32 0.0, %v358
  %v360 = vpop.f32.mrf.mxu0
  %361 = vdwg.mxu0
  %362 = vst [vmem:[#allocation1] ss:$2 sm:$0xff] %v165
  %s363 = scalar_lea.vmem [#allocation1], 1
  %364 = vst [vmem:[%s363] ss:$2 sm:$0xff] %v176
  %s365 = scalar_lea.vmem [#allocation1], 16
  %366 = vst [vmem:[%s365] ss:$2 sm:$0xff] %v167
  %v367 = vld.sshfl [vmem:[#allocation1] sm:$0xff pattern:$0x75316420]
  %v368 = vld.sshfl [vmem:[#allocation1 + $0x10] sm:$0xff pattern:$0x75316420]
  %s369 = scalar_lea.vmem [#allocation1], 32
  %370 = vst [vmem:[%s369] ss:$2 sm:$0xff] %v177
  %s371 = scalar_lea.vmem [#allocation1], 33
  %372 = vst [vmem:[%s371] ss:$2 sm:$0xff] %v170
  %s373 = scalar_lea.vmem [#allocation1], 48
  %374 = vst [vmem:[%s373] ss:$2 sm:$0xff] %v178
  %v375 = vld.sshfl [vmem:[#allocation1 + $0x20] sm:$0xff pattern:$0x75316420]
  %v376 = vld.sshfl [vmem:[#allocation1 + $0x30] sm:$0xff pattern:$0x75316420]
  %v381 = vpack.c.bf16 %v367, %v367
  %v382 = vpack.c.bf16 %v368, %v368
  %v383 = vpack.c.bf16 %v375, %v375
  %v384 = vpack.c.bf16 %v376, %v376
  %385 = vst [vmem:[#allocation1] ss:$2 sm:$0xff] %v165
  %s386 = scalar_lea.vmem [#allocation1], 1
  %387 = vst [vmem:[%s386] ss:$2 sm:$0xff] %v176
  %s388 = scalar_lea.vmem [#allocation1], 16
  %389 = vst [vmem:[%s388] ss:$2 sm:$0xff] %v167
  %v390 = vld.sshfl [vmem:[#allocation1] sm:$0xff pattern:$0x75316420]
  %v391 = vld.sshfl [vmem:[#allocation1 + $0x10] sm:$0xff pattern:$0x75316420]
  %s392 = scalar_lea.vmem [#allocation1], 32
  %393 = vst [vmem:[%s392] ss:$2 sm:$0xff] %v177
  %s394 = scalar_lea.vmem [#allocation1], 33
  %395 = vst [vmem:[%s394] ss:$2 sm:$0xff] %v170
  %s396 = scalar_lea.vmem [#allocation1], 48
  %397 = vst [vmem:[%s396] ss:$2 sm:$0xff] %v178
  %v398 = vld.sshfl [vmem:[#allocation1 + $0x20] sm:$0xff pattern:$0x75316420]
  %v399 = vld.sshfl [vmem:[#allocation1 + $0x30] sm:$0xff pattern:$0x75316420]
  %v404 = vpack.c.bf16 %v390, %v390
  %v405 = vpack.c.bf16 %v391, %v391
  %v406 = vpack.c.bf16 %v398, %v398
  %v407 = vpack.c.bf16 %v399, %v399
  %v409 = vunpack.c.l.b16 %v181
  %v410 = vpack.c.b16 %v409, %v409
  %411 = vrot.lane.b32.xlu0 %v410, 120
  %v412 = vpop.permute.xlu0 %411
  %v415 = vunpack.c.l.b16 %v381
  %v416 = vunpack.c.l.b16 %v382
  %v417 = vpack.c.b16 %v416, %v415
  %418 = vrot.lane.b32.xlu0 %v417, 120
  %v419 = vpop.permute.xlu0 %418
  %v421 = vsel %vm234, %v412, 0
  %v424 = vsel %vm234, %v419, 0
  %426 = vmatpush.bf16.xpose.msra.mxu0 0
  %427 = vmatpush.bf16.xpose.msra.mxu0 0
  %428 = vmatpush.bf16.xpose.msra.mxu0 0
  %429 = vmatpush.bf16.xpose.msra.mxu0 0
  %430 = vmatpush.bf16.xpose.msra.mxu0 0
  %431 = vmatpush.bf16.xpose.msra.mxu0 0
  %432 = vmatpush.bf16.xpose.msra.mxu0 0
  %433 = vmatpush.bf16.xpose.msra.mxu0 %v424
  %434 = vmatmul.bf16.gmra.mxu0 %v421
  %v435 = vpop.f32.mrf.mxu0
  %v436 = vadd.f32 0.0, %v435
  %v437 = vpop.f32.mrf.mxu0
  %438 = vdwg.mxu0
  %v440 = vunpack.c.l.b16 %v182
  %v441 = vpack.c.b16 %v440, %v440
  %442 = vrot.lane.b32.xlu0 %v441, 120
  %v443 = vpop.permute.xlu0 %442
  %v446 = vunpack.c.l.b16 %v383
  %v447 = vunpack.c.l.b16 %v384
  %v448 = vpack.c.b16 %v447, %v446
  %449 = vrot.lane.b32.xlu0 %v448, 120
  %v450 = vpop.permute.xlu0 %449
  %v452 = vsel %vm234, %v443, 0
  %v455 = vsel %vm234, %v450, 0
  %457 = vmatpush.bf16.xpose.msra.mxu0 0
  %458 = vmatpush.bf16.xpose.msra.mxu0 0
  %459 = vmatpush.bf16.xpose.msra.mxu0 0
  %460 = vmatpush.bf16.xpose.msra.mxu0 0
  %461 = vmatpush.bf16.xpose.msra.mxu0 0
  %462 = vmatpush.bf16.xpose.msra.mxu0 0
  %463 = vmatpush.bf16.xpose.msra.mxu0 0
  %464 = vmatpush.bf16.xpose.msra.mxu0 %v455
  %465 = vmatmul.bf16.gmra.mxu0 %v452
  %v466 = vpop.f32.mrf.mxu0
  %v467 = vadd.f32 0.0, %v466
  %v468 = vpop.f32.mrf.mxu0
  %469 = vdwg.mxu0
  %v470 = vmul.f32 %v436, 0.35355338
  %v471 = vmul.f32 %v467, 0.35355338
  %v472 = vsel %vm280, %v470, -10000.0
  %v473 = vsel %vm281, %v471, -10000.0
  %v474 = vsel %vm284, %v472, -inf
  %475 = vmax.xlane.f32.xlu0 %v474
  %v476 = vpop.xlane.xlu0 %475
  %v477 = vsel %vm284, %v473, -inf
  %478 = vmax.xlane.f32.xlu0 %v477
  %v479 = vpop.xlane.xlu0 %478
  %v480 = vsub.f32 %v472, %v476
  %v481 = vsub.f32 %v473, %v479
  %v482 = vmul.f32 %v480, 1.442695
  %v483 = vpow.pop %v482
  %v484 = vmul.f32 %v481, 1.442695
  %v485 = vpow.pop %v484
  %v486 = vsel %vm284, %v483, 0.0
  %487 = vadd.xlane.f32.xlu0 %v486
  %v488 = vpop.xlane.xlu0 %487
  %v489 = vsel %vm284, %v485, 0.0
  %490 = vadd.xlane.f32.xlu0 %v489
  %v491 = vpop.xlane.xlu0 %490
  %v492 = vrcp.pop %v488
  %v493 = vrcp.pop %v491
  %v494 = vmul.f32 %v483, %v492
  %v495 = vmul.f32 %v485, %v493
  %v496 = vpack.c.bf16 %v494, %v494
  %v497 = vpack.c.bf16 %v495, %v495
  %v500 = vunpack.c.l.b16 %v404
  %v501 = vunpack.c.l.b16 %v405
  %v502 = vpack.c.b16 %v501, %v500
  %503 = vrot.lane.b32.xlu0 %v502, 88
  %v504 = vpop.permute.xlu0 %503
  %v506 = vsel %vm284, %v496, 0
  %v509 = vsel %vm319, %v504, 0
  %511 = vmatpush.bf16.msra.mxu0 0
  %512 = vmatpush.bf16.msra.mxu0 0
  %513 = vmatpush.bf16.msra.mxu0 0
  %514 = vmatpush.bf16.msra.mxu0 0
  %515 = vmatpush.bf16.msra.mxu0 0
  %516 = vmatpush.bf16.msra.mxu0 0
  %517 = vmatpush.bf16.msra.mxu0 0
  %518 = vmatpush.bf16.msra.mxu0 %v509
  %519 = vmatmul.bf16.gmra.mxu0 %v506
  %v520 = vpop.f32.mrf.mxu0
  %v521 = vadd.f32 0.0, %v520
  %v522 = vpop.f32.mrf.mxu0
  %523 = vdwg.mxu0
  %v526 = vunpack.c.l.b16 %v406
  %v527 = vunpack.c.l.b16 %v407
  %v528 = vpack.c.b16 %v527, %v526
  %529 = vrot.lane.b32.xlu0 %v528, 88
  %v530 = vpop.permute.xlu0 %529
  %v532 = vsel %vm284, %v497, 0
  %v535 = vsel %vm319, %v530, 0
  %537 = vmatpush.bf16.msra.mxu0 0
  %538 = vmatpush.bf16.msra.mxu0 0
  %539 = vmatpush.bf16.msra.mxu0 0
  %540 = vmatpush.bf16.msra.mxu0 0
  %541 = vmatpush.bf16.msra.mxu0 0
  %542 = vmatpush.bf16.msra.mxu0 0
  %543 = vmatpush.bf16.msra.mxu0 0
  %544 = vmatpush.bf16.msra.mxu0 %v535
  %545 = vmatmul.bf16.gmra.mxu0 %v532
  %v546 = vpop.f32.mrf.mxu0
  %v547 = vadd.f32 0.0, %v546
  %v548 = vpop.f32.mrf.mxu0
  %549 = vdwg.mxu0
  %550 = vst [vmem:[#allocation1] ss:$2 sm:$0xff] %v165
  %s551 = scalar_lea.vmem [#allocation1], 1
  %552 = vst [vmem:[%s551] ss:$2 sm:$0xff] %v176
  %s553 = scalar_lea.vmem [#allocation1], 16
  %554 = vst [vmem:[%s553] ss:$2 sm:$0xff] %v167
  %v555 = vld.sshfl [vmem:[#allocation1] sm:$0xff pattern:$0x75316420]
  %v556 = vld.sshfl [vmem:[#allocation1 + $0x10] sm:$0xff pattern:$0x75316420]
  %s557 = scalar_lea.vmem [#allocation1], 32
  %558 = vst [vmem:[%s557] ss:$2 sm:$0xff] %v177
  %s559 = scalar_lea.vmem [#allocation1], 33
  %560 = vst [vmem:[%s559] ss:$2 sm:$0xff] %v170
  %s561 = scalar_lea.vmem [#allocation1], 48
  %562 = vst [vmem:[%s561] ss:$2 sm:$0xff] %v178
  %v563 = vld.sshfl [vmem:[#allocation1 + $0x20] sm:$0xff pattern:$0x75316420]
  %v564 = vld.sshfl [vmem:[#allocation1 + $0x30] sm:$0xff pattern:$0x75316420]
  %v569 = vpack.c.bf16 %v555, %v555
  %v570 = vpack.c.bf16 %v556, %v556
  %v571 = vpack.c.bf16 %v563, %v563
  %v572 = vpack.c.bf16 %v564, %v564
  %573 = vst [vmem:[#allocation1] ss:$2 sm:$0xff] %v165
  %s574 = scalar_lea.vmem [#allocation1], 1
  %575 = vst [vmem:[%s574] ss:$2 sm:$0xff] %v176
  %s576 = scalar_lea.vmem [#allocation1], 16
  %577 = vst [vmem:[%s576] ss:$2 sm:$0xff] %v167
  %v578 = vld.sshfl [vmem:[#allocation1] sm:$0xff pattern:$0x75316420]
  %v579 = vld.sshfl [vmem:[#allocation1 + $0x10] sm:$0xff pattern:$0x75316420]
  %s580 = scalar_lea.vmem [#allocation1], 32
  %581 = vst [vmem:[%s580] ss:$2 sm:$0xff] %v177
  %s582 = scalar_lea.vmem [#allocation1], 33
  %583 = vst [vmem:[%s582] ss:$2 sm:$0xff] %v170
  %s584 = scalar_lea.vmem [#allocation1], 48
  %585 = vst [vmem:[%s584] ss:$2 sm:$0xff] %v178
  %v586 = vld.sshfl [vmem:[#allocation1 + $0x20] sm:$0xff pattern:$0x75316420]
  %v587 = vld.sshfl [vmem:[#allocation1 + $0x30] sm:$0xff pattern:$0x75316420]
  %v592 = vpack.c.bf16 %v578, %v578
  %v593 = vpack.c.bf16 %v579, %v579
  %v594 = vpack.c.bf16 %v586, %v586
  %v595 = vpack.c.bf16 %v587, %v587
  %596 = vrot.lane.b32.xlu0 %v410, 112
  %v597 = vpop.permute.xlu0 %596
  %v600 = vunpack.c.l.b16 %v569
  %v601 = vunpack.c.l.b16 %v570
  %v602 = vpack.c.b16 %v601, %v600
  %603 = vrot.lane.b32.xlu0 %v602, 112
  %v604 = vpop.permute.xlu0 %603
  %v606 = vsel %vm234, %v597, 0
  %v609 = vsel %vm234, %v604, 0
  %611 = vmatpush.bf16.xpose.msra.mxu0 0
  %612 = vmatpush.bf16.xpose.msra.mxu0 0
  %613 = vmatpush.bf16.xpose.msra.mxu0 0
  %614 = vmatpush.bf16.xpose.msra.mxu0 0
  %615 = vmatpush.bf16.xpose.msra.mxu0 0
  %616 = vmatpush.bf16.xpose.msra.mxu0 0
  %617 = vmatpush.bf16.xpose.msra.mxu0 0
  %618 = vmatpush.bf16.xpose.msra.mxu0 %v609
  %619 = vmatmul.bf16.gmra.mxu0 %v606
  %v620 = vpop.f32.mrf.mxu0
  %v621 = vadd.f32 0.0, %v620
  %v622 = vpop.f32.mrf.mxu0
  %623 = vdwg.mxu0
  %624 = vrot.lane.b32.xlu0 %v441, 112
  %v625 = vpop.permute.xlu0 %624
  %v628 = vunpack.c.l.b16 %v571
  %v629 = vunpack.c.l.b16 %v572
  %v630 = vpack.c.b16 %v629, %v628
  %631 = vrot.lane.b32.xlu0 %v630, 112
  %v632 = vpop.permute.xlu0 %631
  %v634 = vsel %vm234, %v625, 0
  %v637 = vsel %vm234, %v632, 0
  %639 = vmatpush.bf16.xpose.msra.mxu0 0
  %640 = vmatpush.bf16.xpose.msra.mxu0 0
  %641 = vmatpush.bf16.xpose.msra.mxu0 0
  %642 = vmatpush.bf16.xpose.msra.mxu0 0
  %643 = vmatpush.bf16.xpose.msra.mxu0 0
  %644 = vmatpush.bf16.xpose.msra.mxu0 0
  %645 = vmatpush.bf16.xpose.msra.mxu0 0
  %646 = vmatpush.bf16.xpose.msra.mxu0 %v637
  %647 = vmatmul.bf16.gmra.mxu0 %v634
  %v648 = vpop.f32.mrf.mxu0
  %v649 = vadd.f32 0.0, %v648
  %v650 = vpop.f32.mrf.mxu0
  %651 = vdwg.mxu0
  %v652 = vmul.f32 %v621, 0.35355338
  %v653 = vmul.f32 %v649, 0.35355338
  %v654 = vsel %vm280, %v652, -10000.0
  %v655 = vsel %vm281, %v653, -10000.0
  %v656 = vsel %vm284, %v654, -inf
  %657 = vmax.xlane.f32.xlu0 %v656
  %v658 = vpop.xlane.xlu0 %657
  %v659 = vsel %vm284, %v655, -inf
  %660 = vmax.xlane.f32.xlu0 %v659
  %v661 = vpop.xlane.xlu0 %660
  %v662 = vsub.f32 %v654, %v658
  %v663 = vsub.f32 %v655, %v661
  %v664 = vmul.f32 %v662, 1.442695
  %v665 = vpow.pop %v664
  %v666 = vmul.f32 %v663, 1.442695
  %v667 = vpow.pop %v666
  %v668 = vsel %vm284, %v665, 0.0
  %669 = vadd.xlane.f32.xlu0 %v668
  %v670 = vpop.xlane.xlu0 %669
  %v671 = vsel %vm284, %v667, 0.0
  %672 = vadd.xlane.f32.xlu0 %v671
  %v673 = vpop.xlane.xlu0 %672
  %v674 = vrcp.pop %v670
  %v675 = vrcp.pop %v673
  %v676 = vmul.f32 %v665, %v674
  %v677 = vmul.f32 %v667, %v675
  %v678 = vpack.c.bf16 %v676, %v676
  %v679 = vpack.c.bf16 %v677, %v677
  %v682 = vunpack.c.l.b16 %v592
  %v683 = vunpack.c.l.b16 %v593
  %v684 = vpack.c.b16 %v683, %v682
  %685 = vrot.lane.b32.xlu0 %v684, 80
  %v686 = vpop.permute.xlu0 %685
  %v688 = vsel %vm284, %v678, 0
  %v691 = vsel %vm319, %v686, 0
  %693 = vmatpush.bf16.msra.mxu0 0
  %694 = vmatpush.bf16.msra.mxu0 0
  %695 = vmatpush.bf16.msra.mxu0 0
  %696 = vmatpush.bf16.msra.mxu0 0
  %697 = vmatpush.bf16.msra.mxu0 0
  %698 = vmatpush.bf16.msra.mxu0 0
  %699 = vmatpush.bf16.msra.mxu0 0
  %700 = vmatpush.bf16.msra.mxu0 %v691
  %701 = vmatmul.bf16.gmra.mxu0 %v688
  %v702 = vpop.f32.mrf.mxu0
  %v703 = vadd.f32 0.0, %v702
  %v704 = vpop.f32.mrf.mxu0
  %705 = vdwg.mxu0
  %v708 = vunpack.c.l.b16 %v594
  %v709 = vunpack.c.l.b16 %v595
  %v710 = vpack.c.b16 %v709, %v708
  %711 = vrot.lane.b32.xlu0 %v710, 80
  %v712 = vpop.permute.xlu0 %711
  %v714 = vsel %vm284, %v679, 0
  %v717 = vsel %vm319, %v712, 0
  %719 = vmatpush.bf16.msra.mxu0 0
  %720 = vmatpush.bf16.msra.mxu0 0
  %721 = vmatpush.bf16.msra.mxu0 0
  %722 = vmatpush.bf16.msra.mxu0 0
  %723 = vmatpush.bf16.msra.mxu0 0
  %724 = vmatpush.bf16.msra.mxu0 0
  %725 = vmatpush.bf16.msra.mxu0 0
  %726 = vmatpush.bf16.msra.mxu0 %v717
  %727 = vmatmul.bf16.gmra.mxu0 %v714
  %v728 = vpop.f32.mrf.mxu0
  %v729 = vadd.f32 0.0, %v728
  %v730 = vpop.f32.mrf.mxu0
  %731 = vdwg.mxu0
  %732 = vst [vmem:[#allocation1] ss:$2 sm:$0xff] %v165
  %s733 = scalar_lea.vmem [#allocation1], 1
  %734 = vst [vmem:[%s733] ss:$2 sm:$0xff] %v176
  %s735 = scalar_lea.vmem [#allocation1], 16
  %736 = vst [vmem:[%s735] ss:$2 sm:$0xff] %v167
  %v737 = vld.sshfl [vmem:[#allocation1] sm:$0xff pattern:$0x75316420]
  %v738 = vld.sshfl [vmem:[#allocation1 + $0x10] sm:$0xff pattern:$0x75316420]
  %s739 = scalar_lea.vmem [#allocation1], 32
  %740 = vst [vmem:[%s739] ss:$2 sm:$0xff] %v177
  %s741 = scalar_lea.vmem [#allocation1], 33
  %742 = vst [vmem:[%s741] ss:$2 sm:$0xff] %v170
  %s743 = scalar_lea.vmem [#allocation1], 48
  %744 = vst [vmem:[%s743] ss:$2 sm:$0xff] %v178
  %v745 = vld.sshfl [vmem:[#allocation1 + $0x20] sm:$0xff pattern:$0x75316420]
  %v746 = vld.sshfl [vmem:[#allocation1 + $0x30] sm:$0xff pattern:$0x75316420]
  %v751 = vpack.c.bf16 %v737, %v737
  %v752 = vpack.c.bf16 %v738, %v738
  %v753 = vpack.c.bf16 %v745, %v745
  %v754 = vpack.c.bf16 %v746, %v746
  %755 = vst [vmem:[#allocation1] ss:$2 sm:$0xff] %v165
  %s756 = scalar_lea.vmem [#allocation1], 1
  %757 = vst [vmem:[%s756] ss:$2 sm:$0xff] %v176
  %s758 = scalar_lea.vmem [#allocation1], 16
  %759 = vst [vmem:[%s758] ss:$2 sm:$0xff] %v167
  %v760 = vld.sshfl [vmem:[#allocation1] sm:$0xff pattern:$0x75316420]
  %v761 = vld.sshfl [vmem:[#allocation1 + $0x10] sm:$0xff pattern:$0x75316420]
  %s762 = scalar_lea.vmem [#allocation1], 32
  %763 = vst [vmem:[%s762] ss:$2 sm:$0xff] %v177
  %s764 = scalar_lea.vmem [#allocation1], 33
  %765 = vst [vmem:[%s764] ss:$2 sm:$0xff] %v170
  %s766 = scalar_lea.vmem [#allocation1], 48
  %767 = vst [vmem:[%s766] ss:$2 sm:$0xff] %v178
  %v768 = vld.sshfl [vmem:[#allocation1 + $0x20] sm:$0xff pattern:$0x75316420]
  %v769 = vld.sshfl [vmem:[#allocation1 + $0x30] sm:$0xff pattern:$0x75316420]
  %v774 = vpack.c.bf16 %v760, %v760
  %v775 = vpack.c.bf16 %v761, %v761
  %v776 = vpack.c.bf16 %v768, %v768
  %v777 = vpack.c.bf16 %v769, %v769
  %778 = vrot.lane.b32.xlu0 %v410, 104
  %v779 = vpop.permute.xlu0 %778
  %v782 = vunpack.c.l.b16 %v751
  %v783 = vunpack.c.l.b16 %v752
  %v784 = vpack.c.b16 %v783, %v782
  %785 = vrot.lane.b32.xlu0 %v784, 104
  %v786 = vpop.permute.xlu0 %785
  %v788 = vsel %vm234, %v779, 0
  %v791 = vsel %vm234, %v786, 0
  %793 = vmatpush.bf16.xpose.msra.mxu0 0
  %794 = vmatpush.bf16.xpose.msra.mxu0 0
  %795 = vmatpush.bf16.xpose.msra.mxu0 0
  %796 = vmatpush.bf16.xpose.msra.mxu0 0
  %797 = vmatpush.bf16.xpose.msra.mxu0 0
  %798 = vmatpush.bf16.xpose.msra.mxu0 0
  %799 = vmatpush.bf16.xpose.msra.mxu0 0
  %800 = vmatpush.bf16.xpose.msra.mxu0 %v791
  %801 = vmatmul.bf16.gmra.mxu0 %v788
  %v802 = vpop.f32.mrf.mxu0
  %v803 = vadd.f32 0.0, %v802
  %v804 = vpop.f32.mrf.mxu0
  %805 = vdwg.mxu0
  %806 = vrot.lane.b32.xlu0 %v441, 104
  %v807 = vpop.permute.xlu0 %806
  %v810 = vunpack.c.l.b16 %v753
  %v811 = vunpack.c.l.b16 %v754
  %v812 = vpack.c.b16 %v811, %v810
  %813 = vrot.lane.b32.xlu0 %v812, 104
  %v814 = vpop.permute.xlu0 %813
  %v816 = vsel %vm234, %v807, 0
  %v819 = vsel %vm234, %v814, 0
  %821 = vmatpush.bf16.xpose.msra.mxu0 0
  %822 = vmatpush.bf16.xpose.msra.mxu0 0
  %823 = vmatpush.bf16.xpose.msra.mxu0 0
  %824 = vmatpush.bf16.xpose.msra.mxu0 0
  %825 = vmatpush.bf16.xpose.msra.mxu0 0
  %826 = vmatpush.bf16.xpose.msra.mxu0 0
  %827 = vmatpush.bf16.xpose.msra.mxu0 0
  %828 = vmatpush.bf16.xpose.msra.mxu0 %v819
  %829 = vmatmul.bf16.gmra.mxu0 %v816
  %v830 = vpop.f32.mrf.mxu0
  %v831 = vadd.f32 0.0, %v830
  %v832 = vpop.f32.mrf.mxu0
  %833 = vdwg.mxu0
  %v834 = vmul.f32 %v803, 0.35355338
  %v835 = vmul.f32 %v831, 0.35355338
  %v836 = vsel %vm280, %v834, -10000.0
  %v837 = vsel %vm281, %v835, -10000.0
  %v838 = vsel %vm284, %v836, -inf
  %839 = vmax.xlane.f32.xlu0 %v838
  %v840 = vpop.xlane.xlu0 %839
  %v841 = vsel %vm284, %v837, -inf
  %842 = vmax.xlane.f32.xlu0 %v841
  %v843 = vpop.xlane.xlu0 %842
  %v844 = vsub.f32 %v836, %v840
  %v845 = vsub.f32 %v837, %v843
  %v846 = vmul.f32 %v844, 1.442695
  %v847 = vpow.pop %v846
  %v848 = vmul.f32 %v845, 1.442695
  %v849 = vpow.pop %v848
  %v850 = vsel %vm284, %v847, 0.0
  %851 = vadd.xlane.f32.xlu0 %v850
  %v852 = vpop.xlane.xlu0 %851
  %v853 = vsel %vm284, %v849, 0.0
  %854 = vadd.xlane.f32.xlu0 %v853
  %v855 = vpop.xlane.xlu0 %854
  %v856 = vrcp.pop %v852
  %v857 = vrcp.pop %v855
  %v858 = vmul.f32 %v847, %v856
  %v859 = vmul.f32 %v849, %v857
  %v860 = vpack.c.bf16 %v858, %v858
  %v861 = vpack.c.bf16 %v859, %v859
  %v864 = vunpack.c.l.b16 %v774
  %v865 = vunpack.c.l.b16 %v775
  %v866 = vpack.c.b16 %v865, %v864
  %867 = vrot.lane.b32.xlu0 %v866, 72
  %v868 = vpop.permute.xlu0 %867
  %v870 = vsel %vm284, %v860, 0
  %v873 = vsel %vm319, %v868, 0
  %875 = vmatpush.bf16.msra.mxu0 0
  %876 = vmatpush.bf16.msra.mxu0 0
  %877 = vmatpush.bf16.msra.mxu0 0
  %878 = vmatpush.bf16.msra.mxu0 0
  %879 = vmatpush.bf16.msra.mxu0 0
  %880 = vmatpush.bf16.msra.mxu0 0
  %881 = vmatpush.bf16.msra.mxu0 0
  %882 = vmatpush.bf16.msra.mxu0 %v873
  %883 = vmatmul.bf16.gmra.mxu0 %v870
  %v884 = vpop.f32.mrf.mxu0
  %v885 = vadd.f32 0.0, %v884
  %v886 = vpop.f32.mrf.mxu0
  %887 = vdwg.mxu0
  %v890 = vunpack.c.l.b16 %v776
  %v891 = vunpack.c.l.b16 %v777
  %v892 = vpack.c.b16 %v891, %v890
  %893 = vrot.lane.b32.xlu0 %v892, 72
  %v894 = vpop.permute.xlu0 %893
  %v896 = vsel %vm284, %v861, 0
  %v899 = vsel %vm319, %v894, 0
  %901 = vmatpush.bf16.msra.mxu0 0
  %902 = vmatpush.bf16.msra.mxu0 0
  %903 = vmatpush.bf16.msra.mxu0 0
  %904 = vmatpush.bf16.msra.mxu0 0
  %905 = vmatpush.bf16.msra.mxu0 0
  %906 = vmatpush.bf16.msra.mxu0 0
  %907 = vmatpush.bf16.msra.mxu0 0
  %908 = vmatpush.bf16.msra.mxu0 %v899
  %909 = vmatmul.bf16.gmra.mxu0 %v896
  %v910 = vpop.f32.mrf.mxu0
  %v911 = vadd.f32 0.0, %v910
  %v912 = vpop.f32.mrf.mxu0
  %913 = vdwg.mxu0
  %916 = vrot.lane.b32.xlu0 %v521, 8
  %v917 = vpop.permute.xlu0 %916
  %918 = vrot.lane.b32.xlu0 %v547, 8
  %v919 = vpop.permute.xlu0 %918
  %924 = vrot.lane.b32.xlu0 %v703, 16
  %v925 = vpop.permute.xlu0 %924
  %926 = vrot.lane.b32.xlu0 %v729, 16
  %v927 = vpop.permute.xlu0 %926
  %932 = vrot.lane.b32.xlu0 %v885, 24
  %v933 = vpop.permute.xlu0 %932
  %934 = vrot.lane.b32.xlu0 %v911, 24
  %v935 = vpop.permute.xlu0 %934
  %v938 = vsel %vm234, %v333, %v917
  %v939 = vsel %vm234, %v359, %v919
  %vm940 = vcmask 130048
  %v941 = vsel %vm940, %v938, %v925
  %v942 = vsel %vm940, %v939, %v927
  %vm943 = vcmask 195584
  %v944 = vsel %vm943, %v941, %v933
  %v945 = vsel %vm943, %v942, %v935
  %v946 = vpack.c.bf16 %v945, %v944
  %v947 = vld [vmem:[%s7] sm:$0xf]
  %v948 = vld [vmem:[%s7 + $0x4] sm:$0xf]
  %v949 = vld [vmem:[%s7 + $0x8] sm:$0xf]
  %v950 = vld [vmem:[%s7 + $0xc] sm:$0xf]
  %v951 = vld [vmem:[%s8] sm:$0x1]
  %v953 = vperm.slane %v951, 0
  %v959 = vunpack.c.l.b16 %v947
  %v960 = vunpack.c.l.b16 %v948
  %v961 = vunpack.c.l.b16 %v949
  %v962 = vunpack.c.l.b16 %v950
  %v963 = vpack.c.b16 %v960, %v959
  %v964 = vpack.c.b16 %v962, %v961
  %v968 = vsel %vm98, %v946, 0
  %970 = vmatpush.bf16.msra.mxu0 0
  %971 = vmatpush.bf16.msra.mxu0 0
  %972 = vmatpush.bf16.msra.mxu0 0
  %973 = vmatpush.bf16.msra.mxu0 0
  %974 = vmatpush.bf16.msra.mxu0 0
  %975 = vmatpush.bf16.msra.mxu0 0
  %976 = vmatpush.bf16.msra.mxu0 %v964
  %977 = vmatpush.bf16.msra.mxu0 %v963
  %978 = vmatmul.bf16.gmra.mxu0 %v968
  %v979 = vpop.f32.mrf.mxu0
  %v980 = vadd.f32 %v953, %v979
  %v981 = vpop.f32.mrf.mxu0
  %v982 = vadd.f32 %v953, %v981
  %983 = vdwg.mxu0
  %v984 = vunpack.c.l.bf16 %v39
  %v985 = vunpack.c.l.bf16 %v40
  %v986 = vadd.f32 %v980, %v984
  %v987 = vadd.f32 %v982, %v985
  %v988 = vsel %vm98, %v986, 0.0
  %989 = vadd.xlane.f32.xlu0 %v988
  %v990 = vpop.xlane.xlu0 %989
  %v991 = vsel %vm98, %v987, 0.0
  %992 = vadd.xlane.f32.xlu0 %v991
  %v993 = vpop.xlane.xlu0 %992
  %v994 = vrcp.pop 32.0
  %v995 = vmul.f32 32.0, %v994
  %v996 = vsub.f32 1.0, %v995
  %v997 = vmul.f32 %v994, %v996
  %v998 = vadd.f32 %v994, %v997
  %vm999 = vweird.f32 %v994
  %v1000 = vsel %vm999, %v994, %v998
  %v1001 = vmul.f32 %v990, %v1000
  %v1002 = vmul.f32 %v993, %v1000
  %v1003 = vsub.f32 %v986, %v1001
  %v1004 = vsub.f32 %v987, %v1002
  %v1005 = vmul.f32 %v1003, %v1003
  %v1006 = vmul.f32 %v1004, %v1004
  %v1007 = vsel %vm98, %v1005, 0.0
  %1008 = vadd.xlane.f32.xlu0 %v1007
  %v1009 = vpop.xlane.xlu0 %1008
  %v1010 = vsel %vm98, %v1006, 0.0
  %1011 = vadd.xlane.f32.xlu0 %v1010
  %v1012 = vpop.xlane.xlu0 %1011
  %v1013 = vmul.f32 %v1009, %v1000
  %v1014 = vmul.f32 %v1012, %v1000
  %v1015 = vadd.f32 %v1013, 1e-12
  %v1016 = vadd.f32 %v1014, 1e-12
  %v1017 = vrsqrt.pop %v1015
  %v1018 = vmul.f32 %v1017, %v1015
  %v1019 = vmul.f32 %v1018, %v1017
  %v1020 = vmul.f32 0.5, %v1019
  %v1021 = vsub.f32 1.5, %v1020
  %v1022 = vmul.f32 %v1017, %v1021
  %vm1023 = vweird.f32 %v1015
  %vm1024 = vweird.f32 %v1017
  %vm1025 = vmor %vm1023, %vm1024
  %v1026 = vsel %vm1025, %v1017, %v1022
  %v1027 = vrsqrt.pop %v1016
  %v1028 = vmul.f32 %v1027, %v1016
  %v1029 = vmul.f32 %v1028, %v1027
  %v1030 = vmul.f32 0.5, %v1029
  %v1031 = vsub.f32 1.5, %v1030
  %v1032 = vmul.f32 %v1027, %v1031
  %vm1033 = vweird.f32 %v1016
  %vm1034 = vweird.f32 %v1027
  %vm1035 = vmor %vm1033, %vm1034
  %v1036 = vsel %vm1035, %v1027, %v1032
  %v1037 = vmul.f32 %v1003, %v1026
  %v1038 = vmul.f32 %v1004, %v1036
  %v1039 = vld [vmem:[%s9] sm:$0x1]
  %v1041 = vperm.slane %v1039, 0
  %v1043 = vmul.f32 %v1037, %v1041
  %v1044 = vmul.f32 %v1038, %v1041
  %v1045 = vld [vmem:[%s10] sm:$0x1]
  %v1047 = vperm.slane %v1045, 0
  %v1049 = vadd.f32 %v1043, %v1047
  %v1050 = vadd.f32 %v1044, %v1047
  %v1051 = vpack.c.bf16 %v1049, %v1049
  %v1052 = vpack.c.bf16 %v1050, %v1050
  %vm1053 = vcmask 257024
  %1054 = vst.msk [vmem:[%s11] sm:$0xf] %vm1053, %v1051
  %1055 = vst.msk [vmem:[%s11 + $0x4] sm:$0xf] %vm1053, %v1052
  // Predicated region
  $region46: #{decoder_forward.8} parent=0 // pred_check
    _
  $region47: #{decoder_forward.8} parent=0 // pred_check_branch
    %1057 = sbr.rel (0) target = $region49
  $region48: #{decoder_forward.8} parent=0 // pred_region
    _
  $region49: #{decoder_forward.8} parent=0 // pred_fallthru
    _
  // Predicated region
  $region50: #{decoder_forward.8} parent=0 // pred_check
    _
  $region51: #{decoder_forward.8} parent=0 // pred_check_branch
    %1059 = sbr.rel (0) target = $region53
  $region52: #{decoder_forward.8} parent=0 // pred_region
    _
  $region53: #{decoder_forward.8} parent=0 // pred_fallthru
    _

// kernel: decoder_forward.11
$region0: #{decoder_forward.11}
  #allocation0 [shape = 'u32[]', space=smem, size = 0x4, offset = 0x4, fixed_abs, tag = 'smem constant byte address 0x4 - core index']
  #allocation1 [shape = 'u32[72,128]{1,0:T(1,128)}', space=vmem, size = 0x9000, scoped, tag = 'internal scratch']
  %s0 = inlined_call_operand.vmem [shape: bf16[2,8,32], index: 0, kind: input, shape index: {}]
  %s1 = inlined_call_operand.vmem [shape: bf16[2,12,32], index: 1, kind: input, shape index: {}]
  %s2 = inlined_call_operand.vmem [shape: f32[2,8,12], index: 2, kind: input, shape index: {}]
  %s3 = inlined_call_operand.vmem [shape: bf16[32,32], index: 3, kind: input, shape index: {}]
  %s4 = inlined_call_operand.vmem [shape: f32[1,32], index: 4, kind: input, shape index: {}]
  %s5 = inlined_call_operand.vmem [shape: bf16[32,64], index: 5, kind: input, shape index: {}]
  %s6 = inlined_call_operand.vmem [shape: f32[1,64], index: 6, kind: input, shape index: {}]
  %s7 = inlined_call_operand.vmem [shape: bf16[32,32], index: 7, kind: input, shape index: {}]
  %s8 = inlined_call_operand.hbm [shape: f32[1,32], index: 8, kind: input, shape index: {}]
  %s9 = inlined_call_operand.hbm [shape: f32[1,32], index: 9, kind: input, shape index: {}]
  %s10 = inlined_call_operand.hbm [shape: f32[1,32], index: 10, kind: input, shape index: {}]
  %s11 = inlined_call_operand.vmem [shape: bf16[16,32], index: 11, kind: output, shape index: {}]
  %s12 = sld [smem:[#allocation0]]
  $region66: #{decoder_forward.11} parent=0
    _
  %s14 = ssub.s32 1, %s12
  %s15 = scalar_select 0, %s14, %s12
  $region1: #{decoder_forward.11} parent=0
    #allocation2 [shape = 'u8[512]{0}', space=vmem, size = 0x400, scoped, tag = 'input window, operand 8, single buffered']
    #allocation3 [shape = 's32[1]{0}', space=sflag, size = 0x4, scoped, tag = 'scoped memory for decoder_forward.11']
    #allocation4 [shape = 'u8[512]{0}', space=vmem, size = 0x400, scoped, tag = 'input window, operand 9, single buffered']
    #allocation5 [shape = 's32[1]{0}', space=sflag, size = 0x4, scoped, tag = 'scoped memory for decoder_forward.11']
    #allocation6 [shape = 'u8[512]{0}', space=vmem, size = 0x400, scoped, tag = 'input window, operand 10, single buffered']
    %16 = vsyncpa [#allocation3], 0
    %17 = vsyncpa [#allocation5], 0
    // Predicated region
    $region2: #{decoder_forward.11} parent=1 // pred_check
      _
    $region3: #{decoder_forward.11} parent=1 // pred_check_branch
      %19 = sbr.rel (0) target = $region5
    $region4: #{decoder_forward.11} parent=1 // pred_region
      _
    $region5: #{decoder_forward.11} parent=1 // pred_fallthru
      _
    // Predicated region
    $region6: #{decoder_forward.11} parent=1 // pred_check
      _
    $region7: #{decoder_forward.11} parent=1 // pred_check_branch
      %21 = sbr.rel (0) target = $region9
    $region8: #{decoder_forward.11} parent=1 // pred_region
      _
    $region9: #{decoder_forward.11} parent=1 // pred_fallthru
      _
    // Predicated region
    $region10: #{decoder_forward.11} parent=1 // pred_check
      _
    $region11: #{decoder_forward.11} parent=1 // pred_check_branch
      %23 = sbr.rel (0) target = $region13
    $region12: #{decoder_forward.11} parent=1 // pred_region
      _
    $region13: #{decoder_forward.11} parent=1 // pred_fallthru
      _
    // Predicated region
    $region14: #{decoder_forward.11} parent=1 // pred_check
      _
    $region15: #{decoder_forward.11} parent=1 // pred_check_branch
      %25 = sbr.rel (0) target = $region17
    $region16: #{decoder_forward.11} parent=1 // pred_region
      _
    $region17: #{decoder_forward.11} parent=1 // pred_fallthru
      _
    // Predicated region
    $region18: #{decoder_forward.11} parent=1 // pred_check
      _
    $region19: #{decoder_forward.11} parent=1 // pred_check_branch
      %27 = sbr.rel (0) target = $region21
    $region20: #{decoder_forward.11} parent=1 // pred_region
      _
    $region21: #{decoder_forward.11} parent=1 // pred_fallthru
      _
    // Predicated region
    $region22: #{decoder_forward.11} parent=1 // pred_check
      _
    $region23: #{decoder_forward.11} parent=1 // pred_check_branch
      %29 = sbr.rel (0) target = $region25
    $region24: #{decoder_forward.11} parent=1 // pred_region
      _
    $region25: #{decoder_forward.11} parent=1 // pred_fallthru
      _
    // Predicated region
    $region26: #{decoder_forward.11} parent=1 // pred_check
      _
    $region27: #{decoder_forward.11} parent=1 // pred_check_branch
      %31 = sbr.rel (0) target = $region29
    $region28: #{decoder_forward.11} parent=1 // pred_region
      _
    $region29: #{decoder_forward.11} parent=1 // pred_fallthru
      _
    // Predicated region
    $region30: #{decoder_forward.11} parent=1 // pred_check
      _
    $region31: #{decoder_forward.11} parent=1 // pred_check_branch
      %33 = sbr.rel (0) target = $region33
    $region32: #{decoder_forward.11} parent=1 // pred_region
      _
    $region33: #{decoder_forward.11} parent=1 // pred_fallthru
      _
    // Predicated region
    $region34: #{decoder_forward.11} parent=1 // pred_check
      _
    $region35: #{decoder_forward.11} parent=1 // pred_check_branch
      %35 = sbr.rel (0) target = $region37
    $region36: #{decoder_forward.11} parent=1 // pred_region
      %37 = vsyncadd [#allocation3], 0
      %s39 = sshll.u32 %s8, 4
      %s40 = int_to_ptr.hbm [resolvable:$true] %s39
      %s41 = sshll.u32 [#allocation2], 4
      %s42 = int_to_ptr.vmem [resolvable:$true] %s41
      %44 = dma.hbm_to_vmem [thread:$0]  %s40, 16, %s42, [#allocation3]
    $region37: #{decoder_forward.11} parent=1 // pred_fallthru
      _
    // Predicated region
    $region38: #{decoder_forward.11} parent=1 // pred_check
      _
    $region39: #{decoder_forward.11} parent=1 // pred_check_branch
      %46 = sbr.rel (0) target = $region41
    $region40: #{decoder_forward.11} parent=1 // pred_region
      %48 = vsyncadd [#allocation5], 0
      %s50 = sshll.u32 %s9, 4
      %s51 = int_to_ptr.hbm [resolvable:$true] %s50
      %s52 = sshll.u32 [#allocation4], 4
      %s53 = int_to_ptr.vmem [resolvable:$true] %s52
      %55 = dma.hbm_to_vmem [thread:$0]  %s51, 16, %s53, [#allocation5]
    $region41: #{decoder_forward.11} parent=1 // pred_fallthru
      _
    // Predicated region
    $region42: #{decoder_forward.11} parent=1 // pred_check
      _
    $region43: #{decoder_forward.11} parent=1 // pred_check_branch
      %57 = sbr.rel (0) target = $region45
    $region44: #{decoder_forward.11} parent=1 // pred_region
      %59 = vsyncadd [#allocation5], 0
      %s61 = sshll.u32 %s10, 4
      %s62 = int_to_ptr.hbm [resolvable:$true] %s61
      %s63 = sshll.u32 [#allocation6], 4
      %s64 = int_to_ptr.vmem [resolvable:$true] %s63
      %66 = dma.hbm_to_vmem [thread:$0]  %s62, 16, %s64, [#allocation5]
    $region45: #{decoder_forward.11} parent=1 // pred_fallthru
      _
    // Predicated region
    $region46: #{decoder_forward.11} parent=1 // pred_check
      _
    $region47: #{decoder_forward.11} parent=1 // pred_check_branch
      %68 = sbr.rel (0) target = $region49
    $region48: #{decoder_forward.11} parent=1 // pred_region
      %70 = dma.done [#allocation3], 16
    $region49: #{decoder_forward.11} parent=1 // pred_fallthru
      _
    // Predicated region
    $region50: #{decoder_forward.11} parent=1 // pred_check
      _
    $region51: #{decoder_forward.11} parent=1 // pred_check_branch
      %72 = sbr.rel (0) target = $region53
    $region52: #{decoder_forward.11} parent=1 // pred_region
      %74 = dma.done [#allocation5], 16
    $region53: #{decoder_forward.11} parent=1 // pred_fallthru
      _
    // Predicated region
    $region54: #{decoder_forward.11} parent=1 // pred_check
      _
    $region55: #{decoder_forward.11} parent=1 // pred_check_branch
      %76 = sbr.rel (0) target = $region57
    $region56: #{decoder_forward.11} parent=1 // pred_region
      %78 = dma.done [#allocation5], 16
    $region57: #{decoder_forward.11} parent=1 // pred_fallthru
      _
    %v80 = vld [vmem:[%s0] sm:$0xf]
    %v81 = vld [vmem:[%s0 + $0x4] sm:$0xf]
    %v82 = vld [vmem:[%s1] sm:$0xf]
    %v83 = vld [vmem:[%s1 + $0x4] sm:$0x3]
    %v84 = vld [vmem:[%s1 + $0x8] sm:$0xf]
    %v85 = vld [vmem:[%s1 + $0xc] sm:$0x3]
    %v90 = vrot.slane %v82, 2
    %v91 = vrot.slane %v83, 2
    %v92 = vrot.slane %v84, 2
    %v93 = vrot.slane %v85, 2
    %vm94 = vcmask 1041408
    %v97 = vsel %vm94, %v82, %v90
    %vm98 = vcmask 1043458
    %v99 = vsel %vm98, %v82, %v90
    %v101 = vrot.slane %v99, 2
    %v104 = vsel %vm94, %v83, %v91
    %v107 = vsel %vm94, %v84, %v92
    %v108 = vsel %vm98, %v84, %v92
    %v110 = vrot.slane %v108, 2
    %v113 = vsel %vm94, %v85, %v93
    %v114 = vld [vmem:[%s3] sm:$0xf]
    %v115 = vld [vmem:[%s3 + $0x4] sm:$0xf]
    %v116 = vld [vmem:[%s3 + $0x8] sm:$0xf]
    %v117 = vld [vmem:[%s3 + $0xc] sm:$0xf]
    %v118 = vld [vmem:[%s4] sm:$0x1]
    %v120 = vperm.slane %v118, 0
    %v124 = vunpack.c.l.b16 %v80
    %v125 = vunpack.c.l.b16 %v81
    %v126 = vpack.c.b16 %v125, %v124
    %v131 = vunpack.c.l.b16 %v114
    %v132 = vunpack.c.l.b16 %v115
    %v133 = vunpack.c.l.b16 %v116
    %v134 = vunpack.c.l.b16 %v117
    %v135 = vpack.c.b16 %v132, %v131
    %v136 = vpack.c.b16 %v134, %v133
    %vm139 = vcmask 261120
    %v141 = vsel %vm139, %v126, 0
    %143 = vmatpush.bf16.msra.mxu0 0
    %144 = vmatpush.bf16.msra.mxu0 0
    %145 = vmatpush.bf16.msra.mxu0 0
    %146 = vmatpush.bf16.msra.mxu0 0
    %147 = vmatpush.bf16.msra.mxu0 0
    %148 = vmatpush.bf16.msra.mxu0 0
    %149 = vmatpush.bf16.msra.mxu0 %v136
    %150 = vmatpush.bf16.msra.mxu0 %v135
    %151 = vmatmul.bf16.gmra.mxu0 %v141
    %v152 = vpop.f32.mrf.mxu0
    %v153 = vadd.f32 %v120, %v152
    %v154 = vpop.f32.mrf.mxu0
    %v155 = vadd.f32 %v120, %v154
    %156 = vdwg.mxu0
    %v157 = vld [vmem:[%s5] sm:$0xf]
    %v158 = vld [vmem:[%s5 + $0x4] sm:$0xf]
    %v159 = vld [vmem:[%s5 + $0x8] sm:$0xf]
    %v160 = vld [vmem:[%s5 + $0xc] sm:$0xf]
    %v161 = vld [vmem:[%s6] sm:$0x1]
    %v163 = vperm.slane %v161, 0
    %165 = vst [vmem:[#allocation1] ss:$4 sm:$0xff] %v97
    %s167 = scalar_lea.vmem [#allocation1], 1
    %168 = vst [vmem:[%s167] ss:$4 sm:$0xff] %v101
    %s169 = scalar_lea.vmem [#allocation1], 2
    %170 = vst [vmem:[%s169] ss:$4 sm:$0xff] %v104
    %s171 = scalar_lea.vmem [#allocation1], 3
    %172 = vst [vmem:[%s171] ss:$4 sm:$0xff] %v107
    %s174 = scalar_lea.vmem [#allocation1], 32
    %175 = vst [vmem:[%s174] ss:$4 sm:$0xff] %v110
    %s176 = scalar_lea.vmem [#allocation1], 33
    %177 = vst [vmem:[%s176] ss:$4 sm:$0xff] %v113
    %v178 = vld.sshfl [vmem:[#allocation1] sm:$0xff pattern:$0x73625140]
    %v179 = vld.sshfl [vmem:[#allocation1 + $0x20] sm:$0xff pattern:$0x73625140]
    %v184 = vunpack.c.l.b16 %v157
    %v185 = vunpack.c.l.b16 %v158
    %v186 = vunpack.c.l.b16 %v159
    %v187 = vunpack.c.l.b16 %v160
    %v188 = vpack.c.b16 %v185, %v184
    %v189 = vpack.c.b16 %v187, %v186
    %v192 = vsel %vm139, %v178, 0
    %v194 = vsel %vm139, %v179, 0
    %196 = vmatpush.bf16.msra.mxu0 0
    %197 = vmatpush.bf16.msra.mxu0 0
    %198 = vmatpush.bf16.msra.mxu0 0
    %199 = vmatpush.bf16.msra.mxu0 0
    %200 = vmatpush.bf16.msra.mxu0 0
    %201 = vmatpush.bf16.msra.mxu0 0
    %202 = vmatpush.bf16.msra.mxu0 %v189
    %203 = vmatpush.bf16.msra.mxu0 %v188
    %204 = vmatmul.bf16.gmra.mxu0 %v192
    %v205 = vpop.f32.mrf.mxu0
    %v206 = vadd.f32 %v163, %v205
    %v207 = vpop.f32.mrf.mxu0
    %v208 = vadd.f32 %v163, %v207
    %209 = vmatmul.bf16.gmra.mxu0 %v194
    %v210 = vpop.f32.mrf.mxu0
    %v211 = vadd.f32 %v163, %v210
    %v212 = vpop.f32.mrf.mxu0
    %213 = vdwg.mxu0
    %v217 = vrot.slane %v206, 4
    %v218 = vrot.slane %v208, 4
    %v219 = vrot.slane %v211, 4
    %v220 = vld [vmem:[%s2] sm:$0xff]
    %v221 = vld [vmem:[%s2 + $0x8] sm:$0xff]
    %v222 = vpack.c.bf16 %v153, %v153
    %v223 = vpack.c.bf16 %v155, %v155
    %224 = vst [vmem:[#allocation1] ss:$2 sm:$0xff] %v206
    %s225 = scalar_lea.vmem [#allocation1], 1
    %226 = vst [vmem:[%s225] ss:$2 sm:$0xff] %v217
    %s227 = scalar_lea.vmem [#allocation1], 16
    %228 = vst [vmem:[%s227] ss:$2 sm:$0xff] %v208
    %v229 = vld.sshfl [vmem:[#allocation1] sm:$0xff pattern:$0x75316420]
    %v230 = vld.sshfl [vmem:[#allocation1 + $0x10] sm:$0xff pattern:$0x75316420]
    %s231 = scalar_lea.vmem [#allocation1], 32
    %232 = vst [vmem:[%s231] ss:$2 sm:$0xff] %v218
    %s233 = scalar_lea.vmem [#allocation1], 33
    %234 = vst [vmem:[%s233] ss:$2 sm:$0xff] %v211
    %s235 = scalar_lea.vmem [#allocation1], 48
    %236 = vst [vmem:[%s235] ss:$2 sm:$0xff] %v219
    %v237 = vld.sshfl [vmem:[#allocation1 + $0x20] sm:$0xff pattern:$0x75316420]
    %v238 = vld.sshfl [vmem:[#allocation1 + $0x30] sm:$0xff pattern:$0x75316420]
    %v243 = vpack.c.bf16 %v229, %v229
    %v244 = vpack.c.bf16 %v230, %v230
    %v245 = vpack.c.bf16 %v237, %v237
    %v246 = vpack.c.bf16 %v238, %v238
    %247 = vst [vmem:[#allocation1] ss:$2 sm:$0xff] %v206
    %s248 = scalar_lea.vmem [#allocation1], 1
    %249 = vst [vmem:[%s248] ss:$2 sm:$0xff] %v217
    %s250 = scalar_lea.vmem [#allocation1], 16
    %251 = vst [vmem:[%s250] ss:$2 sm:$0xff] %v208
    %v252 = vld.sshfl [vmem:[#allocation1] sm:$0xff pattern:$0x75316420]
    %v253 = vld.sshfl [vmem:[#allocation1 + $0x10] sm:$0xff pattern:$0x75316420]
    %s254 = scalar_lea.vmem [#allocation1], 32
    %255 = vst [vmem:[%s254] ss:$2 sm:$0xff] %v218
    %s256 = scalar_lea.vmem [#allocation1], 33
    %257 = vst [vmem:[%s256] ss:$2 sm:$0xff] %v211
    %s258 = scalar_lea.vmem [#allocation1], 48
    %259 = vst [vmem:[%s258] ss:$2 sm:$0xff] %v219
    %v260 = vld.sshfl [vmem:[#allocation1 + $0x20] sm:$0xff pattern:$0x75316420]
    %v261 = vld.sshfl [vmem:[#allocation1 + $0x30] sm:$0xff pattern:$0x75316420]
    %v266 = vpack.c.bf16 %v252, %v252
    %v267 = vpack.c.bf16 %v253, %v253
    %v268 = vpack.c.bf16 %v260, %v260
    %v269 = vpack.c.bf16 %v261, %v261
    %v272 = vunpack.c.l.b16 %v243
    %v273 = vunpack.c.l.b16 %v244
    %v274 = vpack.c.b16 %v273, %v272
    %vm275 = vcmask 64512
    %v277 = vsel %vm275, %v222, 0
    %v280 = vsel %vm275, %v274, 0
    %282 = vmatpush.bf16.xpose.msra.mxu0 0
    %283 = vmatpush.bf16.xpose.msra.mxu0 0
    %284 = vmatpush.bf16.xpose.msra.mxu0 0
    %285 = vmatpush.bf16.xpose.msra.mxu0 0
    %286 = vmatpush.bf16.xpose.msra.mxu0 0
    %287 = vmatpush.bf16.xpose.msra.mxu0 0
    %288 = vmatpush.bf16.xpose.msra.mxu0 0
    %289 = vmatpush.bf16.xpose.msra.mxu0 %v280
    %290 = vmatmul.bf16.gmra.mxu0 %v277
    %v291 = vpop.f32.mrf.mxu0
    %v292 = vadd.f32 0.0, %v291
    %v293 = vpop.f32.mrf.mxu0
    %294 = vdwg.mxu0
    %v297 = vunpack.c.l.b16 %v245
    %v298 = vunpack.c.l.b16 %v246
    %v299 = vpack.c.b16 %v298, %v297
    %v301 = vsel %vm275, %v223, 0
    %v304 = vsel %vm275, %v299, 0
    %306 = vmatpush.bf16.xpose.msra.mxu0 0
    %307 = vmatpush.bf16.xpose.msra.mxu0 0
    %308 = vmatpush.bf16.xpose.msra.mxu0 0
    %309 = vmatpush.bf16.xpose.msra.mxu0 0
    %310 = vmatpush.bf16.xpose.msra.mxu0 0
    %311 = vmatpush.bf16.xpose.msra.mxu0 0
    %312 = vmatpush.bf16.xpose.msra.mxu0 0
    %313 = vmatpush.bf16.xpose.msra.mxu0 %v304
    %314 = vmatmul.bf16.gmra.mxu0 %v301
    %v315 = vpop.f32.mrf.mxu0
    %v316 = vadd.f32 0.0, %v315
    %v317 = vpop.f32.mrf.mxu0
    %318 = vdwg.mxu0
    %v319 = vmul.f32 %v292, 0.35355338
    %v320 = vmul.f32 %v316, 0.35355338
    %vm321 = vcmp.gt.f32.partialorder %v220, 0.5
    %vm322 = vcmp.gt.f32.partialorder %v221, 0.5
    %v323 = vsel %vm321, %v319, -10000.0
    %v324 = vsel %vm322, %v320, -10000.0
    %vm325 = vcmask 97280
    %v326 = vsel %vm325, %v323, -inf
    %327 = vmax.xlane.f32.xlu0 %v326
    %v328 = vpop.xlane.xlu0 %327
    %v329 = vsel %vm325, %v324, -inf
    %330 = vmax.xlane.f32.xlu0 %v329
    %v331 = vpop.xlane.xlu0 %330
    %v332 = vsub.f32 %v323, %v328
    %v333 = vsub.f32 %v324, %v331
    %v334 = vmul.f32 %v332, 1.442695
    %v335 = vpow.pop %v334
    %v336 = vmul.f32 %v333, 1.442695
    %v337 = vpow.pop %v336
    %v338 = vsel %vm325, %v335, 0.0
    %339 = vadd.xlane.f32.xlu0 %v338
    %v340 = vpop.xlane.xlu0 %339
    %v341 = vsel %vm325, %v337, 0.0
    %342 = vadd.xlane.f32.xlu0 %v341
    %v343 = vpop.xlane.xlu0 %342
    %v344 = vrcp.pop %v340
    %v345 = vrcp.pop %v343
    %v346 = vmul.f32 %v335, %v344
    %v347 = vmul.f32 %v337, %v345
    %v348 = vpack.c.bf16 %v346, %v346
    %v349 = vpack.c.bf16 %v347, %v347
    %v352 = vunpack.c.l.b16 %v266
    %v353 = vunpack.c.l.b16 %v267
    %v354 = vpack.c.b16 %v353, %v352
    %355 = vrot.lane.b32.xlu0 %v354, 96
    %v356 = vpop.permute.xlu0 %355
    %v358 = vsel %vm325, %v348, 0
    %vm360 = vcmask 1045504
    %v362 = vsel %vm360, %v356, 0
    %364 = vmatpush.bf16.msra.mxu0 0
    %365 = vmatpush.bf16.msra.mxu0 0
    %366 = vmatpush.bf16.msra.mxu0 0
    %367 = vmatpush.bf16.msra.mxu0 0
    %368 = vmatpush.bf16.msra.mxu0 0
    %369 = vmatpush.bf16.msra.mxu0 0
    %370 = vmatpush.bf16.msra.mxu0 0
    %371 = vmatpush.bf16.msra.mxu0 %v362
    %372 = vmatmul.bf16.gmra.mxu0 %v358
    %v373 = vpop.f32.mrf.mxu0
    %v374 = vadd.f32 0.0, %v373
    %v375 = vpop.f32.mrf.mxu0
    %376 = vdwg.mxu0
    %v379 = vunpack.c.l.b16 %v268
    %v380 = vunpack.c.l.b16 %v269
    %v381 = vpack.c.b16 %v380, %v379
    %382 = vrot.lane.b32.xlu0 %v381, 96
    %v383 = vpop.permute.xlu0 %382
    %v385 = vsel %vm325, %v349, 0
    %v388 = vsel %vm360, %v383, 0
    %390 = vmatpush.bf16.msra.mxu0 0
    %391 = vmatpush.bf16.msra.mxu0 0
    %392 = vmatpush.bf16.msra.mxu0 0
    %393 = vmatpush.bf16.msra.mxu0 0
    %394 = vmatpush.bf16.msra.mxu0 0
    %395 = vmatpush.bf16.msra.mxu0 0
    %396 = vmatpush.bf16.msra.mxu0 0
    %397 = vmatpush.bf16.msra.mxu0 %v388
    %398 = vmatmul.bf16.gmra.mxu0 %v385
    %v399 = vpop.f32.mrf.mxu0
    %v400 = vadd.f32 0.0, %v399
    %v401 = vpop.f32.mrf.mxu0
    %402 = vdwg.mxu0
    %403 = vst [vmem:[#allocation1] ss:$2 sm:$0xff] %v206
    %s404 = scalar_lea.vmem [#allocation1], 1
    %405 = vst [vmem:[%s404] ss:$2 sm:$0xff] %v217
    %s406 = scalar_lea.vmem [#allocation1], 16
    %407 = vst [vmem:[%s406] ss:$2 sm:$0xff] %v208
    %v408 = vld.sshfl [vmem:[#allocation1] sm:$0xff pattern:$0x75316420]
    %v409 = vld.sshfl [vmem:[#allocation1 + $0x10] sm:$0xff pattern:$0x75316420]
    %s410 = scalar_lea.vmem [#allocation1], 32
    %411 = vst [vmem:[%s410] ss:$2 sm:$0xff] %v218
    %s412 = scalar_lea.vmem [#allocation1], 33
    %413 = vst [vmem:[%s412] ss:$2 sm:$0xff] %v211
    %s414 = scalar_lea.vmem [#allocation1], 48
    %415 = vst [vmem:[%s414] ss:$2 sm:$0xff] %v219
    %v416 = vld.sshfl [vmem:[#allocation1 + $0x20] sm:$0xff pattern:$0x75316420]
    %v417 = vld.sshfl [vmem:[#allocation1 + $0x30] sm:$0xff pattern:$0x75316420]
    %v422 = vpack.c.bf16 %v408, %v408
    %v423 = vpack.c.bf16 %v409, %v409
    %v424 = vpack.c.bf16 %v416, %v416
    %v425 = vpack.c.bf16 %v417, %v417
    %426 = vst [vmem:[#allocation1] ss:$2 sm:$0xff] %v206
    %s427 = scalar_lea.vmem [#allocation1], 1
    %428 = vst [vmem:[%s427] ss:$2 sm:$0xff] %v217
    %s429 = scalar_lea.vmem [#allocation1], 16
    %430 = vst [vmem:[%s429] ss:$2 sm:$0xff] %v208
    %v431 = vld.sshfl [vmem:[#allocation1] sm:$0xff pattern:$0x75316420]
    %v432 = vld.sshfl [vmem:[#allocation1 + $0x10] sm:$0xff pattern:$0x75316420]
    %s433 = scalar_lea.vmem [#allocation1], 32
    %434 = vst [vmem:[%s433] ss:$2 sm:$0xff] %v218
    %s435 = scalar_lea.vmem [#allocation1], 33
    %436 = vst [vmem:[%s435] ss:$2 sm:$0xff] %v211
    %s437 = scalar_lea.vmem [#allocation1], 48
    %438 = vst [vmem:[%s437] ss:$2 sm:$0xff] %v219
    %v439 = vld.sshfl [vmem:[#allocation1 + $0x20] sm:$0xff pattern:$0x75316420]
    %v440 = vld.sshfl [vmem:[#allocation1 + $0x30] sm:$0xff pattern:$0x75316420]
    %v445 = vpack.c.bf16 %v431, %v431
    %v446 = vpack.c.bf16 %v432, %v432
    %v447 = vpack.c.bf16 %v439, %v439
    %v448 = vpack.c.bf16 %v440, %v440
    %v450 = vunpack.c.l.b16 %v222
    %v451 = vpack.c.b16 %v450, %v450
    %452 = vrot.lane.b32.xlu0 %v451, 120
    %v453 = vpop.permute.xlu0 %452
    %v456 = vunpack.c.l.b16 %v422
    %v457 = vunpack.c.l.b16 %v423
    %v458 = vpack.c.b16 %v457, %v456
    %459 = vrot.lane.b32.xlu0 %v458, 120
    %v460 = vpop.permute.xlu0 %459
    %v462 = vsel %vm275, %v453, 0
    %v465 = vsel %vm275, %v460, 0
    %467 = vmatpush.bf16.xpose.msra.mxu0 0
    %468 = vmatpush.bf16.xpose.msra.mxu0 0
    %469 = vmatpush.bf16.xpose.msra.mxu0 0
    %470 = vmatpush.bf16.xpose.msra.mxu0 0
    %471 = vmatpush.bf16.xpose.msra.mxu0 0
    %472 = vmatpush.bf16.xpose.msra.mxu0 0
    %473 = vmatpush.bf16.xpose.msra.mxu0 0
    %474 = vmatpush.bf16.xpose.msra.mxu0 %v465
    %475 = vmatmul.bf16.gmra.mxu0 %v462
    %v476 = vpop.f32.mrf.mxu0
    %v477 = vadd.f32 0.0, %v476
    %v478 = vpop.f32.mrf.mxu0
    %479 = vdwg.mxu0
    %v481 = vunpack.c.l.b16 %v223
    %v482 = vpack.c.b16 %v481, %v481
    %483 = vrot.lane.b32.xlu0 %v482, 120
    %v484 = vpop.permute.xlu0 %483
    %v487 = vunpack.c.l.b16 %v424
    %v488 = vunpack.c.l.b16 %v425
    %v489 = vpack.c.b16 %v488, %v487
    %490 = vrot.lane.b32.xlu0 %v489, 120
    %v491 = vpop.permute.xlu0 %490
    %v493 = vsel %vm275, %v484, 0
    %v496 = vsel %vm275, %v491, 0
    %498 = vmatpush.bf16.xpose.msra.mxu0 0
    %499 = vmatpush.bf16.xpose.msra.mxu0 0
    %500 = vmatpush.bf16.xpose.msra.mxu0 0
    %501 = vmatpush.bf16.xpose.msra.mxu0 0
    %502 = vmatpush.bf16.xpose.msra.mxu0 0
    %503 = vmatpush.bf16.xpose.msra.mxu0 0
    %504 = vmatpush.bf16.xpose.msra.mxu0 0
    %505 = vmatpush.bf16.xpose.msra.mxu0 %v496
    %506 = vmatmul.bf16.gmra.mxu0 %v493
    %v507 = vpop.f32.mrf.mxu0
    %v508 = vadd.f32 0.0, %v507
    %v509 = vpop.f32.mrf.mxu0
    %510 = vdwg.mxu0
    %v511 = vmul.f32 %v477, 0.35355338
    %v512 = vmul.f32 %v508, 0.35355338
    %v513 = vsel %vm321, %v511, -10000.0
    %v514 = vsel %vm322, %v512, -10000.0
    %v515 = vsel %vm325, %v513, -inf
    %516 = vmax.xlane.f32.xlu0 %v515
    %v517 = vpop.xlane.xlu0 %516
    %v518 = vsel %vm325, %v514, -inf
    %519 = vmax.xlane.f32.xlu0 %v518
    %v520 = vpop.xlane.xlu0 %519
    %v521 = vsub.f32 %v513, %v517
    %v522 = vsub.f32 %v514, %v520
    %v523 = vmul.f32 %v521, 1.442695
    %v524 = vpow.pop %v523
    %v525 = vmul.f32 %v522, 1.442695
    %v526 = vpow.pop %v525
    %v527 = vsel %vm325, %v524, 0.0
    %528 = vadd.xlane.f32.xlu0 %v527
    %v529 = vpop.xlane.xlu0 %528
    %v530 = vsel %vm325, %v526, 0.0
    %531 = vadd.xlane.f32.xlu0 %v530
    %v532 = vpop.xlane.xlu0 %531
    %v533 = vrcp.pop %v529
    %v534 = vrcp.pop %v532
    %v535 = vmul.f32 %v524, %v533
    %v536 = vmul.f32 %v526, %v534
    %v537 = vpack.c.bf16 %v535, %v535
    %v538 = vpack.c.bf16 %v536, %v536
    %v541 = vunpack.c.l.b16 %v445
    %v542 = vunpack.c.l.b16 %v446
    %v543 = vpack.c.b16 %v542, %v541
    %544 = vrot.lane.b32.xlu0 %v543, 88
    %v545 = vpop.permute.xlu0 %544
    %v547 = vsel %vm325, %v537, 0
    %v550 = vsel %vm360, %v545, 0
    %552 = vmatpush.bf16.msra.mxu0 0
    %553 = vmatpush.bf16.msra.mxu0 0
    %554 = vmatpush.bf16.msra.mxu0 0
    %555 = vmatpush.bf16.msra.mxu0 0
    %556 = vmatpush.bf16.msra.mxu0 0
    %557 = vmatpush.bf16.msra.mxu0 0
    %558 = vmatpush.bf16.msra.mxu0 0
    %559 = vmatpush.bf16.msra.mxu0 %v550
    %560 = vmatmul.bf16.gmra.mxu0 %v547
    %v561 = vpop.f32.mrf.mxu0
    %v562 = vadd.f32 0.0, %v561
    %v563 = vpop.f32.mrf.mxu0
    %564 = vdwg.mxu0
    %v567 = vunpack.c.l.b16 %v447
    %v568 = vunpack.c.l.b16 %v448
    %v569 = vpack.c.b16 %v568, %v567
    %570 = vrot.lane.b32.xlu0 %v569, 88
    %v571 = vpop.permute.xlu0 %570
    %v573 = vsel %vm325, %v538, 0
    %v576 = vsel %vm360, %v571, 0
    %578 = vmatpush.bf16.msra.mxu0 0
    %579 = vmatpush.bf16.msra.mxu0 0
    %580 = vmatpush.bf16.msra.mxu0 0
    %581 = vmatpush.bf16.msra.mxu0 0
    %582 = vmatpush.bf16.msra.mxu0 0
    %583 = vmatpush.bf16.msra.mxu0 0
    %584 = vmatpush.bf16.msra.mxu0 0
    %585 = vmatpush.bf16.msra.mxu0 %v576
    %586 = vmatmul.bf16.gmra.mxu0 %v573
    %v587 = vpop.f32.mrf.mxu0
    %v588 = vadd.f32 0.0, %v587
    %v589 = vpop.f32.mrf.mxu0
    %590 = vdwg.mxu0
    %591 = vst [vmem:[#allocation1] ss:$2 sm:$0xff] %v206
    %s592 = scalar_lea.vmem [#allocation1], 1
    %593 = vst [vmem:[%s592] ss:$2 sm:$0xff] %v217
    %s594 = scalar_lea.vmem [#allocation1], 16
    %595 = vst [vmem:[%s594] ss:$2 sm:$0xff] %v208
    %v596 = vld.sshfl [vmem:[#allocation1] sm:$0xff pattern:$0x75316420]
    %v597 = vld.sshfl [vmem:[#allocation1 + $0x10] sm:$0xff pattern:$0x75316420]
    %s598 = scalar_lea.vmem [#allocation1], 32
    %599 = vst [vmem:[%s598] ss:$2 sm:$0xff] %v218
    %s600 = scalar_lea.vmem [#allocation1], 33
    %601 = vst [vmem:[%s600] ss:$2 sm:$0xff] %v211
    %s602 = scalar_lea.vmem [#allocation1], 48
    %603 = vst [vmem:[%s602] ss:$2 sm:$0xff] %v219
    %v604 = vld.sshfl [vmem:[#allocation1 + $0x20] sm:$0xff pattern:$0x75316420]
    %v605 = vld.sshfl [vmem:[#allocation1 + $0x30] sm:$0xff pattern:$0x75316420]
    %v610 = vpack.c.bf16 %v596, %v596
    %v611 = vpack.c.bf16 %v597, %v597
    %v612 = vpack.c.bf16 %v604, %v604
    %v613 = vpack.c.bf16 %v605, %v605
    %614 = vst [vmem:[#allocation1] ss:$2 sm:$0xff] %v206
    %s615 = scalar_lea.vmem [#allocation1], 1
    %616 = vst [vmem:[%s615] ss:$2 sm:$0xff] %v217
    %s617 = scalar_lea.vmem [#allocation1], 16
    %618 = vst [vmem:[%s617] ss:$2 sm:$0xff] %v208
    %v619 = vld.sshfl [vmem:[#allocation1] sm:$0xff pattern:$0x75316420]
    %v620 = vld.sshfl [vmem:[#allocation1 + $0x10] sm:$0xff pattern:$0x75316420]
    %s621 = scalar_lea.vmem [#allocation1], 32
    %622 = vst [vmem:[%s621] ss:$2 sm:$0xff] %v218
    %s623 = scalar_lea.vmem [#allocation1], 33
    %624 = vst [vmem:[%s623] ss:$2 sm:$0xff] %v211
    %s625 = scalar_lea.vmem [#allocation1], 48
    %626 = vst [vmem:[%s625] ss:$2 sm:$0xff] %v219
    %v627 = vld.sshfl [vmem:[#allocation1 + $0x20] sm:$0xff pattern:$0x75316420]
    %v628 = vld.sshfl [vmem:[#allocation1 + $0x30] sm:$0xff pattern:$0x75316420]
    %v633 = vpack.c.bf16 %v619, %v619
    %v634 = vpack.c.bf16 %v620, %v620
    %v635 = vpack.c.bf16 %v627, %v627
    %v636 = vpack.c.bf16 %v628, %v628
    %637 = vrot.lane.b32.xlu0 %v451, 112
    %v638 = vpop.permute.xlu0 %637
    %v641 = vunpack.c.l.b16 %v610
    %v642 = vunpack.c.l.b16 %v611
    %v643 = vpack.c.b16 %v642, %v641
    %644 = vrot.lane.b32.xlu0 %v643, 112
    %v645 = vpop.permute.xlu0 %644
    %v647 = vsel %vm275, %v638, 0
    %v650 = vsel %vm275, %v645, 0
    %652 = vmatpush.bf16.xpose.msra.mxu0 0
    %653 = vmatpush.bf16.xpose.msra.mxu0 0
    %654 = vmatpush.bf16.xpose.msra.mxu0 0
    %655 = vmatpush.bf16.xpose.msra.mxu0 0
    %656 = vmatpush.bf16.xpose.msra.mxu0 0
    %657 = vmatpush.bf16.xpose.msra.mxu0 0
    %658 = vmatpush.bf16.xpose.msra.mxu0 0
    %659 = vmatpush.bf16.xpose.msra.mxu0 %v650
    %660 = vmatmul.bf16.gmra.mxu0 %v647
    %v661 = vpop.f32.mrf.mxu0
    %v662 = vadd.f32 0.0, %v661
    %v663 = vpop.f32.mrf.mxu0
    %664 = vdwg.mxu0
    %665 = vrot.lane.b32.xlu0 %v482, 112
    %v666 = vpop.permute.xlu0 %665
    %v669 = vunpack.c.l.b16 %v612
    %v670 = vunpack.c.l.b16 %v613
    %v671 = vpack.c.b16 %v670, %v669
    %672 = vrot.lane.b32.xlu0 %v671, 112
    %v673 = vpop.permute.xlu0 %672
    %v675 = vsel %vm275, %v666, 0
    %v678 = vsel %vm275, %v673, 0
    %680 = vmatpush.bf16.xpose.msra.mxu0 0
    %681 = vmatpush.bf16.xpose.msra.mxu0 0
    %682 = vmatpush.bf16.xpose.msra.mxu0 0
    %683 = vmatpush.bf16.xpose.msra.mxu0 0
    %684 = vmatpush.bf16.xpose.msra.mxu0 0
    %685 = vmatpush.bf16.xpose.msra.mxu0 0
    %686 = vmatpush.bf16.xpose.msra.mxu0 0
    %687 = vmatpush.bf16.xpose.msra.mxu0 %v678
    %688 = vmatmul.bf16.gmra.mxu0 %v675
    %v689 = vpop.f32.mrf.mxu0
    %v690 = vadd.f32 0.0, %v689
    %v691 = vpop.f32.mrf.mxu0
    %692 = vdwg.mxu0
    %v693 = vmul.f32 %v662, 0.35355338
    %v694 = vmul.f32 %v690, 0.35355338
    %v695 = vsel %vm321, %v693, -10000.0
    %v696 = vsel %vm322, %v694, -10000.0
    %v697 = vsel %vm325, %v695, -inf
    %698 = vmax.xlane.f32.xlu0 %v697
    %v699 = vpop.xlane.xlu0 %698
    %v700 = vsel %vm325, %v696, -inf
    %701 = vmax.xlane.f32.xlu0 %v700
    %v702 = vpop.xlane.xlu0 %701
    %v703 = vsub.f32 %v695, %v699
    %v704 = vsub.f32 %v696, %v702
    %v705 = vmul.f32 %v703, 1.442695
    %v706 = vpow.pop %v705
    %v707 = vmul.f32 %v704, 1.442695
    %v708 = vpow.pop %v707
    %v709 = vsel %vm325, %v706, 0.0
    %710 = vadd.xlane.f32.xlu0 %v709
    %v711 = vpop.xlane.xlu0 %710
    %v712 = vsel %vm325, %v708, 0.0
    %713 = vadd.xlane.f32.xlu0 %v712
    %v714 = vpop.xlane.xlu0 %713
    %v715 = vrcp.pop %v711
    %v716 = vrcp.pop %v714
    %v717 = vmul.f32 %v706, %v715
    %v718 = vmul.f32 %v708, %v716
    %v719 = vpack.c.bf16 %v717, %v717
    %v720 = vpack.c.bf16 %v718, %v718
    %v723 = vunpack.c.l.b16 %v633
    %v724 = vunpack.c.l.b16 %v634
    %v725 = vpack.c.b16 %v724, %v723
    %726 = vrot.lane.b32.xlu0 %v725, 80
    %v727 = vpop.permute.xlu0 %726
    %v729 = vsel %vm325, %v719, 0
    %v732 = vsel %vm360, %v727, 0
    %734 = vmatpush.bf16.msra.mxu0 0
    %735 = vmatpush.bf16.msra.mxu0 0
    %736 = vmatpush.bf16.msra.mxu0 0
    %737 = vmatpush.bf16.msra.mxu0 0
    %738 = vmatpush.bf16.msra.mxu0 0
    %739 = vmatpush.bf16.msra.mxu0 0
    %740 = vmatpush.bf16.msra.mxu0 0
    %741 = vmatpush.bf16.msra.mxu0 %v732
    %742 = vmatmul.bf16.gmra.mxu0 %v729
    %v743 = vpop.f32.mrf.mxu0
    %v744 = vadd.f32 0.0, %v743
    %v745 = vpop.f32.mrf.mxu0
    %746 = vdwg.mxu0
    %v749 = vunpack.c.l.b16 %v635
    %v750 = vunpack.c.l.b16 %v636
    %v751 = vpack.c.b16 %v750, %v749
    %752 = vrot.lane.b32.xlu0 %v751, 80
    %v753 = vpop.permute.xlu0 %752
    %v755 = vsel %vm325, %v720, 0
    %v758 = vsel %vm360, %v753, 0
    %760 = vmatpush.bf16.msra.mxu0 0
    %761 = vmatpush.bf16.msra.mxu0 0
    %762 = vmatpush.bf16.msra.mxu0 0
    %763 = vmatpush.bf16.msra.mxu0 0
    %764 = vmatpush.bf16.msra.mxu0 0
    %765 = vmatpush.bf16.msra.mxu0 0
    %766 = vmatpush.bf16.msra.mxu0 0
    %767 = vmatpush.bf16.msra.mxu0 %v758
    %768 = vmatmul.bf16.gmra.mxu0 %v755
    %v769 = vpop.f32.mrf.mxu0
    %v770 = vadd.f32 0.0, %v769
    %v771 = vpop.f32.mrf.mxu0
    %772 = vdwg.mxu0
    %773 = vst [vmem:[#allocation1] ss:$2 sm:$0xff] %v206
    %s774 = scalar_lea.vmem [#allocation1], 1
    %775 = vst [vmem:[%s774] ss:$2 sm:$0xff] %v217
    %s776 = scalar_lea.vmem [#allocation1], 16
    %777 = vst [vmem:[%s776] ss:$2 sm:$0xff] %v208
    %v778 = vld.sshfl [vmem:[#allocation1] sm:$0xff pattern:$0x75316420]
    %v779 = vld.sshfl [vmem:[#allocation1 + $0x10] sm:$0xff pattern:$0x75316420]
    %s780 = scalar_lea.vmem [#allocation1], 32
    %781 = vst [vmem:[%s780] ss:$2 sm:$0xff] %v218
    %s782 = scalar_lea.vmem [#allocation1], 33
    %783 = vst [vmem:[%s782] ss:$2 sm:$0xff] %v211
    %s784 = scalar_lea.vmem [#allocation1], 48
    %785 = vst [vmem:[%s784] ss:$2 sm:$0xff] %v219
    %v786 = vld.sshfl [vmem:[#allocation1 + $0x20] sm:$0xff pattern:$0x75316420]
    %v787 = vld.sshfl [vmem:[#allocation1 + $0x30] sm:$0xff pattern:$0x75316420]
    %v792 = vpack.c.bf16 %v778, %v778
    %v793 = vpack.c.bf16 %v779, %v779
    %v794 = vpack.c.bf16 %v786, %v786
    %v795 = vpack.c.bf16 %v787, %v787
    %796 = vst [vmem:[#allocation1] ss:$2 sm:$0xff] %v206
    %s797 = scalar_lea.vmem [#allocation1], 1
    %798 = vst [vmem:[%s797] ss:$2 sm:$0xff] %v217
    %s799 = scalar_lea.vmem [#allocation1], 16
    %800 = vst [vmem:[%s799] ss:$2 sm:$0xff] %v208
    %v801 = vld.sshfl [vmem:[#allocation1] sm:$0xff pattern:$0x75316420]
    %v802 = vld.sshfl [vmem:[#allocation1 + $0x10] sm:$0xff pattern:$0x75316420]
    %s803 = scalar_lea.vmem [#allocation1], 32
    %804 = vst [vmem:[%s803] ss:$2 sm:$0xff] %v218
    %s805 = scalar_lea.vmem [#allocation1], 33
    %806 = vst [vmem:[%s805] ss:$2 sm:$0xff] %v211
    %s807 = scalar_lea.vmem [#allocation1], 48
    %808 = vst [vmem:[%s807] ss:$2 sm:$0xff] %v219
    %v809 = vld.sshfl [vmem:[#allocation1 + $0x20] sm:$0xff pattern:$0x75316420]
    %v810 = vld.sshfl [vmem:[#allocation1 + $0x30] sm:$0xff pattern:$0x75316420]
    %v815 = vpack.c.bf16 %v801, %v801
    %v816 = vpack.c.bf16 %v802, %v802
    %v817 = vpack.c.bf16 %v809, %v809
    %v818 = vpack.c.bf16 %v810, %v810
    %819 = vrot.lane.b32.xlu0 %v451, 104
    %v820 = vpop.permute.xlu0 %819
    %v823 = vunpack.c.l.b16 %v792
    %v824 = vunpack.c.l.b16 %v793
    %v825 = vpack.c.b16 %v824, %v823
    %826 = vrot.lane.b32.xlu0 %v825, 104
    %v827 = vpop.permute.xlu0 %826
    %v829 = vsel %vm275, %v820, 0
    %v832 = vsel %vm275, %v827, 0
    %834 = vmatpush.bf16.xpose.msra.mxu0 0
    %835 = vmatpush.bf16.xpose.msra.mxu0 0
    %836 = vmatpush.bf16.xpose.msra.mxu0 0
    %837 = vmatpush.bf16.xpose.msra.mxu0 0
    %838 = vmatpush.bf16.xpose.msra.mxu0 0
    %839 = vmatpush.bf16.xpose.msra.mxu0 0
    %840 = vmatpush.bf16.xpose.msra.mxu0 0
    %841 = vmatpush.bf16.xpose.msra.mxu0 %v832
    %842 = vmatmul.bf16.gmra.mxu0 %v829
    %v843 = vpop.f32.mrf.mxu0
    %v844 = vadd.f32 0.0, %v843
    %v845 = vpop.f32.mrf.mxu0
    %846 = vdwg.mxu0
    %847 = vrot.lane.b32.xlu0 %v482, 104
    %v848 = vpop.permute.xlu0 %847
    %v851 = vunpack.c.l.b16 %v794
    %v852 = vunpack.c.l.b16 %v795
    %v853 = vpack.c.b16 %v852, %v851
    %854 = vrot.lane.b32.xlu0 %v853, 104
    %v855 = vpop.permute.xlu0 %854
    %v857 = vsel %vm275, %v848, 0
    %v860 = vsel %vm275, %v855, 0
    %862 = vmatpush.bf16.xpose.msra.mxu0 0
    %863 = vmatpush.bf16.xpose.msra.mxu0 0
    %864 = vmatpush.bf16.xpose.msra.mxu0 0
    %865 = vmatpush.bf16.xpose.msra.mxu0 0
    %866 = vmatpush.bf16.xpose.msra.mxu0 0
    %867 = vmatpush.bf16.xpose.msra.mxu0 0
    %868 = vmatpush.bf16.xpose.msra.mxu0 0
    %869 = vmatpush.bf16.xpose.msra.mxu0 %v860
    %870 = vmatmul.bf16.gmra.mxu0 %v857
    %v871 = vpop.f32.mrf.mxu0
    %v872 = vadd.f32 0.0, %v871
    %v873 = vpop.f32.mrf.mxu0
    %874 = vdwg.mxu0
    %v875 = vmul.f32 %v844, 0.35355338
    %v876 = vmul.f32 %v872, 0.35355338
    %v877 = vsel %vm321, %v875, -10000.0
    %v878 = vsel %vm322, %v876, -10000.0
    %v879 = vsel %vm325, %v877, -inf
    %880 = vmax.xlane.f32.xlu0 %v879
    %v881 = vpop.xlane.xlu0 %880
    %v882 = vsel %vm325, %v878, -inf
    %883 = vmax.xlane.f32.xlu0 %v882
    %v884 = vpop.xlane.xlu0 %883
    %v885 = vsub.f32 %v877, %v881
    %v886 = vsub.f32 %v878, %v884
    %v887 = vmul.f32 %v885, 1.442695
    %v888 = vpow.pop %v887
    %v889 = vmul.f32 %v886, 1.442695
    %v890 = vpow.pop %v889
    %v891 = vsel %vm325, %v888, 0.0
    %892 = vadd.xlane.f32.xlu0 %v891
    %v893 = vpop.xlane.xlu0 %892
    %v894 = vsel %vm325, %v890, 0.0
    %895 = vadd.xlane.f32.xlu0 %v894
    %v896 = vpop.xlane.xlu0 %895
    %v897 = vrcp.pop %v893
    %v898 = vrcp.pop %v896
    %v899 = vmul.f32 %v888, %v897
    %v900 = vmul.f32 %v890, %v898
    %v901 = vpack.c.bf16 %v899, %v899
    %v902 = vpack.c.bf16 %v900, %v900
    %v905 = vunpack.c.l.b16 %v815
    %v906 = vunpack.c.l.b16 %v816
    %v907 = vpack.c.b16 %v906, %v905
    %908 = vrot.lane.b32.xlu0 %v907, 72
    %v909 = vpop.permute.xlu0 %908
    %v911 = vsel %vm325, %v901, 0
    %v914 = vsel %vm360, %v909, 0
    %916 = vmatpush.bf16.msra.mxu0 0
    %917 = vmatpush.bf16.msra.mxu0 0
    %918 = vmatpush.bf16.msra.mxu0 0
    %919 = vmatpush.bf16.msra.mxu0 0
    %920 = vmatpush.bf16.msra.mxu0 0
    %921 = vmatpush.bf16.msra.mxu0 0
    %922 = vmatpush.bf16.msra.mxu0 0
    %923 = vmatpush.bf16.msra.mxu0 %v914
    %924 = vmatmul.bf16.gmra.mxu0 %v911
    %v925 = vpop.f32.mrf.mxu0
    %v926 = vadd.f32 0.0, %v925
    %v927 = vpop.f32.mrf.mxu0
    %928 = vdwg.mxu0
    %v931 = vunpack.c.l.b16 %v817
    %v932 = vunpack.c.l.b16 %v818
    %v933 = vpack.c.b16 %v932, %v931
    %934 = vrot.lane.b32.xlu0 %v933, 72
    %v935 = vpop.permute.xlu0 %934
    %v937 = vsel %vm325, %v902, 0
    %v940 = vsel %vm360, %v935, 0
    %942 = vmatpush.bf16.msra.mxu0 0
    %943 = vmatpush.bf16.msra.mxu0 0
    %944 = vmatpush.bf16.msra.mxu0 0
    %945 = vmatpush.bf16.msra.mxu0 0
    %946 = vmatpush.bf16.msra.mxu0 0
    %947 = vmatpush.bf16.msra.mxu0 0
    %948 = vmatpush.bf16.msra.mxu0 0
    %949 = vmatpush.bf16.msra.mxu0 %v940
    %950 = vmatmul.bf16.gmra.mxu0 %v937
    %v951 = vpop.f32.mrf.mxu0
    %v952 = vadd.f32 0.0, %v951
    %v953 = vpop.f32.mrf.mxu0
    %954 = vdwg.mxu0
    %957 = vrot.lane.b32.xlu0 %v562, 8
    %v958 = vpop.permute.xlu0 %957
    %959 = vrot.lane.b32.xlu0 %v588, 8
    %v960 = vpop.permute.xlu0 %959
    %965 = vrot.lane.b32.xlu0 %v744, 16
    %v966 = vpop.permute.xlu0 %965
    %967 = vrot.lane.b32.xlu0 %v770, 16
    %v968 = vpop.permute.xlu0 %967
    %973 = vrot.lane.b32.xlu0 %v926, 24
    %v974 = vpop.permute.xlu0 %973
    %975 = vrot.lane.b32.xlu0 %v952, 24
    %v976 = vpop.permute.xlu0 %975
    %v979 = vsel %vm275, %v374, %v958
    %v980 = vsel %vm275, %v400, %v960
    %vm981 = vcmask 130048
    %v982 = vsel %vm981, %v979, %v966
    %v983 = vsel %vm981, %v980, %v968
    %vm984 = vcmask 195584
    %v985 = vsel %vm984, %v982, %v974
    %v986 = vsel %vm984, %v983, %v976
    %v987 = vpack.c.bf16 %v986, %v985
    %v988 = vld [vmem:[%s7] sm:$0xf]
    %v989 = vld [vmem:[%s7 + $0x4] sm:$0xf]
    %v990 = vld [vmem:[%s7 + $0x8] sm:$0xf]
    %v991 = vld [vmem:[%s7 + $0xc] sm:$0xf]
    %v992 = vld [vmem:[#allocation2] sm:$0x1]
    %v994 = vperm.slane %v992, 0
    %v1000 = vunpack.c.l.b16 %v988
    %v1001 = vunpack.c.l.b16 %v989
    %v1002 = vunpack.c.l.b16 %v990
    %v1003 = vunpack.c.l.b16 %v991
    %v1004 = vpack.c.b16 %v1001, %v1000
    %v1005 = vpack.c.b16 %v1003, %v1002
    %v1009 = vsel %vm139, %v987, 0
    %1011 = vmatpush.bf16.msra.mxu0 0
    %1012 = vmatpush.bf16.msra.mxu0 0
    %1013 = vmatpush.bf16.msra.mxu0 0
    %1014 = vmatpush.bf16.msra.mxu0 0
    %1015 = vmatpush.bf16.msra.mxu0 0
    %1016 = vmatpush.bf16.msra.mxu0 0
    %1017 = vmatpush.bf16.msra.mxu0 %v1005
    %1018 = vmatpush.bf16.msra.mxu0 %v1004
    %1019 = vmatmul.bf16.gmra.mxu0 %v1009
    %v1020 = vpop.f32.mrf.mxu0
    %v1021 = vadd.f32 %v994, %v1020
    %v1022 = vpop.f32.mrf.mxu0
    %v1023 = vadd.f32 %v994, %v1022
    %1024 = vdwg.mxu0
    %v1025 = vunpack.c.l.bf16 %v80
    %v1026 = vunpack.c.l.bf16 %v81
    %v1027 = vadd.f32 %v1021, %v1025
    %v1028 = vadd.f32 %v1023, %v1026
    %v1029 = vsel %vm139, %v1027, 0.0
    %1030 = vadd.xlane.f32.xlu0 %v1029
    %v1031 = vpop.xlane.xlu0 %1030
    %v1032 = vsel %vm139, %v1028, 0.0
    %1033 = vadd.xlane.f32.xlu0 %v1032
    %v1034 = vpop.xlane.xlu0 %1033
    %v1035 = vrcp.pop 32.0
    %v1036 = vmul.f32 32.0, %v1035
    %v1037 = vsub.f32 1.0, %v1036
    %v1038 = vmul.f32 %v1035, %v1037
    %v1039 = vadd.f32 %v1035, %v1038
    %vm1040 = vweird.f32 %v1035
    %v1041 = vsel %vm1040, %v1035, %v1039
    %v1042 = vmul.f32 %v1031, %v1041
    %v1043 = vmul.f32 %v1034, %v1041
    %v1044 = vsub.f32 %v1027, %v1042
    %v1045 = vsub.f32 %v1028, %v1043
    %v1046 = vmul.f32 %v1044, %v1044
    %v1047 = vmul.f32 %v1045, %v1045
    %v1048 = vsel %vm139, %v1046, 0.0
    %1049 = vadd.xlane.f32.xlu0 %v1048
    %v1050 = vpop.xlane.xlu0 %1049
    %v1051 = vsel %vm139, %v1047, 0.0
    %1052 = vadd.xlane.f32.xlu0 %v1051
    %v1053 = vpop.xlane.xlu0 %1052
    %v1054 = vmul.f32 %v1050, %v1041
    %v1055 = vmul.f32 %v1053, %v1041
    %v1056 = vadd.f32 %v1054, 1e-12
    %v1057 = vadd.f32 %v1055, 1e-12
    %v1058 = vrsqrt.pop %v1056
    %v1059 = vmul.f32 %v1058, %v1056
    %v1060 = vmul.f32 %v1059, %v1058
    %v1061 = vmul.f32 0.5, %v1060
    %v1062 = vsub.f32 1.5, %v1061
    %v1063 = vmul.f32 %v1058, %v1062
    %vm1064 = vweird.f32 %v1056
    %vm1065 = vweird.f32 %v1058
    %vm1066 = vmor %vm1064, %vm1065
    %v1067 = vsel %vm1066, %v1058, %v1063
    %v1068 = vrsqrt.pop %v1057
    %v1069 = vmul.f32 %v1068, %v1057
    %v1070 = vmul.f32 %v1069, %v1068
    %v1071 = vmul.f32 0.5, %v1070
    %v1072 = vsub.f32 1.5, %v1071
    %v1073 = vmul.f32 %v1068, %v1072
    %vm1074 = vweird.f32 %v1057
    %vm1075 = vweird.f32 %v1068
    %vm1076 = vmor %vm1074, %vm1075
    %v1077 = vsel %vm1076, %v1068, %v1073
    %v1078 = vmul.f32 %v1044, %v1067
    %v1079 = vmul.f32 %v1045, %v1077
    %v1080 = vld [vmem:[#allocation4] sm:$0x1]
    %v1082 = vperm.slane %v1080, 0
    %v1084 = vmul.f32 %v1078, %v1082
    %v1085 = vmul.f32 %v1079, %v1082
    %v1086 = vld [vmem:[#allocation6] sm:$0x1]
    %v1088 = vperm.slane %v1086, 0
    %v1090 = vadd.f32 %v1084, %v1088
    %v1091 = vadd.f32 %v1085, %v1088
    %v1092 = vpack.c.bf16 %v1090, %v1090
    %v1093 = vpack.c.bf16 %v1091, %v1091
    %vm1094 = vcmask 257024
    %1095 = vst.msk [vmem:[%s11] sm:$0xf] %vm1094, %v1092
    %1096 = vst.msk [vmem:[%s11 + $0x4] sm:$0xf] %vm1094, %v1093
    // Predicated region
    $region58: #{decoder_forward.11} parent=1 // pred_check
      _
    $region59: #{decoder_forward.11} parent=1 // pred_check_branch
      %1098 = sbr.rel (0) target = $region61
    $region60: #{decoder_forward.11} parent=1 // pred_region
      _
    $region61: #{decoder_forward.11} parent=1 // pred_fallthru
      _
    // Predicated region
    $region62: #{decoder_forward.11} parent=1 // pred_check
      _
    $region63: #{decoder_forward.11} parent=1 // pred_check_branch
      %1100 = sbr.rel (0) target = $region65
    $region64: #{decoder_forward.11} parent=1 // pred_region
      _
    $region65: #{decoder_forward.11} parent=1 // pred_fallthru
      _
    %1101 = vsyncpa [#allocation3], 1
    %1102 = vsyncpa [#allocation5], 1

// kernel: decoder_forward.13
$region0: #{decoder_forward.13}
  #allocation0 [shape = 'u32[]', space=smem, size = 0x4, offset = 0x4, fixed_abs, tag = 'smem constant byte address 0x4 - core index']
  #allocation1 [shape = 'u32[72,128]{1,0:T(1,128)}', space=vmem, size = 0x9000, scoped, tag = 'internal scratch']
  %s0 = inlined_call_operand.vmem [shape: bf16[16,32], index: 0, kind: input, shape index: {}]
  %s1 = inlined_call_operand.vmem [shape: bf16[32,128], index: 1, kind: input, shape index: {}]
  %s2 = inlined_call_operand.vmem [shape: f32[1,128], index: 2, kind: input, shape index: {}]
  %s3 = inlined_call_operand.vmem [shape: f32[16,128], index: 3, kind: output, shape index: {}]
  %s4 = sld [smem:[#allocation0]]
  $region22: #{decoder_forward.13} parent=0
    _
  %s6 = ssub.s32 1, %s4
  %s7 = scalar_select 0, %s6, %s4
  // Predicated region
  $region2: #{decoder_forward.13} parent=0 // pred_check
    _
  $region3: #{decoder_forward.13} parent=0 // pred_check_branch
    %9 = sbr.rel (0) target = $region5
  $region4: #{decoder_forward.13} parent=0 // pred_region
    _
  $region5: #{decoder_forward.13} parent=0 // pred_fallthru
    _
  // Predicated region
  $region6: #{decoder_forward.13} parent=0 // pred_check
    _
  $region7: #{decoder_forward.13} parent=0 // pred_check_branch
    %11 = sbr.rel (0) target = $region9
  $region8: #{decoder_forward.13} parent=0 // pred_region
    _
  $region9: #{decoder_forward.13} parent=0 // pred_fallthru
    _
  // Predicated region
  $region10: #{decoder_forward.13} parent=0 // pred_check
    _
  $region11: #{decoder_forward.13} parent=0 // pred_check_branch
    %13 = sbr.rel (0) target = $region13
  $region12: #{decoder_forward.13} parent=0 // pred_region
    _
  $region13: #{decoder_forward.13} parent=0 // pred_fallthru
    _
  %v15 = vld [vmem:[%s0] sm:$0xf]
  %v16 = vld [vmem:[%s0 + $0x4] sm:$0xf]
  %v17 = vld [vmem:[%s1] sm:$0xf]
  %v18 = vld [vmem:[%s1 + $0x4] sm:$0xf]
  %v19 = vld [vmem:[%s1 + $0x8] sm:$0xf]
  %v20 = vld [vmem:[%s1 + $0xc] sm:$0xf]
  %v21 = vld [vmem:[%s2] sm:$0x1]
  %v23 = vperm.slane %v21, 0
  %v27 = vunpack.c.l.b16 %v15
  %v28 = vunpack.c.l.b16 %v16
  %v29 = vpack.c.b16 %v28, %v27
  %v34 = vunpack.c.l.b16 %v17
  %v35 = vunpack.c.l.b16 %v18
  %v36 = vunpack.c.l.b16 %v19
  %v37 = vunpack.c.l.b16 %v20
  %v38 = vpack.c.b16 %v35, %v34
  %v39 = vpack.c.b16 %v37, %v36
  %vm42 = vcmask 261120
  %v44 = vsel %vm42, %v29, 0
  %46 = vmatpush.bf16.msra.mxu0 0
  %47 = vmatpush.bf16.msra.mxu0 0
  %48 = vmatpush.bf16.msra.mxu0 0
  %49 = vmatpush.bf16.msra.mxu0 0
  %50 = vmatpush.bf16.msra.mxu0 0
  %51 = vmatpush.bf16.msra.mxu0 0
  %52 = vmatpush.bf16.msra.mxu0 %v39
  %53 = vmatpush.bf16.msra.mxu0 %v38
  %54 = vmatmul.bf16.gmra.mxu0 %v44
  %v55 = vpop.f32.mrf.mxu0
  %v56 = vadd.f32 %v23, %v55
  %v57 = vpop.f32.mrf.mxu0
  %v58 = vadd.f32 %v23, %v57
  %59 = vdwg.mxu0
  %60 = vst [vmem:[%s3] sm:$0xff] %v56
  %61 = vst [vmem:[%s3 + $0x8] sm:$0xff] %v58
  // Predicated region
  $region14: #{decoder_forward.13} parent=0 // pred_check
    _
  $region15: #{decoder_forward.13} parent=0 // pred_check_branch
    %63 = sbr.rel (0) target = $region17
  $region16: #{decoder_forward.13} parent=0 // pred_region
    _
  $region17: #{decoder_forward.13} parent=0 // pred_fallthru
    _
  // Predicated region
  $region18: #{decoder_forward.13} parent=0 // pred_check
    _
  $region19: #{decoder_forward.13} parent=0 // pred_check_branch
    %65 = sbr.rel (0) target = $region21
  $region20: #{decoder_forward.13} parent=0 // pred_region
    _
  $region21: #{decoder_forward.13} parent=0 // pred_fallthru
    _

</llo_original>
